<compile_context>
chip_gen: v7x
topology: tpu7x:2x2x1
jax: 0.10.0
libtpu: 0.0.40
codegen_flags: <defaults>
</compile_context>

<pallas_src>
import functools
from math import sqrt

import jax
import jax.numpy as jnp
from jax import lax
from jax.experimental import pallas as pl
from jax.experimental.pallas import tpu as pltpu


def conv_relu_kernel(x_ref, w_ref, o_ref, xpad_ref, acc_ref):
    # x_ref   : (NB, H, W, C)        bf16 unpadded input images for this grid step
    # w_ref   : (K, K*C, C)          bf16 weights, horizontal taps folded into contraction
    # o_ref   : (NB, H, W, C)        f32 output block
    # xpad_ref: (NB, H+2p, W+2p, C)  bf16 VMEM scratch (zero border = "same" padding)
    # acc_ref : (NB*H*W, C)          f32 VMEM accumulator
    NB, H, W, C = x_ref.shape
    K = w_ref.shape[0]
    KC = w_ref.shape[1]
    Co = o_ref.shape[3]
    pad = (K - 1) // 2
    M = NB * H * W

    # Zero-pad inside the kernel: zero the scratch, then write the interior.
    # (Re-zeroed every step so it is correct even when grid steps land on different cores.)
    xpad_ref[...] = jnp.zeros_like(xpad_ref)
    xpad_ref[:, pad:pad + H, pad:pad + W, :] = x_ref[...]

    # One MXU matmul per kernel row: contraction dim = K*C (e.g. 192 for 3x64).
    for dy in range(K):  # static unroll, K is small (3)
        # K horizontally-shifted views concatenated on the channel (lane) axis.
        cat = jnp.concatenate(
            [xpad_ref[:, dy:dy + H, dx:dx + W, :] for dx in range(K)], axis=-1)
        contrib = jnp.dot(cat.reshape(M, KC), w_ref[dy],
                          preferred_element_type=jnp.float32)
        if dy == 0:
            acc_ref[...] = contrib
        else:
            acc_ref[...] = acc_ref[...] + contrib

    out = jnp.maximum(acc_ref[...], 0.0)                 # ReLU in f32
    o_ref[...] = out.reshape(NB, H, W, Co).astype(o_ref.dtype)


def _images_per_step(n, h, w, c, ksize):
    """Fold as many images as fit one grid step (bigger matmul M), but keep >= 2 grid
    steps when n > 1 so both TensorCores stay busy on dual-TC / megacore chips."""
    hp, wp = h + ksize - 1, w + ksize - 1
    per_img = (h * w * c) * 2 * 2        # bf16 input block, double-buffered
    per_img += (h * w * c) * 4 * 2       # f32 output block, double-buffered
    per_img += (hp * wp * c) * 2         # bf16 padded scratch
    per_img += (h * w * c) * 4           # f32 accumulator
    budget = 8 * 1024 * 1024
    best = 1
    for nb in range(1, n + 1):
        if n % nb:
            continue
        if nb * per_img > budget:
            continue
        if n > 1 and n // nb < 2:
            continue
        best = nb
    return best


@functools.partial(jax.jit, static_argnames=("ksize",))
def conv_relu_block_nhwc(x_nhwc, w_hwio, *, ksize=3):
    """Conv_ReLU_Block forward, channels-last.
    x_nhwc: (N, H, W, C); w_hwio: (K, K, Cin, Cout) with Cin == Cout. Returns (N, H, W, C) f32."""
    N, H, W, C = x_nhwc.shape
    K = ksize
    assert K % 2 == 1, "padding=(K-1)//2 matches 'same' only for odd kernel sizes"
    assert w_hwio.shape == (K, K, C, C)
    pad = (K - 1) // 2
    NB = _images_per_step(N, H, W, C, K)

    x_bf16 = x_nhwc.astype(jnp.bfloat16)
    # Fold horizontal taps into the contraction axis: (K, K, Cin, Cout) -> (K, K*Cin, Cout)
    w_fused = w_hwio.astype(jnp.bfloat16).reshape(K, K * C, C)

    return pl.pallas_call(
        conv_relu_kernel,
        out_shape=jax.ShapeDtypeStruct((N, H, W, C), jnp.float32),
        grid_spec=pltpu.PrefetchScalarGridSpec(
            num_scalar_prefetch=0,
            grid=(N // NB,),
            in_specs=[
                pl.BlockSpec((NB, H, W, C), lambda b: (b, 0, 0, 0)),
                pl.BlockSpec((K, K * C, C), lambda b: (0, 0, 0)),
            ],
            out_specs=pl.BlockSpec((NB, H, W, C), lambda b: (b, 0, 0, 0)),
            scratch_shapes=[
                pltpu.VMEM((NB, H + 2 * pad, W + 2 * pad, C), jnp.bfloat16),
                pltpu.VMEM((NB * H * W, C), jnp.float32),
            ],
        ),
        compiler_params=pltpu.CompilerParams(
            dimension_semantics=("parallel",),
            vmem_limit_bytes=32 * 1024 * 1024,
        ),
    )(x_bf16, w_fused)


def conv_relu_block(x_nchw, w_oihw, *, ksize=3):
    """PyTorch-layout adapter (NCHW in/out, OIHW weights). In a full FMNet stack the
    layout conversion should be done ONCE at the network boundary, not per block."""
    x = jnp.transpose(x_nchw, (0, 2, 3, 1))
    w = jnp.transpose(w_oihw, (2, 3, 1, 0))
    y = conv_relu_block_nhwc(x, w, ksize=ksize)
    return jnp.transpose(y, (0, 3, 1, 2))


@jax.jit
def reference_conv_relu_nhwc(x_nhwc, w_hwio):
    # Same numerics as the kernel: bf16 operands, f32 accumulation, ReLU in f32.
    y = lax.conv_general_dilated(
        x_nhwc.astype(jnp.bfloat16), w_hwio.astype(jnp.bfloat16),
        window_strides=(1, 1), padding="SAME",
        dimension_numbers=("NHWC", "HWIO", "NHWC"),
        preferred_element_type=jnp.float32)
    return jnp.maximum(y, 0.0)


if __name__ == "__main__":
    nFeat, ksize = 64, 3
    N, H, W = 2, 16, 16

    key = jax.random.PRNGKey(0)
    kx, kw = jax.random.split(key)

    # PyTorch-style NCHW input and OIHW weight (nn.Conv2d(nFeat, nFeat, 3, bias=False)),
    # weight scaled like sqrt(2 / fan_in).
    x_nchw = jax.random.normal(kx, (N, nFeat, H, W), dtype=jnp.float32)
    w_oihw = jax.random.normal(kw, (nFeat, nFeat, ksize, ksize), dtype=jnp.float32) \
        * sqrt(2.0 / (ksize * ksize * nFeat))

    # One-time layout conversion at the network boundary; the pipeline itself is NHWC.
    x_nhwc = jnp.transpose(x_nchw, (0, 2, 3, 1))
    w_hwio = jnp.transpose(w_oihw, (2, 3, 1, 0))   # (K, K, Cin, Cout)

    out = jax.block_until_ready(conv_relu_block_nhwc(x_nhwc, w_hwio, ksize=ksize))
    ref = jax.block_until_ready(reference_conv_relu_nhwc(x_nhwc, w_hwio))

    assert out.shape == (N, H, W, nFeat)
    max_err = jnp.max(jnp.abs(out - ref))
    assert jnp.allclose(out, ref, atol=1e-2, rtol=1e-2), \
        f"mismatch vs reference conv (max abs err {max_err})"
    assert jnp.all(out >= 0.0), "ReLU violated"

    print("KERNEL_OK")
</pallas_src>

<mosaic_0001>
module attributes {stable_mosaic.version = 11 : i64} {
  func.func @conv_relu_kernel(%arg0: i32, %arg1: memref<1x16x16x64xbf16, #tpu.memory_space<vmem>>, %arg2: memref<3x192x64xbf16, #tpu.memory_space<vmem>>, %arg3: memref<1x16x16x64xf32, #tpu.memory_space<vmem>>, %arg4: memref<1x18x18x64xbf16, #tpu.memory_space<vmem>>, %arg5: memref<256x64xf32, #tpu.memory_space<vmem>>) attributes {dimension_semantics = [#tpu.dimension_semantics<parallel>], iteration_bounds = array<i64: 2>, scalar_prefetch = 0 : i64, scratch_operands = 2 : i64, tpu.core_type = #tpu.core_type<tc>, window_params = [{transform_indices = @transform_0, window_bounds = array<i64: 1, 16, 16, 64>}, {pipeline_mode = #tpu.pipeline_mode<synchronous>, transform_indices = @transform_1, window_bounds = array<i64: 3, 192, 64>}, {transform_indices = @transform_2, window_bounds = array<i64: 1, 16, 16, 64>}]} {
    %cst = arith.constant 0.000000e+00 : bf16
    %0 = vector.broadcast %cst : bf16 to vector<1x18x18x64xbf16>
    %c0 = arith.constant 0 : index
    %c0_0 = arith.constant 0 : index
    %c0_1 = arith.constant 0 : index
    %c0_2 = arith.constant 0 : index
    %1 = vector.load %arg4[%c0, %c0_0, %c0_1, %c0_2] : memref<1x18x18x64xbf16, #tpu.memory_space<vmem>>, vector<1x18x18x64xbf16>
    tpu.vector_store %arg4[%c0, %c0_0, %c0_1, %c0_2], %0 {strides = array<i32>} : memref<1x18x18x64xbf16, #tpu.memory_space<vmem>>, vector<1x18x18x64xbf16>,
    %c0_3 = arith.constant 0 : index
    %c0_4 = arith.constant 0 : index
    %c0_5 = arith.constant 0 : index
    %c0_6 = arith.constant 0 : index
    %2 = vector.load %arg1[%c0_3, %c0_4, %c0_5, %c0_6] : memref<1x16x16x64xbf16, #tpu.memory_space<vmem>>, vector<1x16x16x64xbf16>
    %c0_7 = arith.constant 0 : index
    %c1 = arith.constant 1 : index
    %c1_8 = arith.constant 1 : index
    %c0_9 = arith.constant 0 : index
    %3 = vector.load %arg4[%c0_7, %c1, %c1_8, %c0_9] : memref<1x18x18x64xbf16, #tpu.memory_space<vmem>>, vector<1x16x16x64xbf16>
    tpu.vector_store %arg4[%c0_7, %c1, %c1_8, %c0_9], %2 {strides = array<i32>} : memref<1x18x18x64xbf16, #tpu.memory_space<vmem>>, vector<1x16x16x64xbf16>,
    %c0_10 = arith.constant 0 : index
    %c0_11 = arith.constant 0 : index
    %c0_12 = arith.constant 0 : index
    %c0_13 = arith.constant 0 : index
    %4 = vector.load %arg4[%c0_10, %c0_11, %c0_12, %c0_13] : memref<1x18x18x64xbf16, #tpu.memory_space<vmem>>, vector<1x16x16x64xbf16>
    %c0_14 = arith.constant 0 : index
    %c0_15 = arith.constant 0 : index
    %c1_16 = arith.constant 1 : index
    %c0_17 = arith.constant 0 : index
    %5 = vector.load %arg4[%c0_14, %c0_15, %c1_16, %c0_17] : memref<1x18x18x64xbf16, #tpu.memory_space<vmem>>, vector<1x16x16x64xbf16>
    %c0_18 = arith.constant 0 : index
    %c0_19 = arith.constant 0 : index
    %c2 = arith.constant 2 : index
    %c0_20 = arith.constant 0 : index
    %6 = vector.load %arg4[%c0_18, %c0_19, %c2, %c0_20] : memref<1x18x18x64xbf16, #tpu.memory_space<vmem>>, vector<1x16x16x64xbf16>
    %7 = tpu.concatenate %4, %5, %6 in 3 : vector<1x16x16x64xbf16>, vector<1x16x16x64xbf16>, vector<1x16x16x64xbf16> -> vector<1x16x16x192xbf16>
    %8 = vector.shape_cast %7 : vector<1x16x16x192xbf16> to vector<256x192xbf16>
    %c0_21 = arith.constant 0 : index
    %c0_22 = arith.constant 0 : index
    %c0_23 = arith.constant 0 : index
    %9 = vector.load %arg2[%c0_21, %c0_22, %c0_23] : memref<3x192x64xbf16, #tpu.memory_space<vmem>>, vector<1x192x64xbf16>
    %10 = vector.shape_cast %9 : vector<1x192x64xbf16> to vector<192x64xbf16>
    %cst_24 = arith.constant dense<0.000000e+00> : vector<256x64xf32>
    %11 = tpu.matmul %8, %10, %cst_24 {dimension_numbers = #tpu.dot_dimension_numbers<[1], [0], [0], [1], [0, 0, 1, 1], [], []>} : vector<256x192xbf16>, vector<192x64xbf16>, vector<256x64xf32> -> vector<256x64xf32>
    %c0_25 = arith.constant 0 : index
    %c0_26 = arith.constant 0 : index
    %12 = vector.load %arg5[%c0_25, %c0_26] : memref<256x64xf32, #tpu.memory_space<vmem>>, vector<256x64xf32>
    tpu.vector_store %arg5[%c0_25, %c0_26], %11 {strides = array<i32>} : memref<256x64xf32, #tpu.memory_space<vmem>>, vector<256x64xf32>,
    %c0_27 = arith.constant 0 : index
    %c1_28 = arith.constant 1 : index
    %c0_29 = arith.constant 0 : index
    %c0_30 = arith.constant 0 : index
    %13 = vector.load %arg4[%c0_27, %c1_28, %c0_29, %c0_30] : memref<1x18x18x64xbf16, #tpu.memory_space<vmem>>, vector<1x16x16x64xbf16>
    %c0_31 = arith.constant 0 : index
    %c1_32 = arith.constant 1 : index
    %c1_33 = arith.constant 1 : index
    %c0_34 = arith.constant 0 : index
    %14 = vector.load %arg4[%c0_31, %c1_32, %c1_33, %c0_34] : memref<1x18x18x64xbf16, #tpu.memory_space<vmem>>, vector<1x16x16x64xbf16>
    %c0_35 = arith.constant 0 : index
    %c1_36 = arith.constant 1 : index
    %c2_37 = arith.constant 2 : index
    %c0_38 = arith.constant 0 : index
    %15 = vector.load %arg4[%c0_35, %c1_36, %c2_37, %c0_38] : memref<1x18x18x64xbf16, #tpu.memory_space<vmem>>, vector<1x16x16x64xbf16>
    %16 = tpu.concatenate %13, %14, %15 in 3 : vector<1x16x16x64xbf16>, vector<1x16x16x64xbf16>, vector<1x16x16x64xbf16> -> vector<1x16x16x192xbf16>
    %17 = vector.shape_cast %16 : vector<1x16x16x192xbf16> to vector<256x192xbf16>
    %c1_39 = arith.constant 1 : index
    %c0_40 = arith.constant 0 : index
    %c0_41 = arith.constant 0 : index
    %18 = vector.load %arg2[%c1_39, %c0_40, %c0_41] : memref<3x192x64xbf16, #tpu.memory_space<vmem>>, vector<1x192x64xbf16>
    %19 = vector.shape_cast %18 : vector<1x192x64xbf16> to vector<192x64xbf16>
    %cst_42 = arith.constant dense<0.000000e+00> : vector<256x64xf32>
    %20 = tpu.matmul %17, %19, %cst_42 {dimension_numbers = #tpu.dot_dimension_numbers<[1], [0], [0], [1], [0, 0, 1, 1], [], []>} : vector<256x192xbf16>, vector<192x64xbf16>, vector<256x64xf32> -> vector<256x64xf32>
    %c0_43 = arith.constant 0 : index
    %c0_44 = arith.constant 0 : index
    %21 = vector.load %arg5[%c0_43, %c0_44] : memref<256x64xf32, #tpu.memory_space<vmem>>, vector<256x64xf32>
    %22 = arith.addf %21, %20 : vector<256x64xf32>
    %c0_45 = arith.constant 0 : index
    %c0_46 = arith.constant 0 : index
    %23 = vector.load %arg5[%c0_45, %c0_46] : memref<256x64xf32, #tpu.memory_space<vmem>>, vector<256x64xf32>
    tpu.vector_store %arg5[%c0_45, %c0_46], %22 {strides = array<i32>} : memref<256x64xf32, #tpu.memory_space<vmem>>, vector<256x64xf32>,
    %c0_47 = arith.constant 0 : index
    %c2_48 = arith.constant 2 : index
    %c0_49 = arith.constant 0 : index
    %c0_50 = arith.constant 0 : index
    %24 = vector.load %arg4[%c0_47, %c2_48, %c0_49, %c0_50] : memref<1x18x18x64xbf16, #tpu.memory_space<vmem>>, vector<1x16x16x64xbf16>
    %c0_51 = arith.constant 0 : index
    %c2_52 = arith.constant 2 : index
    %c1_53 = arith.constant 1 : index
    %c0_54 = arith.constant 0 : index
    %25 = vector.load %arg4[%c0_51, %c2_52, %c1_53, %c0_54] : memref<1x18x18x64xbf16, #tpu.memory_space<vmem>>, vector<1x16x16x64xbf16>
    %c0_55 = arith.constant 0 : index
    %c2_56 = arith.constant 2 : index
    %c2_57 = arith.constant 2 : index
    %c0_58 = arith.constant 0 : index
    %26 = vector.load %arg4[%c0_55, %c2_56, %c2_57, %c0_58] : memref<1x18x18x64xbf16, #tpu.memory_space<vmem>>, vector<1x16x16x64xbf16>
    %27 = tpu.concatenate %24, %25, %26 in 3 : vector<1x16x16x64xbf16>, vector<1x16x16x64xbf16>, vector<1x16x16x64xbf16> -> vector<1x16x16x192xbf16>
    %28 = vector.shape_cast %27 : vector<1x16x16x192xbf16> to vector<256x192xbf16>
    %c2_59 = arith.constant 2 : index
    %c0_60 = arith.constant 0 : index
    %c0_61 = arith.constant 0 : index
    %29 = vector.load %arg2[%c2_59, %c0_60, %c0_61] : memref<3x192x64xbf16, #tpu.memory_space<vmem>>, vector<1x192x64xbf16>
    %30 = vector.shape_cast %29 : vector<1x192x64xbf16> to vector<192x64xbf16>
    %cst_62 = arith.constant dense<0.000000e+00> : vector<256x64xf32>
    %31 = tpu.matmul %28, %30, %cst_62 {dimension_numbers = #tpu.dot_dimension_numbers<[1], [0], [0], [1], [0, 0, 1, 1], [], []>} : vector<256x192xbf16>, vector<192x64xbf16>, vector<256x64xf32> -> vector<256x64xf32>
    %c0_63 = arith.constant 0 : index
    %c0_64 = arith.constant 0 : index
    %32 = vector.load %arg5[%c0_63, %c0_64] : memref<256x64xf32, #tpu.memory_space<vmem>>, vector<256x64xf32>
    %33 = arith.addf %32, %31 : vector<256x64xf32>
    %c0_65 = arith.constant 0 : index
    %c0_66 = arith.constant 0 : index
    %34 = vector.load %arg5[%c0_65, %c0_66] : memref<256x64xf32, #tpu.memory_space<vmem>>, vector<256x64xf32>
    tpu.vector_store %arg5[%c0_65, %c0_66], %33 {strides = array<i32>} : memref<256x64xf32, #tpu.memory_space<vmem>>, vector<256x64xf32>,
    %c0_67 = arith.constant 0 : index
    %c0_68 = arith.constant 0 : index
    %35 = vector.load %arg5[%c0_67, %c0_68] : memref<256x64xf32, #tpu.memory_space<vmem>>, vector<256x64xf32>
    %cst_69 = arith.constant 0.000000e+00 : f32
    %36 = vector.broadcast %cst_69 : f32 to vector<256x64xf32>
    %37 = arith.maximumf %35, %36 : vector<256x64xf32>
    %38 = vector.shape_cast %37 : vector<256x64xf32> to vector<1x16x16x64xf32>
    %c0_70 = arith.constant 0 : index
    %c0_71 = arith.constant 0 : index
    %c0_72 = arith.constant 0 : index
    %c0_73 = arith.constant 0 : index
    %39 = vector.load %arg3[%c0_70, %c0_71, %c0_72, %c0_73] : memref<1x16x16x64xf32, #tpu.memory_space<vmem>>, vector<1x16x16x64xf32>
    tpu.vector_store %arg3[%c0_70, %c0_71, %c0_72, %c0_73], %38 {strides = array<i32>} : memref<1x16x16x64xf32, #tpu.memory_space<vmem>>, vector<1x16x16x64xf32>,
    return
  }
  func.func @transform_0(%arg0: i32) -> (i32, i32, i32, i32) {
    %c0_i32 = arith.constant 0 : i32
    %c0_i32_0 = arith.constant 0 : i32
    %c0_i32_1 = arith.constant 0 : i32
    %c0_i32_2 = arith.constant 0 : i32
    return %arg0, %c0_i32, %c0_i32_0, %c0_i32_1 : i32, i32, i32, i32
  }
  func.func @transform_1(%arg0: i32) -> (i32, i32, i32) {
    %c0_i32 = arith.constant 0 : i32
    %c0_i32_0 = arith.constant 0 : i32
    %c0_i32_1 = arith.constant 0 : i32
    %c0_i32_2 = arith.constant 0 : i32
    return %c0_i32, %c0_i32_0, %c0_i32_1 : i32, i32, i32
  }
  func.func @transform_2(%arg0: i32) -> (i32, i32, i32, i32) {
    %c0_i32 = arith.constant 0 : i32
    %c0_i32_0 = arith.constant 0 : i32
    %c0_i32_1 = arith.constant 0 : i32
    %c0_i32_2 = arith.constant 0 : i32
    return %arg0, %c0_i32, %c0_i32_0, %c0_i32_1 : i32, i32, i32, i32
  }
}

</mosaic_0001>

<llo_original>
// kernel: conv_relu_block_nhwc.1
$region0: #{conv_relu_block_nhwc.1}
  #allocation0 [shape = 'u32[]', space=smem, size = 0x4, offset = 0x4, fixed_abs, tag = 'smem constant byte address 0x4 - core index']
  #allocation1 [shape = 'u32[144,128]{1,0:T(1,128)}', space=vmem, size = 0x12000, scoped, tag = 'internal scratch']
  #allocation2 [shape = 'bf16[1,18,18,64]{3,2,1,0:T(8,128)(2,1)}', space=vmem, size = 0x1b000, scoped, tag = 'scratch operand']
  #allocation3 [shape = 'f32[256,64]{1,0:T(8,128)}', space=vmem, size = 0x20000, scoped, tag = 'scratch operand']
  %s0 = inlined_call_operand.vmem [shape: bf16[2,16,16,64], index: 0, kind: input, shape index: {}]
  %s1 = inlined_call_operand.vmem [shape: bf16[3,192,64], index: 1, kind: input, shape index: {}]
  %s2 = inlined_call_operand.hbm [shape: f32[2,16,16,64], index: 2, kind: output, shape index: {}]
  %s3 = sld [smem:[#allocation0]]
  $region41: #{conv_relu_block_nhwc.1} parent=0
    _
  %s5 = ssub.s32 1, %s3
  %s6 = scalar_select 0, %s5, %s3
  $region1: #{conv_relu_block_nhwc.1} parent=0
    #allocation4 [shape = 'u8[262144]{0}', space=vmem, size = 0x40000, scoped, tag = 'output window, operand 0']
    #allocation5 [shape = 's32[2]{0}', space=sflag, size = 0x8, scoped, tag = 'scoped memory for conv_relu_block_nhwc.1']
    %7 = vsyncpa [#allocation5], 0
    %s8 = scalar_lea.sflag [#allocation5], 1
    %9 = vsyncpa %s8, 0
    loop: start=0, step=1, limit=4
    $region2: #{conv_relu_block_nhwc.1} parent=1 // loop_pre_header
      _
    $region3: #{conv_relu_block_nhwc.1} parent=1 // loop_header
      %s11 = sphi 0, %s15
      %p12 = scmp.ge.s32.totalorder %s11, 4
      %s21 = sphi 0, %s23
      %s24 = sphi 0, %s21
      %s25 = sphi 0, %s24
      %s41 = sphi 0, %s25
      %s45 = sphi 0, %s45
      %s47 = sphi 0, %s45
      %s48 = sphi 0, %s47
      %s62 = sphi 0, %s48
      %s68 = sphi 0, %s70
      %s71 = sphi 0, %s68
      %s72 = sphi 0, %s71
      %s88 = sphi 0, %s72
    $region4: #{conv_relu_block_nhwc.1} parent=1 // loop_header_branch
      %14 = sbr.rel (%p12) target = $region8
    $region5: #{conv_relu_block_nhwc.1} parent=1 // loop_body
      %s16 = ssub.s32 %s11, 1
      %s17 = ssub.s32 %s11, 2
      %s18 = sadd.s32 %s11, 1
      %s19 = ssub.s32 %s11, %s18
      %p20 = scmp.eq.s32.totalorder %s19, 0
      %s22 = sadd.s32 %s21, 1
      %s23 = scalar_select %p20, %s21, %s22
      %p26 = pneg %p20
      %p27 = scmp.eq.s32.totalorder %s11, 1
      %p28 = por %p26, %p27
      %p29 = scmp.ne.s32.totalorder %s21, %s24
      %p30 = scmp.eq.s32.totalorder %s11, 0
      %p31 = por %p29, %p30
      %p32 = scmp.ne.s32.totalorder %s21, %s24
      %p33 = scmp.eq.s32.totalorder %s16, 1
      %p34 = por %p32, %p33
      %p35 = scmp.ne.s32.totalorder %s24, %s25
      %p36 = scmp.eq.s32.totalorder %s16, 0
      %p37 = por %p35, %p36
      %p38 = scmp.ne.s32.totalorder %s24, %s25
      %p39 = scmp.eq.s32.totalorder %s17, 1
      %p40 = por %p38, %p39
      %p42 = scmp.ne.s32.totalorder %s25, %s41
      %p43 = scmp.eq.s32.totalorder %s17, 0
      %p44 = por %p42, %p43
      %s46 = sadd.s32 %s45, 1
      %p49 = scmp.eq.s32.totalorder %s11, 1
      %p50 = scmp.ne.s32.totalorder %s45, %s47
      %p51 = scmp.eq.s32.totalorder %s11, 0
      %p52 = por %p50, %p51
      %p53 = scmp.ne.s32.totalorder %s45, %s47
      %p54 = scmp.eq.s32.totalorder %s16, 1
      %p55 = por %p53, %p54
      %p56 = scmp.ne.s32.totalorder %s47, %s48
      %p57 = scmp.eq.s32.totalorder %s16, 0
      %p58 = por %p56, %p57
      %p59 = scmp.ne.s32.totalorder %s47, %s48
      %p60 = scmp.eq.s32.totalorder %s17, 1
      %p61 = por %p59, %p60
      %p63 = scmp.ne.s32.totalorder %s48, %s62
      %p64 = scmp.eq.s32.totalorder %s17, 0
      %p65 = por %p63, %p64
      %s66 = ssub.s32 %s11, %s18
      %p67 = scmp.eq.s32.totalorder %s66, 0
      %s69 = sadd.s32 %s68, 1
      %s70 = scalar_select %p67, %s68, %s69
      %p73 = pneg %p67
      %p74 = scmp.eq.s32.totalorder %s11, 1
      %p75 = por %p73, %p74
      %p76 = scmp.ne.s32.totalorder %s68, %s71
      %p77 = scmp.eq.s32.totalorder %s11, 0
      %p78 = por %p76, %p77
      %p79 = scmp.ne.s32.totalorder %s68, %s71
      %p80 = scmp.eq.s32.totalorder %s16, 1
      %p81 = por %p79, %p80
      %p82 = scmp.ne.s32.totalorder %s71, %s72
      %p83 = scmp.eq.s32.totalorder %s16, 0
      %p84 = por %p82, %p83
      %p85 = scmp.ne.s32.totalorder %s71, %s72
      %p86 = scmp.eq.s32.totalorder %s17, 1
      %p87 = por %p85, %p86
      %p89 = scmp.ne.s32.totalorder %s72, %s88
      %p90 = scmp.eq.s32.totalorder %s17, 0
      %p91 = por %p89, %p90
      %p92 = scmp.le.s32.totalorder 1, %s11
      %p93 = scmp.lt.s32.totalorder %s11, 3
      %p94 = pnand %p92, %p93
      %p95 = pneg %p94
      // Predicated region
      $region9: #{conv_relu_block_nhwc.1} parent=5 // pred_check
        _
      $region10: #{conv_relu_block_nhwc.1} parent=5 // pred_check_branch
        %97 = sbr.rel (%p94) target = $region12
      $region11: #{conv_relu_block_nhwc.1} parent=5 // pred_region
        %s98 = ssub.s32 %s11, 1
        // Predicated region
        $region13: #{conv_relu_block_nhwc.1} parent=11 // pred_check
          %p99 = pneg %p58
        $region14: #{conv_relu_block_nhwc.1} parent=11 // pred_check_branch
          %101 = sbr.rel (%p99) target = $region16
        $region15: #{conv_relu_block_nhwc.1} parent=11 // pred_region
          _
        $region16: #{conv_relu_block_nhwc.1} parent=11 // pred_fallthru
          _
      $region12: #{conv_relu_block_nhwc.1} parent=5 // pred_fallthru
        _
      %p102 = scmp.lt.s32.totalorder %s11, 2
      // Predicated region
      $region17: #{conv_relu_block_nhwc.1} parent=5 // pred_check
        %p103 = pneg %p102
      $region18: #{conv_relu_block_nhwc.1} parent=5 // pred_check_branch
        %105 = sbr.rel (%p103) target = $region20
      $region19: #{conv_relu_block_nhwc.1} parent=5 // pred_region
        // Predicated region
        $region21: #{conv_relu_block_nhwc.1} parent=19 // pred_check
          %p106 = pneg %p31
        $region22: #{conv_relu_block_nhwc.1} parent=19 // pred_check_branch
          %108 = sbr.rel (%p106) target = $region24
        $region23: #{conv_relu_block_nhwc.1} parent=19 // pred_region
          %p109 = scmp.lt.s32.totalorder %s11, 1
          %s110 = scalar_select %p109, %s11, 1
          %s111 = smul.addr %s110, 32
          %s112 = smul.addr %s111, 4
          %s113 = scalar_lea.vmem %s0, %s112
        $region24: #{conv_relu_block_nhwc.1} parent=19 // pred_fallthru
          _
      $region20: #{conv_relu_block_nhwc.1} parent=5 // pred_fallthru
        _
      %p114 = scmp.le.s32.totalorder 1, %s11
      %p115 = scmp.lt.s32.totalorder %s11, 3
      %p116 = pnand %p114, %p115
      %p117 = pneg %p116
      // Predicated region
      $region25: #{conv_relu_block_nhwc.1} parent=5 // pred_check
        _
      $region26: #{conv_relu_block_nhwc.1} parent=5 // pred_check_branch
        %119 = sbr.rel (%p116) target = $region28
      $region27: #{conv_relu_block_nhwc.1} parent=5 // pred_region
        %s120 = ssub.s32 %s11, 1
        %p121 = scmp.lt.s32.totalorder %s16, 1
        %s122 = scalar_select %p121, %s16, 1
        %s123 = smul.addr %s122, 32
        %s124 = smul.addr %s123, 4
        %s125 = scalar_lea.vmem %s0, %s124
        %p126 = pneg %p37
        %p127 = pneg %p34
        %p128 = pneg %p58
        %p129 = pneg %p55
        %p130 = pneg %p84
        %p131 = pneg %p81
        %s132 = sand.u32 %s71, 1
        %s133 = scalar_lea.sflag [#allocation5], %s132
        %s134 = sand.u32 %s71, 1
        %s135 = smul.addr %s134, 256
        %s136 = scalar_lea.vmem [#allocation4], %s135
        %p137 = scmp.lt.s32.totalorder %s16, 1
        %s138 = scalar_select %p137, %s16, 1
        %s139 = smul.addr %s138, 32
        %s140 = smul.addr %s139, 4
        %s141 = scalar_lea.vmem %s0, %s140
        %vm143 = vcmask 519168
        %144 = vst.msk [vmem:[#allocation2] sm:$0xf] %vm143, 0
        %145 = vst.msk [vmem:[#allocation2 + $0x4] sm:$0xf] %vm143, 0
        %vm146 = vcmask 516096
        %147 = vst.msk [vmem:[#allocation2 + $0x8] sm:$0x1] %vm146, 0
        %148 = vst.msk [vmem:[#allocation2 + $0xc] sm:$0xf] %vm143, 0
        %149 = vst.msk [vmem:[#allocation2 + $0x10] sm:$0xf] %vm143, 0
        %150 = vst.msk [vmem:[#allocation2 + $0x14] sm:$0x1] %vm146, 0
        %151 = vst.msk [vmem:[#allocation2 + $0x18] sm:$0xf] %vm143, 0
        %152 = vst.msk [vmem:[#allocation2 + $0x1c] sm:$0xf] %vm143, 0
        %153 = vst.msk [vmem:[#allocation2 + $0x20] sm:$0x1] %vm146, 0
        %154 = vst.msk [vmem:[#allocation2 + $0x24] sm:$0xf] %vm143, 0
        %155 = vst.msk [vmem:[#allocation2 + $0x28] sm:$0xf] %vm143, 0
        %156 = vst.msk [vmem:[#allocation2 + $0x2c] sm:$0x1] %vm146, 0
        %157 = vst.msk [vmem:[#allocation2 + $0x30] sm:$0xf] %vm143, 0
        %158 = vst.msk [vmem:[#allocation2 + $0x34] sm:$0xf] %vm143, 0
        %159 = vst.msk [vmem:[#allocation2 + $0x38] sm:$0x1] %vm146, 0
        %160 = vst.msk [vmem:[#allocation2 + $0x3c] sm:$0xf] %vm143, 0
        %161 = vst.msk [vmem:[#allocation2 + $0x40] sm:$0xf] %vm143, 0
        %162 = vst.msk [vmem:[#allocation2 + $0x44] sm:$0x1] %vm146, 0
        %163 = vst.msk [vmem:[#allocation2 + $0x48] sm:$0xf] %vm143, 0
        %164 = vst.msk [vmem:[#allocation2 + $0x4c] sm:$0xf] %vm143, 0
        %165 = vst.msk [vmem:[#allocation2 + $0x50] sm:$0x1] %vm146, 0
        %166 = vst.msk [vmem:[#allocation2 + $0x54] sm:$0xf] %vm143, 0
        %167 = vst.msk [vmem:[#allocation2 + $0x58] sm:$0xf] %vm143, 0
        %168 = vst.msk [vmem:[#allocation2 + $0x5c] sm:$0x1] %vm146, 0
        %169 = vst.msk [vmem:[#allocation2 + $0x60] sm:$0xf] %vm143, 0
        %170 = vst.msk [vmem:[#allocation2 + $0x64] sm:$0xf] %vm143, 0
        %171 = vst.msk [vmem:[#allocation2 + $0x68] sm:$0x1] %vm146, 0
        %172 = vst.msk [vmem:[#allocation2 + $0x6c] sm:$0xf] %vm143, 0
        %173 = vst.msk [vmem:[#allocation2 + $0x70] sm:$0xf] %vm143, 0
        %174 = vst.msk [vmem:[#allocation2 + $0x74] sm:$0x1] %vm146, 0
        %175 = vst.msk [vmem:[#allocation2 + $0x78] sm:$0xf] %vm143, 0
        %176 = vst.msk [vmem:[#allocation2 + $0x7c] sm:$0xf] %vm143, 0
        %177 = vst.msk [vmem:[#allocation2 + $0x80] sm:$0x1] %vm146, 0
        %178 = vst.msk [vmem:[#allocation2 + $0x84] sm:$0xf] %vm143, 0
        %179 = vst.msk [vmem:[#allocation2 + $0x88] sm:$0xf] %vm143, 0
        %180 = vst.msk [vmem:[#allocation2 + $0x8c] sm:$0x1] %vm146, 0
        %181 = vst.msk [vmem:[#allocation2 + $0x90] sm:$0xf] %vm143, 0
        %182 = vst.msk [vmem:[#allocation2 + $0x94] sm:$0xf] %vm143, 0
        %183 = vst.msk [vmem:[#allocation2 + $0x98] sm:$0x1] %vm146, 0
        %184 = vst.msk [vmem:[#allocation2 + $0x9c] sm:$0xf] %vm143, 0
        %185 = vst.msk [vmem:[#allocation2 + $0xa0] sm:$0xf] %vm143, 0
        %186 = vst.msk [vmem:[#allocation2 + $0xa4] sm:$0x1] %vm146, 0
        %187 = vst.msk [vmem:[#allocation2 + $0xa8] sm:$0xf] %vm143, 0
        %188 = vst.msk [vmem:[#allocation2 + $0xac] sm:$0xf] %vm143, 0
        %189 = vst.msk [vmem:[#allocation2 + $0xb0] sm:$0x1] %vm146, 0
        %190 = vst.msk [vmem:[#allocation2 + $0xb4] sm:$0xf] %vm143, 0
        %191 = vst.msk [vmem:[#allocation2 + $0xb8] sm:$0xf] %vm143, 0
        %192 = vst.msk [vmem:[#allocation2 + $0xbc] sm:$0x1] %vm146, 0
        %193 = vst.msk [vmem:[#allocation2 + $0xc0] sm:$0xf] %vm143, 0
        %194 = vst.msk [vmem:[#allocation2 + $0xc4] sm:$0xf] %vm143, 0
        %195 = vst.msk [vmem:[#allocation2 + $0xc8] sm:$0x1] %vm146, 0
        %196 = vst.msk [vmem:[#allocation2 + $0xcc] sm:$0xf] %vm143, 0
        %197 = vst.msk [vmem:[#allocation2 + $0xd0] sm:$0xf] %vm143, 0
        %198 = vst.msk [vmem:[#allocation2 + $0xd4] sm:$0x1] %vm146, 0
        %v199 = vld [vmem:[%s141] sm:$0xf]
        %v200 = vld [vmem:[%s141 + $0x4] sm:$0xf]
        %v201 = vld [vmem:[%s141 + $0x8] sm:$0xf]
        %v202 = vld [vmem:[%s141 + $0xc] sm:$0xf]
        %v203 = vld [vmem:[%s141 + $0x10] sm:$0xf]
        %v204 = vld [vmem:[%s141 + $0x14] sm:$0xf]
        %v205 = vld [vmem:[%s141 + $0x18] sm:$0xf]
        %v206 = vld [vmem:[%s141 + $0x1c] sm:$0xf]
        %v207 = vld [vmem:[%s141 + $0x20] sm:$0xf]
        %v208 = vld [vmem:[%s141 + $0x24] sm:$0xf]
        %v209 = vld [vmem:[%s141 + $0x28] sm:$0xf]
        %v210 = vld [vmem:[%s141 + $0x2c] sm:$0xf]
        %v211 = vld [vmem:[%s141 + $0x30] sm:$0xf]
        %v212 = vld [vmem:[%s141 + $0x34] sm:$0xf]
        %v213 = vld [vmem:[%s141 + $0x38] sm:$0xf]
        %v214 = vld [vmem:[%s141 + $0x3c] sm:$0xf]
        %v215 = vld [vmem:[%s141 + $0x40] sm:$0xf]
        %v216 = vld [vmem:[%s141 + $0x44] sm:$0xf]
        %v217 = vld [vmem:[%s141 + $0x48] sm:$0xf]
        %v218 = vld [vmem:[%s141 + $0x4c] sm:$0xf]
        %v219 = vld [vmem:[%s141 + $0x50] sm:$0xf]
        %v220 = vld [vmem:[%s141 + $0x54] sm:$0xf]
        %v221 = vld [vmem:[%s141 + $0x58] sm:$0xf]
        %v222 = vld [vmem:[%s141 + $0x5c] sm:$0xf]
        %v223 = vld [vmem:[%s141 + $0x60] sm:$0xf]
        %v224 = vld [vmem:[%s141 + $0x64] sm:$0xf]
        %v225 = vld [vmem:[%s141 + $0x68] sm:$0xf]
        %v226 = vld [vmem:[%s141 + $0x6c] sm:$0xf]
        %v227 = vld [vmem:[%s141 + $0x70] sm:$0xf]
        %v228 = vld [vmem:[%s141 + $0x74] sm:$0xf]
        %v229 = vld [vmem:[%s141 + $0x78] sm:$0xf]
        %v230 = vld [vmem:[%s141 + $0x7c] sm:$0xf]
        %vm231 = vsmask.f32 256
        %vm232 = vsmask.f32 4368
        %vm233 = vmor %vm231, %vm232
        %v235 = vshrl.u32 %v199, 16
        %v237 = vrot.slane %v235, 7
        %v238 = vshll.u32 %v199, 16
        %v240 = vor.u32 %v237, %v238
        %v241 = vrot.slane %v237, 4
        %v243 = vshrl.u32 %v200, 16
        %v245 = vrot.slane %v243, 7
        %v246 = vshll.u32 %v200, 16
        %v248 = vor.u32 %v245, %v246
        %v249 = vsel %vm233, %v241, %v248
        %v250 = vrot.slane %v245, 4
        %v252 = vshrl.u32 %v201, 16
        %v254 = vrot.slane %v252, 7
        %v255 = vshll.u32 %v201, 16
        %v257 = vor.u32 %v254, %v255
        %v258 = vrot.slane %v254, 4
        %v260 = vshrl.u32 %v202, 16
        %v262 = vrot.slane %v260, 7
        %v263 = vshll.u32 %v202, 16
        %v265 = vor.u32 %v262, %v263
        %v266 = vsel %vm233, %v258, %v265
        %v267 = vrot.slane %v262, 4
        %v269 = vshrl.u32 %v203, 16
        %v271 = vrot.slane %v269, 7
        %v272 = vshll.u32 %v203, 16
        %v274 = vor.u32 %v271, %v272
        %v275 = vrot.slane %v271, 4
        %v277 = vshrl.u32 %v204, 16
        %v279 = vrot.slane %v277, 7
        %v280 = vshll.u32 %v204, 16
        %v282 = vor.u32 %v279, %v280
        %v283 = vsel %vm233, %v275, %v282
        %v284 = vrot.slane %v279, 4
        %v286 = vshrl.u32 %v205, 16
        %v288 = vrot.slane %v286, 7
        %v289 = vshll.u32 %v205, 16
        %v291 = vor.u32 %v288, %v289
        %v292 = vrot.slane %v288, 4
        %v294 = vshrl.u32 %v206, 16
        %v296 = vrot.slane %v294, 7
        %v297 = vshll.u32 %v206, 16
        %v299 = vor.u32 %v296, %v297
        %v300 = vsel %vm233, %v292, %v299
        %v301 = vrot.slane %v296, 4
        %v303 = vshrl.u32 %v207, 16
        %v305 = vrot.slane %v303, 7
        %v306 = vshll.u32 %v207, 16
        %v308 = vor.u32 %v305, %v306
        %v309 = vrot.slane %v305, 4
        %v311 = vshrl.u32 %v208, 16
        %v313 = vrot.slane %v311, 7
        %v314 = vshll.u32 %v208, 16
        %v316 = vor.u32 %v313, %v314
        %v317 = vsel %vm233, %v309, %v316
        %v318 = vrot.slane %v313, 4
        %v320 = vshrl.u32 %v209, 16
        %v322 = vrot.slane %v320, 7
        %v323 = vshll.u32 %v209, 16
        %v325 = vor.u32 %v322, %v323
        %v326 = vrot.slane %v322, 4
        %v328 = vshrl.u32 %v210, 16
        %v330 = vrot.slane %v328, 7
        %v331 = vshll.u32 %v210, 16
        %v333 = vor.u32 %v330, %v331
        %v334 = vsel %vm233, %v326, %v333
        %v335 = vrot.slane %v330, 4
        %v337 = vshrl.u32 %v211, 16
        %v339 = vrot.slane %v337, 7
        %v340 = vshll.u32 %v211, 16
        %v342 = vor.u32 %v339, %v340
        %v343 = vrot.slane %v339, 4
        %v345 = vshrl.u32 %v212, 16
        %v347 = vrot.slane %v345, 7
        %v348 = vshll.u32 %v212, 16
        %v350 = vor.u32 %v347, %v348
        %v351 = vsel %vm233, %v343, %v350
        %v352 = vrot.slane %v347, 4
        %v354 = vshrl.u32 %v213, 16
        %v356 = vrot.slane %v354, 7
        %v357 = vshll.u32 %v213, 16
        %v359 = vor.u32 %v356, %v357
        %v360 = vrot.slane %v356, 4
        %v362 = vshrl.u32 %v214, 16
        %v364 = vrot.slane %v362, 7
        %v365 = vshll.u32 %v214, 16
        %v367 = vor.u32 %v364, %v365
        %v368 = vsel %vm233, %v360, %v367
        %v369 = vrot.slane %v364, 4
        %v371 = vshrl.u32 %v215, 16
        %v373 = vrot.slane %v371, 7
        %v374 = vshll.u32 %v215, 16
        %v376 = vor.u32 %v373, %v374
        %v377 = vrot.slane %v373, 4
        %v379 = vshrl.u32 %v216, 16
        %v381 = vrot.slane %v379, 7
        %v382 = vshll.u32 %v216, 16
        %v384 = vor.u32 %v381, %v382
        %v385 = vsel %vm233, %v377, %v384
        %v386 = vrot.slane %v381, 4
        %v388 = vshrl.u32 %v217, 16
        %v390 = vrot.slane %v388, 7
        %v391 = vshll.u32 %v217, 16
        %v393 = vor.u32 %v390, %v391
        %v394 = vrot.slane %v390, 4
        %v396 = vshrl.u32 %v218, 16
        %v398 = vrot.slane %v396, 7
        %v399 = vshll.u32 %v218, 16
        %v401 = vor.u32 %v398, %v399
        %v402 = vsel %vm233, %v394, %v401
        %v403 = vrot.slane %v398, 4
        %v405 = vshrl.u32 %v219, 16
        %v407 = vrot.slane %v405, 7
        %v408 = vshll.u32 %v219, 16
        %v410 = vor.u32 %v407, %v408
        %v411 = vrot.slane %v407, 4
        %v413 = vshrl.u32 %v220, 16
        %v415 = vrot.slane %v413, 7
        %v416 = vshll.u32 %v220, 16
        %v418 = vor.u32 %v415, %v416
        %v419 = vsel %vm233, %v411, %v418
        %v420 = vrot.slane %v415, 4
        %v422 = vshrl.u32 %v221, 16
        %v424 = vrot.slane %v422, 7
        %v425 = vshll.u32 %v221, 16
        %v427 = vor.u32 %v424, %v425
        %v428 = vrot.slane %v424, 4
        %v430 = vshrl.u32 %v222, 16
        %v432 = vrot.slane %v430, 7
        %v433 = vshll.u32 %v222, 16
        %v435 = vor.u32 %v432, %v433
        %v436 = vsel %vm233, %v428, %v435
        %v437 = vrot.slane %v432, 4
        %v439 = vshrl.u32 %v223, 16
        %v441 = vrot.slane %v439, 7
        %v442 = vshll.u32 %v223, 16
        %v444 = vor.u32 %v441, %v442
        %v445 = vrot.slane %v441, 4
        %v447 = vshrl.u32 %v224, 16
        %v449 = vrot.slane %v447, 7
        %v450 = vshll.u32 %v224, 16
        %v452 = vor.u32 %v449, %v450
        %v453 = vsel %vm233, %v445, %v452
        %v454 = vrot.slane %v449, 4
        %v456 = vshrl.u32 %v225, 16
        %v458 = vrot.slane %v456, 7
        %v459 = vshll.u32 %v225, 16
        %v461 = vor.u32 %v458, %v459
        %v462 = vrot.slane %v458, 4
        %v464 = vshrl.u32 %v226, 16
        %v466 = vrot.slane %v464, 7
        %v467 = vshll.u32 %v226, 16
        %v469 = vor.u32 %v466, %v467
        %v470 = vsel %vm233, %v462, %v469
        %v471 = vrot.slane %v466, 4
        %v473 = vshrl.u32 %v227, 16
        %v475 = vrot.slane %v473, 7
        %v476 = vshll.u32 %v227, 16
        %v478 = vor.u32 %v475, %v476
        %v479 = vrot.slane %v475, 4
        %v481 = vshrl.u32 %v228, 16
        %v483 = vrot.slane %v481, 7
        %v484 = vshll.u32 %v228, 16
        %v486 = vor.u32 %v483, %v484
        %v487 = vsel %vm233, %v479, %v486
        %v488 = vrot.slane %v483, 4
        %v490 = vshrl.u32 %v229, 16
        %v492 = vrot.slane %v490, 7
        %v493 = vshll.u32 %v229, 16
        %v495 = vor.u32 %v492, %v493
        %v496 = vrot.slane %v492, 4
        %v498 = vshrl.u32 %v230, 16
        %v500 = vrot.slane %v498, 7
        %v501 = vshll.u32 %v230, 16
        %v503 = vor.u32 %v500, %v501
        %v504 = vsel %vm233, %v496, %v503
        %v505 = vrot.slane %v500, 4
        %s554 = scalar_lea.vmem [#allocation2], 12
        %vm555 = vcmask 519168
        %vm556 = vsmask.f32 7938
        %vm557 = vmand %vm555, %vm556
        %v558 = vld [vmem:[%s554] sm:$0xf]
        %v559 = vsel %vm557, %v240, %v558
        %560 = vst [vmem:[%s554] sm:$0xf] %v559
        %561 = vst.msk [vmem:[%s554 + $0x4] sm:$0xf] %vm143, %v249
        %vm562 = vcmask 516096
        %vm563 = vmand %vm562, %vm231
        %v564 = vld [vmem:[%s554 + $0x8] sm:$0x1]
        %v565 = vsel %vm563, %v250, %v564
        %566 = vst [vmem:[%s554 + $0x8] sm:$0x1] %v565
        %v567 = vld [vmem:[%s554 + $0xc] sm:$0xf]
        %v568 = vsel %vm557, %v257, %v567
        %569 = vst [vmem:[%s554 + $0xc] sm:$0xf] %v568
        %570 = vst.msk [vmem:[%s554 + $0x10] sm:$0xf] %vm143, %v266
        %v571 = vld [vmem:[%s554 + $0x14] sm:$0x1]
        %v572 = vsel %vm563, %v267, %v571
        %573 = vst [vmem:[%s554 + $0x14] sm:$0x1] %v572
        %v574 = vld [vmem:[%s554 + $0x18] sm:$0xf]
        %v575 = vsel %vm557, %v274, %v574
        %576 = vst [vmem:[%s554 + $0x18] sm:$0xf] %v575
        %577 = vst.msk [vmem:[%s554 + $0x1c] sm:$0xf] %vm143, %v283
        %v578 = vld [vmem:[%s554 + $0x20] sm:$0x1]
        %v579 = vsel %vm563, %v284, %v578
        %580 = vst [vmem:[%s554 + $0x20] sm:$0x1] %v579
        %v581 = vld [vmem:[%s554 + $0x24] sm:$0xf]
        %v582 = vsel %vm557, %v291, %v581
        %583 = vst [vmem:[%s554 + $0x24] sm:$0xf] %v582
        %584 = vst.msk [vmem:[%s554 + $0x28] sm:$0xf] %vm143, %v300
        %v585 = vld [vmem:[%s554 + $0x2c] sm:$0x1]
        %v586 = vsel %vm563, %v301, %v585
        %587 = vst [vmem:[%s554 + $0x2c] sm:$0x1] %v586
        %v588 = vld [vmem:[%s554 + $0x30] sm:$0xf]
        %v589 = vsel %vm557, %v308, %v588
        %590 = vst [vmem:[%s554 + $0x30] sm:$0xf] %v589
        %591 = vst.msk [vmem:[%s554 + $0x34] sm:$0xf] %vm143, %v317
        %v592 = vld [vmem:[%s554 + $0x38] sm:$0x1]
        %v593 = vsel %vm563, %v318, %v592
        %594 = vst [vmem:[%s554 + $0x38] sm:$0x1] %v593
        %v595 = vld [vmem:[%s554 + $0x3c] sm:$0xf]
        %v596 = vsel %vm557, %v325, %v595
        %597 = vst [vmem:[%s554 + $0x3c] sm:$0xf] %v596
        %598 = vst.msk [vmem:[%s554 + $0x40] sm:$0xf] %vm143, %v334
        %v599 = vld [vmem:[%s554 + $0x44] sm:$0x1]
        %v600 = vsel %vm563, %v335, %v599
        %601 = vst [vmem:[%s554 + $0x44] sm:$0x1] %v600
        %v602 = vld [vmem:[%s554 + $0x48] sm:$0xf]
        %v603 = vsel %vm557, %v342, %v602
        %604 = vst [vmem:[%s554 + $0x48] sm:$0xf] %v603
        %605 = vst.msk [vmem:[%s554 + $0x4c] sm:$0xf] %vm143, %v351
        %v606 = vld [vmem:[%s554 + $0x50] sm:$0x1]
        %v607 = vsel %vm563, %v352, %v606
        %608 = vst [vmem:[%s554 + $0x50] sm:$0x1] %v607
        %v609 = vld [vmem:[%s554 + $0x54] sm:$0xf]
        %v610 = vsel %vm557, %v359, %v609
        %611 = vst [vmem:[%s554 + $0x54] sm:$0xf] %v610
        %612 = vst.msk [vmem:[%s554 + $0x58] sm:$0xf] %vm143, %v368
        %v613 = vld [vmem:[%s554 + $0x5c] sm:$0x1]
        %v614 = vsel %vm563, %v369, %v613
        %615 = vst [vmem:[%s554 + $0x5c] sm:$0x1] %v614
        %v616 = vld [vmem:[%s554 + $0x60] sm:$0xf]
        %v617 = vsel %vm557, %v376, %v616
        %618 = vst [vmem:[%s554 + $0x60] sm:$0xf] %v617
        %619 = vst.msk [vmem:[%s554 + $0x64] sm:$0xf] %vm143, %v385
        %v620 = vld [vmem:[%s554 + $0x68] sm:$0x1]
        %v621 = vsel %vm563, %v386, %v620
        %622 = vst [vmem:[%s554 + $0x68] sm:$0x1] %v621
        %v623 = vld [vmem:[%s554 + $0x6c] sm:$0xf]
        %v624 = vsel %vm557, %v393, %v623
        %625 = vst [vmem:[%s554 + $0x6c] sm:$0xf] %v624
        %626 = vst.msk [vmem:[%s554 + $0x70] sm:$0xf] %vm143, %v402
        %v627 = vld [vmem:[%s554 + $0x74] sm:$0x1]
        %v628 = vsel %vm563, %v403, %v627
        %629 = vst [vmem:[%s554 + $0x74] sm:$0x1] %v628
        %v630 = vld [vmem:[%s554 + $0x78] sm:$0xf]
        %v631 = vsel %vm557, %v410, %v630
        %632 = vst [vmem:[%s554 + $0x78] sm:$0xf] %v631
        %633 = vst.msk [vmem:[%s554 + $0x7c] sm:$0xf] %vm143, %v419
        %v634 = vld [vmem:[%s554 + $0x80] sm:$0x1]
        %v635 = vsel %vm563, %v420, %v634
        %636 = vst [vmem:[%s554 + $0x80] sm:$0x1] %v635
        %v637 = vld [vmem:[%s554 + $0x84] sm:$0xf]
        %v638 = vsel %vm557, %v427, %v637
        %639 = vst [vmem:[%s554 + $0x84] sm:$0xf] %v638
        %640 = vst.msk [vmem:[%s554 + $0x88] sm:$0xf] %vm143, %v436
        %v641 = vld [vmem:[%s554 + $0x8c] sm:$0x1]
        %v642 = vsel %vm563, %v437, %v641
        %643 = vst [vmem:[%s554 + $0x8c] sm:$0x1] %v642
        %v644 = vld [vmem:[%s554 + $0x90] sm:$0xf]
        %v645 = vsel %vm557, %v444, %v644
        %646 = vst [vmem:[%s554 + $0x90] sm:$0xf] %v645
        %647 = vst.msk [vmem:[%s554 + $0x94] sm:$0xf] %vm143, %v453
        %v648 = vld [vmem:[%s554 + $0x98] sm:$0x1]
        %v649 = vsel %vm563, %v454, %v648
        %650 = vst [vmem:[%s554 + $0x98] sm:$0x1] %v649
        %v651 = vld [vmem:[%s554 + $0x9c] sm:$0xf]
        %v652 = vsel %vm557, %v461, %v651
        %653 = vst [vmem:[%s554 + $0x9c] sm:$0xf] %v652
        %654 = vst.msk [vmem:[%s554 + $0xa0] sm:$0xf] %vm143, %v470
        %v655 = vld [vmem:[%s554 + $0xa4] sm:$0x1]
        %v656 = vsel %vm563, %v471, %v655
        %657 = vst [vmem:[%s554 + $0xa4] sm:$0x1] %v656
        %v658 = vld [vmem:[%s554 + $0xa8] sm:$0xf]
        %v659 = vsel %vm557, %v478, %v658
        %660 = vst [vmem:[%s554 + $0xa8] sm:$0xf] %v659
        %661 = vst.msk [vmem:[%s554 + $0xac] sm:$0xf] %vm143, %v487
        %v662 = vld [vmem:[%s554 + $0xb0] sm:$0x1]
        %v663 = vsel %vm563, %v488, %v662
        %664 = vst [vmem:[%s554 + $0xb0] sm:$0x1] %v663
        %v665 = vld [vmem:[%s554 + $0xb4] sm:$0xf]
        %v666 = vsel %vm557, %v495, %v665
        %667 = vst [vmem:[%s554 + $0xb4] sm:$0xf] %v666
        %668 = vst.msk [vmem:[%s554 + $0xb8] sm:$0xf] %vm143, %v504
        %v669 = vld [vmem:[%s554 + $0xbc] sm:$0x1]
        %v670 = vsel %vm563, %v505, %v669
        %671 = vst [vmem:[%s554 + $0xbc] sm:$0x1] %v670
        %v672 = vld [vmem:[#allocation2] sm:$0xf]
        %v673 = vld [vmem:[#allocation2 + $0x4] sm:$0xf]
        %v674 = vld [vmem:[#allocation2 + $0xc] sm:$0xf]
        %v675 = vld [vmem:[#allocation2 + $0x10] sm:$0xf]
        %v676 = vld [vmem:[#allocation2 + $0x18] sm:$0xf]
        %v677 = vld [vmem:[#allocation2 + $0x1c] sm:$0xf]
        %v678 = vld [vmem:[#allocation2 + $0x24] sm:$0xf]
        %v679 = vld [vmem:[#allocation2 + $0x28] sm:$0xf]
        %v680 = vld [vmem:[#allocation2 + $0x30] sm:$0xf]
        %v681 = vld [vmem:[#allocation2 + $0x34] sm:$0xf]
        %v682 = vld [vmem:[#allocation2 + $0x3c] sm:$0xf]
        %v683 = vld [vmem:[#allocation2 + $0x40] sm:$0xf]
        %v684 = vld [vmem:[#allocation2 + $0x48] sm:$0xf]
        %v685 = vld [vmem:[#allocation2 + $0x4c] sm:$0xf]
        %v686 = vld [vmem:[#allocation2 + $0x54] sm:$0xf]
        %v687 = vld [vmem:[#allocation2 + $0x58] sm:$0xf]
        %v688 = vld [vmem:[#allocation2 + $0x60] sm:$0xf]
        %v689 = vld [vmem:[#allocation2 + $0x64] sm:$0xf]
        %v690 = vld [vmem:[#allocation2 + $0x6c] sm:$0xf]
        %v691 = vld [vmem:[#allocation2 + $0x70] sm:$0xf]
        %v692 = vld [vmem:[#allocation2 + $0x78] sm:$0xf]
        %v693 = vld [vmem:[#allocation2 + $0x7c] sm:$0xf]
        %v694 = vld [vmem:[#allocation2 + $0x84] sm:$0xf]
        %v695 = vld [vmem:[#allocation2 + $0x88] sm:$0xf]
        %v696 = vld [vmem:[#allocation2 + $0x90] sm:$0xf]
        %v697 = vld [vmem:[#allocation2 + $0x94] sm:$0xf]
        %v698 = vld [vmem:[#allocation2 + $0x9c] sm:$0xf]
        %v699 = vld [vmem:[#allocation2 + $0xa0] sm:$0xf]
        %v700 = vld [vmem:[#allocation2 + $0xa8] sm:$0xf]
        %v701 = vld [vmem:[#allocation2 + $0xac] sm:$0xf]
        %v702 = vld [vmem:[#allocation2 + $0xb4] sm:$0xf]
        %v703 = vld [vmem:[#allocation2 + $0xb8] sm:$0xf]
        %v704 = vld [vmem:[#allocation2 + $0x8] sm:$0x1]
        %v705 = vld [vmem:[#allocation2 + $0x14] sm:$0x1]
        %v706 = vld [vmem:[#allocation2 + $0x20] sm:$0x1]
        %v707 = vld [vmem:[#allocation2 + $0x2c] sm:$0x1]
        %v708 = vld [vmem:[#allocation2 + $0x38] sm:$0x1]
        %v709 = vld [vmem:[#allocation2 + $0x44] sm:$0x1]
        %v710 = vld [vmem:[#allocation2 + $0x50] sm:$0x1]
        %v711 = vld [vmem:[#allocation2 + $0x5c] sm:$0x1]
        %v712 = vld [vmem:[#allocation2 + $0x68] sm:$0x1]
        %v713 = vld [vmem:[#allocation2 + $0x74] sm:$0x1]
        %v714 = vld [vmem:[#allocation2 + $0x80] sm:$0x1]
        %v715 = vld [vmem:[#allocation2 + $0x8c] sm:$0x1]
        %v716 = vld [vmem:[#allocation2 + $0x98] sm:$0x1]
        %v717 = vld [vmem:[#allocation2 + $0xa4] sm:$0x1]
        %v718 = vld [vmem:[#allocation2 + $0xb0] sm:$0x1]
        %v719 = vld [vmem:[#allocation2 + $0xbc] sm:$0x1]
        %v720 = vld [vmem:[#allocation2] sm:$0xe]
        %v721 = vld [vmem:[#allocation2 + $0xc] sm:$0xe]
        %v722 = vld [vmem:[#allocation2 + $0x18] sm:$0xe]
        %v723 = vld [vmem:[#allocation2 + $0x24] sm:$0xe]
        %v724 = vld [vmem:[#allocation2 + $0x30] sm:$0xe]
        %v725 = vld [vmem:[#allocation2 + $0x3c] sm:$0xe]
        %v726 = vld [vmem:[#allocation2 + $0x48] sm:$0xe]
        %v727 = vld [vmem:[#allocation2 + $0x54] sm:$0xe]
        %v728 = vld [vmem:[#allocation2 + $0x60] sm:$0xe]
        %v729 = vld [vmem:[#allocation2 + $0x6c] sm:$0xe]
        %v730 = vld [vmem:[#allocation2 + $0x78] sm:$0xe]
        %v731 = vld [vmem:[#allocation2 + $0x84] sm:$0xe]
        %v732 = vld [vmem:[#allocation2 + $0x90] sm:$0xe]
        %v733 = vld [vmem:[#allocation2 + $0x9c] sm:$0xe]
        %v734 = vld [vmem:[#allocation2 + $0xa8] sm:$0xe]
        %v735 = vld [vmem:[#allocation2 + $0xb4] sm:$0xe]
        %v768 = vunpack.c.l.b16 %v672
        %v769 = vunpack.c.l.b16 %v673
        %v770 = vunpack.c.l.b16 %v674
        %v771 = vunpack.c.l.b16 %v675
        %v772 = vunpack.c.l.b16 %v676
        %v773 = vunpack.c.l.b16 %v677
        %v774 = vunpack.c.l.b16 %v678
        %v775 = vunpack.c.l.b16 %v679
        %v776 = vunpack.c.l.b16 %v680
        %v777 = vunpack.c.l.b16 %v681
        %v778 = vunpack.c.l.b16 %v682
        %v779 = vunpack.c.l.b16 %v683
        %v780 = vunpack.c.l.b16 %v684
        %v781 = vunpack.c.l.b16 %v685
        %v782 = vunpack.c.l.b16 %v686
        %v783 = vunpack.c.l.b16 %v687
        %v784 = vunpack.c.l.b16 %v688
        %v785 = vunpack.c.l.b16 %v689
        %v786 = vunpack.c.l.b16 %v690
        %v787 = vunpack.c.l.b16 %v691
        %v788 = vunpack.c.l.b16 %v692
        %v789 = vunpack.c.l.b16 %v693
        %v790 = vunpack.c.l.b16 %v694
        %v791 = vunpack.c.l.b16 %v695
        %v792 = vunpack.c.l.b16 %v696
        %v793 = vunpack.c.l.b16 %v697
        %v794 = vunpack.c.l.b16 %v698
        %v795 = vunpack.c.l.b16 %v699
        %v796 = vunpack.c.l.b16 %v700
        %v797 = vunpack.c.l.b16 %v701
        %v798 = vunpack.c.l.b16 %v702
        %v799 = vunpack.c.l.b16 %v703
        %v800 = vpack.c.b16 %v769, %v768
        %v801 = vpack.c.b16 %v771, %v770
        %v802 = vpack.c.b16 %v773, %v772
        %v803 = vpack.c.b16 %v775, %v774
        %v804 = vpack.c.b16 %v777, %v776
        %v805 = vpack.c.b16 %v779, %v778
        %v806 = vpack.c.b16 %v781, %v780
        %v807 = vpack.c.b16 %v783, %v782
        %v808 = vpack.c.b16 %v785, %v784
        %v809 = vpack.c.b16 %v787, %v786
        %v810 = vpack.c.b16 %v789, %v788
        %v811 = vpack.c.b16 %v791, %v790
        %v812 = vpack.c.b16 %v793, %v792
        %v813 = vpack.c.b16 %v795, %v794
        %v814 = vpack.c.b16 %v797, %v796
        %v815 = vpack.c.b16 %v799, %v798
        %v832 = vunpack.c.l.b16 %v704
        %v833 = vunpack.c.l.b16 %v705
        %v834 = vunpack.c.l.b16 %v706
        %v835 = vunpack.c.l.b16 %v707
        %v836 = vunpack.c.l.b16 %v708
        %v837 = vunpack.c.l.b16 %v709
        %v838 = vunpack.c.l.b16 %v710
        %v839 = vunpack.c.l.b16 %v711
        %v840 = vunpack.c.l.b16 %v712
        %v841 = vunpack.c.l.b16 %v713
        %v842 = vunpack.c.l.b16 %v714
        %v843 = vunpack.c.l.b16 %v715
        %v844 = vunpack.c.l.b16 %v716
        %v845 = vunpack.c.l.b16 %v717
        %v846 = vunpack.c.l.b16 %v718
        %v847 = vunpack.c.l.b16 %v719
        %v848 = vpack.c.b16 %v832, %v832
        %v849 = vpack.c.b16 %v833, %v833
        %v850 = vpack.c.b16 %v834, %v834
        %v851 = vpack.c.b16 %v835, %v835
        %v852 = vpack.c.b16 %v836, %v836
        %v853 = vpack.c.b16 %v837, %v837
        %v854 = vpack.c.b16 %v838, %v838
        %v855 = vpack.c.b16 %v839, %v839
        %v856 = vpack.c.b16 %v840, %v840
        %v857 = vpack.c.b16 %v841, %v841
        %v858 = vpack.c.b16 %v842, %v842
        %v859 = vpack.c.b16 %v843, %v843
        %v860 = vpack.c.b16 %v844, %v844
        %v861 = vpack.c.b16 %v845, %v845
        %v862 = vpack.c.b16 %v846, %v846
        %v863 = vpack.c.b16 %v847, %v847
        %vm864 = vsmask.f32 7424
        %v866 = vshrl.u32 %v800, 16
        %v868 = vshll.u32 %v800, 16
        %v870 = vrot.slane %v868, 1
        %v871 = vor.u32 %v866, %v870
        %v873 = vshll.u32 %v848, 16
        %v875 = vrot.slane %v873, 1
        %v876 = vsel %vm864, %v871, %v875
        %v878 = vshrl.u32 %v801, 16
        %v880 = vshll.u32 %v801, 16
        %v882 = vrot.slane %v880, 1
        %v883 = vor.u32 %v878, %v882
        %v885 = vshll.u32 %v849, 16
        %v887 = vrot.slane %v885, 1
        %v888 = vsel %vm864, %v883, %v887
        %v890 = vshrl.u32 %v802, 16
        %v892 = vshll.u32 %v802, 16
        %v894 = vrot.slane %v892, 1
        %v895 = vor.u32 %v890, %v894
        %v897 = vshll.u32 %v850, 16
        %v899 = vrot.slane %v897, 1
        %v900 = vsel %vm864, %v895, %v899
        %v902 = vshrl.u32 %v803, 16
        %v904 = vshll.u32 %v803, 16
        %v906 = vrot.slane %v904, 1
        %v907 = vor.u32 %v902, %v906
        %v909 = vshll.u32 %v851, 16
        %v911 = vrot.slane %v909, 1
        %v912 = vsel %vm864, %v907, %v911
        %v914 = vshrl.u32 %v804, 16
        %v916 = vshll.u32 %v804, 16
        %v918 = vrot.slane %v916, 1
        %v919 = vor.u32 %v914, %v918
        %v921 = vshll.u32 %v852, 16
        %v923 = vrot.slane %v921, 1
        %v924 = vsel %vm864, %v919, %v923
        %v926 = vshrl.u32 %v805, 16
        %v928 = vshll.u32 %v805, 16
        %v930 = vrot.slane %v928, 1
        %v931 = vor.u32 %v926, %v930
        %v933 = vshll.u32 %v853, 16
        %v935 = vrot.slane %v933, 1
        %v936 = vsel %vm864, %v931, %v935
        %v938 = vshrl.u32 %v806, 16
        %v940 = vshll.u32 %v806, 16
        %v942 = vrot.slane %v940, 1
        %v943 = vor.u32 %v938, %v942
        %v945 = vshll.u32 %v854, 16
        %v947 = vrot.slane %v945, 1
        %v948 = vsel %vm864, %v943, %v947
        %v950 = vshrl.u32 %v807, 16
        %v952 = vshll.u32 %v807, 16
        %v954 = vrot.slane %v952, 1
        %v955 = vor.u32 %v950, %v954
        %v957 = vshll.u32 %v855, 16
        %v959 = vrot.slane %v957, 1
        %v960 = vsel %vm864, %v955, %v959
        %v962 = vshrl.u32 %v808, 16
        %v964 = vshll.u32 %v808, 16
        %v966 = vrot.slane %v964, 1
        %v967 = vor.u32 %v962, %v966
        %v969 = vshll.u32 %v856, 16
        %v971 = vrot.slane %v969, 1
        %v972 = vsel %vm864, %v967, %v971
        %v974 = vshrl.u32 %v809, 16
        %v976 = vshll.u32 %v809, 16
        %v978 = vrot.slane %v976, 1
        %v979 = vor.u32 %v974, %v978
        %v981 = vshll.u32 %v857, 16
        %v983 = vrot.slane %v981, 1
        %v984 = vsel %vm864, %v979, %v983
        %v986 = vshrl.u32 %v810, 16
        %v988 = vshll.u32 %v810, 16
        %v990 = vrot.slane %v988, 1
        %v991 = vor.u32 %v986, %v990
        %v993 = vshll.u32 %v858, 16
        %v995 = vrot.slane %v993, 1
        %v996 = vsel %vm864, %v991, %v995
        %v998 = vshrl.u32 %v811, 16
        %v1000 = vshll.u32 %v811, 16
        %v1002 = vrot.slane %v1000, 1
        %v1003 = vor.u32 %v998, %v1002
        %v1005 = vshll.u32 %v859, 16
        %v1007 = vrot.slane %v1005, 1
        %v1008 = vsel %vm864, %v1003, %v1007
        %v1010 = vshrl.u32 %v812, 16
        %v1012 = vshll.u32 %v812, 16
        %v1014 = vrot.slane %v1012, 1
        %v1015 = vor.u32 %v1010, %v1014
        %v1017 = vshll.u32 %v860, 16
        %v1019 = vrot.slane %v1017, 1
        %v1020 = vsel %vm864, %v1015, %v1019
        %v1022 = vshrl.u32 %v813, 16
        %v1024 = vshll.u32 %v813, 16
        %v1026 = vrot.slane %v1024, 1
        %v1027 = vor.u32 %v1022, %v1026
        %v1029 = vshll.u32 %v861, 16
        %v1031 = vrot.slane %v1029, 1
        %v1032 = vsel %vm864, %v1027, %v1031
        %v1034 = vshrl.u32 %v814, 16
        %v1036 = vshll.u32 %v814, 16
        %v1038 = vrot.slane %v1036, 1
        %v1039 = vor.u32 %v1034, %v1038
        %v1041 = vshll.u32 %v862, 16
        %v1043 = vrot.slane %v1041, 1
        %v1044 = vsel %vm864, %v1039, %v1043
        %v1046 = vshrl.u32 %v815, 16
        %v1048 = vshll.u32 %v815, 16
        %v1050 = vrot.slane %v1048, 1
        %v1051 = vor.u32 %v1046, %v1050
        %v1053 = vshll.u32 %v863, 16
        %v1055 = vrot.slane %v1053, 1
        %v1056 = vsel %vm864, %v1051, %v1055
        %1057 = vrot.lane.b32.xlu0 %v876, 64
        %v1058 = vpop.permute.xlu0 %1057
        %1059 = vrot.lane.b32.xlu0 %v888, 64
        %v1060 = vpop.permute.xlu0 %1059
        %1061 = vrot.lane.b32.xlu0 %v900, 64
        %v1062 = vpop.permute.xlu0 %1061
        %1063 = vrot.lane.b32.xlu0 %v912, 64
        %v1064 = vpop.permute.xlu0 %1063
        %1065 = vrot.lane.b32.xlu0 %v924, 64
        %v1066 = vpop.permute.xlu0 %1065
        %1067 = vrot.lane.b32.xlu0 %v936, 64
        %v1068 = vpop.permute.xlu0 %1067
        %1069 = vrot.lane.b32.xlu0 %v948, 64
        %v1070 = vpop.permute.xlu0 %1069
        %1071 = vrot.lane.b32.xlu0 %v960, 64
        %v1072 = vpop.permute.xlu0 %1071
        %1073 = vrot.lane.b32.xlu0 %v972, 64
        %v1074 = vpop.permute.xlu0 %1073
        %1075 = vrot.lane.b32.xlu0 %v984, 64
        %v1076 = vpop.permute.xlu0 %1075
        %1077 = vrot.lane.b32.xlu0 %v996, 64
        %v1078 = vpop.permute.xlu0 %1077
        %1079 = vrot.lane.b32.xlu0 %v1008, 64
        %v1080 = vpop.permute.xlu0 %1079
        %1081 = vrot.lane.b32.xlu0 %v1020, 64
        %v1082 = vpop.permute.xlu0 %1081
        %1083 = vrot.lane.b32.xlu0 %v1032, 64
        %v1084 = vpop.permute.xlu0 %1083
        %1085 = vrot.lane.b32.xlu0 %v1044, 64
        %v1086 = vpop.permute.xlu0 %1085
        %1087 = vrot.lane.b32.xlu0 %v1056, 64
        %v1088 = vpop.permute.xlu0 %1087
        %v1105 = vunpack.c.l.b16 %v720
        %v1106 = vunpack.c.l.b16 %v721
        %v1107 = vunpack.c.l.b16 %v722
        %v1108 = vunpack.c.l.b16 %v723
        %v1109 = vunpack.c.l.b16 %v724
        %v1110 = vunpack.c.l.b16 %v725
        %v1111 = vunpack.c.l.b16 %v726
        %v1112 = vunpack.c.l.b16 %v727
        %v1113 = vunpack.c.l.b16 %v728
        %v1114 = vunpack.c.l.b16 %v729
        %v1115 = vunpack.c.l.b16 %v730
        %v1116 = vunpack.c.l.b16 %v731
        %v1117 = vunpack.c.l.b16 %v732
        %v1118 = vunpack.c.l.b16 %v733
        %v1119 = vunpack.c.l.b16 %v734
        %v1120 = vunpack.c.l.b16 %v735
        %v1121 = vpack.c.b16 %v769, %v1105
        %v1122 = vpack.c.b16 %v771, %v1106
        %v1123 = vpack.c.b16 %v773, %v1107
        %v1124 = vpack.c.b16 %v775, %v1108
        %v1125 = vpack.c.b16 %v777, %v1109
        %v1126 = vpack.c.b16 %v779, %v1110
        %v1127 = vpack.c.b16 %v781, %v1111
        %v1128 = vpack.c.b16 %v783, %v1112
        %v1129 = vpack.c.b16 %v785, %v1113
        %v1130 = vpack.c.b16 %v787, %v1114
        %v1131 = vpack.c.b16 %v789, %v1115
        %v1132 = vpack.c.b16 %v791, %v1116
        %v1133 = vpack.c.b16 %v793, %v1117
        %v1134 = vpack.c.b16 %v795, %v1118
        %v1135 = vpack.c.b16 %v797, %v1119
        %v1136 = vpack.c.b16 %v799, %v1120
        %vm1137 = vcmask 1046528
        %v1138 = vrot.slane %v1121, 1
        %v1139 = vrot.slane %v848, 1
        %v1140 = vsel %vm1137, %v1138, %v1139
        %v1141 = vrot.slane %v1122, 1
        %v1142 = vrot.slane %v849, 1
        %v1143 = vsel %vm1137, %v1141, %v1142
        %v1144 = vrot.slane %v1123, 1
        %v1145 = vrot.slane %v850, 1
        %v1146 = vsel %vm1137, %v1144, %v1145
        %v1147 = vrot.slane %v1124, 1
        %v1148 = vrot.slane %v851, 1
        %v1149 = vsel %vm1137, %v1147, %v1148
        %v1150 = vrot.slane %v1125, 1
        %v1151 = vrot.slane %v852, 1
        %v1152 = vsel %vm1137, %v1150, %v1151
        %v1153 = vrot.slane %v1126, 1
        %v1154 = vrot.slane %v853, 1
        %v1155 = vsel %vm1137, %v1153, %v1154
        %v1156 = vrot.slane %v1127, 1
        %v1157 = vrot.slane %v854, 1
        %v1158 = vsel %vm1137, %v1156, %v1157
        %v1159 = vrot.slane %v1128, 1
        %v1160 = vrot.slane %v855, 1
        %v1161 = vsel %vm1137, %v1159, %v1160
        %v1162 = vrot.slane %v1129, 1
        %v1163 = vrot.slane %v856, 1
        %v1164 = vsel %vm1137, %v1162, %v1163
        %v1165 = vrot.slane %v1130, 1
        %v1166 = vrot.slane %v857, 1
        %v1167 = vsel %vm1137, %v1165, %v1166
        %v1168 = vrot.slane %v1131, 1
        %v1169 = vrot.slane %v858, 1
        %v1170 = vsel %vm1137, %v1168, %v1169
        %v1171 = vrot.slane %v1132, 1
        %v1172 = vrot.slane %v859, 1
        %v1173 = vsel %vm1137, %v1171, %v1172
        %v1174 = vrot.slane %v1133, 1
        %v1175 = vrot.slane %v860, 1
        %v1176 = vsel %vm1137, %v1174, %v1175
        %v1177 = vrot.slane %v1134, 1
        %v1178 = vrot.slane %v861, 1
        %v1179 = vsel %vm1137, %v1177, %v1178
        %v1180 = vrot.slane %v1135, 1
        %v1181 = vrot.slane %v862, 1
        %v1182 = vsel %vm1137, %v1180, %v1181
        %v1183 = vrot.slane %v1136, 1
        %v1184 = vrot.slane %v863, 1
        %v1185 = vsel %vm1137, %v1183, %v1184
        %vm1186 = vcmask 523264
        %v1188 = vsel %vm1186, %v800, %v1058
        %v1191 = vsel %vm1186, %v801, %v1060
        %v1194 = vsel %vm1186, %v802, %v1062
        %v1197 = vsel %vm1186, %v803, %v1064
        %v1200 = vsel %vm1186, %v804, %v1066
        %v1203 = vsel %vm1186, %v805, %v1068
        %v1206 = vsel %vm1186, %v806, %v1070
        %v1209 = vsel %vm1186, %v807, %v1072
        %v1212 = vsel %vm1186, %v808, %v1074
        %v1215 = vsel %vm1186, %v809, %v1076
        %v1218 = vsel %vm1186, %v810, %v1078
        %v1221 = vsel %vm1186, %v811, %v1080
        %v1224 = vsel %vm1186, %v812, %v1082
        %v1227 = vsel %vm1186, %v813, %v1084
        %v1230 = vsel %vm1186, %v814, %v1086
        %v1233 = vsel %vm1186, %v815, %v1088
        %v1235 = vld [vmem:[%s1] sm:$0xf]
        %v1236 = vld [vmem:[%s1 + $0x4] sm:$0xf]
        %v1237 = vld [vmem:[%s1 + $0x8] sm:$0xf]
        %v1238 = vld [vmem:[%s1 + $0xc] sm:$0xf]
        %v1239 = vld [vmem:[%s1 + $0x10] sm:$0xf]
        %v1240 = vld [vmem:[%s1 + $0x14] sm:$0xf]
        %v1241 = vld [vmem:[%s1 + $0x18] sm:$0xf]
        %v1242 = vld [vmem:[%s1 + $0x1c] sm:$0xf]
        %v1243 = vld [vmem:[%s1 + $0x20] sm:$0xf]
        %v1244 = vld [vmem:[%s1 + $0x24] sm:$0xf]
        %v1245 = vld [vmem:[%s1 + $0x28] sm:$0xf]
        %v1246 = vld [vmem:[%s1 + $0x2c] sm:$0xf]
        %v1247 = vld [vmem:[%s1 + $0x30] sm:$0xf]
        %v1248 = vld [vmem:[%s1 + $0x34] sm:$0xf]
        %v1249 = vld [vmem:[%s1 + $0x38] sm:$0xf]
        %v1250 = vld [vmem:[%s1 + $0x3c] sm:$0xf]
        %v1251 = vld [vmem:[%s1 + $0x40] sm:$0xf]
        %v1252 = vld [vmem:[%s1 + $0x44] sm:$0xf]
        %v1253 = vld [vmem:[%s1 + $0x48] sm:$0xf]
        %v1254 = vld [vmem:[%s1 + $0x4c] sm:$0xf]
        %v1255 = vld [vmem:[%s1 + $0x50] sm:$0xf]
        %v1256 = vld [vmem:[%s1 + $0x54] sm:$0xf]
        %v1257 = vld [vmem:[%s1 + $0x58] sm:$0xf]
        %v1258 = vld [vmem:[%s1 + $0x5c] sm:$0xf]
        %v1283 = vunpack.c.l.b16 %v1235
        %v1284 = vunpack.c.l.b16 %v1236
        %v1285 = vunpack.c.l.b16 %v1237
        %v1286 = vunpack.c.l.b16 %v1238
        %v1287 = vunpack.c.l.b16 %v1239
        %v1288 = vunpack.c.l.b16 %v1240
        %v1289 = vunpack.c.l.b16 %v1241
        %v1290 = vunpack.c.l.b16 %v1242
        %v1291 = vunpack.c.l.b16 %v1243
        %v1292 = vunpack.c.l.b16 %v1244
        %v1293 = vunpack.c.l.b16 %v1245
        %v1294 = vunpack.c.l.b16 %v1246
        %v1295 = vunpack.c.l.b16 %v1247
        %v1296 = vunpack.c.l.b16 %v1248
        %v1297 = vunpack.c.l.b16 %v1249
        %v1298 = vunpack.c.l.b16 %v1250
        %v1299 = vunpack.c.l.b16 %v1251
        %v1300 = vunpack.c.l.b16 %v1252
        %v1301 = vunpack.c.l.b16 %v1253
        %v1302 = vunpack.c.l.b16 %v1254
        %v1303 = vunpack.c.l.b16 %v1255
        %v1304 = vunpack.c.l.b16 %v1256
        %v1305 = vunpack.c.l.b16 %v1257
        %v1306 = vunpack.c.l.b16 %v1258
        %v1307 = vpack.c.b16 %v1284, %v1283
        %v1308 = vpack.c.b16 %v1286, %v1285
        %v1309 = vpack.c.b16 %v1288, %v1287
        %v1310 = vpack.c.b16 %v1290, %v1289
        %v1311 = vpack.c.b16 %v1292, %v1291
        %v1312 = vpack.c.b16 %v1294, %v1293
        %v1313 = vpack.c.b16 %v1296, %v1295
        %v1314 = vpack.c.b16 %v1298, %v1297
        %v1315 = vpack.c.b16 %v1300, %v1299
        %v1316 = vpack.c.b16 %v1302, %v1301
        %v1317 = vpack.c.b16 %v1304, %v1303
        %v1318 = vpack.c.b16 %v1306, %v1305
        %v1332 = vsel %vm1186, %v1140, 0
        %v1335 = vsel %vm1186, %v1143, 0
        %v1338 = vsel %vm1186, %v1146, 0
        %v1341 = vsel %vm1186, %v1149, 0
        %v1344 = vsel %vm1186, %v1152, 0
        %v1347 = vsel %vm1186, %v1155, 0
        %v1350 = vsel %vm1186, %v1158, 0
        %v1353 = vsel %vm1186, %v1161, 0
        %v1356 = vsel %vm1186, %v1164, 0
        %v1359 = vsel %vm1186, %v1167, 0
        %v1362 = vsel %vm1186, %v1170, 0
        %v1365 = vsel %vm1186, %v1173, 0
        %v1368 = vsel %vm1186, %v1176, 0
        %v1371 = vsel %vm1186, %v1179, 0
        %v1374 = vsel %vm1186, %v1182, 0
        %v1377 = vsel %vm1186, %v1185, 0
        %1379 = vmatprep.subr.bf16.mxu0 0
        %1380 = vmatpush1.bf16.msra.mxu0 %v1307
        %1381 = vmatprep.subr.bf16.mxu0 0
        %1382 = vmatpush1.bf16.msra.mxu0 %v1308
        %1383 = vmatprep.subr.bf16.mxu0 0
        %1384 = vmatpush1.bf16.msra.mxu0 %v1309
        %1385 = vmatprep.subr.bf16.mxu0 0
        %1386 = vmatpush1.bf16.msra.mxu0 %v1310
        %1387 = vmatprep.subr.bf16.mxu0 0
        %1388 = vmatpush1.bf16.msra.mxu0 %v1311
        %1389 = vmatprep.subr.bf16.mxu0 0
        %1390 = vmatpush1.bf16.msra.mxu0 %v1312
        %1391 = vmatprep.subr.bf16.mxu0 0
        %1392 = vmatpush1.bf16.msra.mxu0 %v1313
        %1393 = vmatprep.subr.bf16.mxu0 0
        %1394 = vmatpush1.bf16.msra.mxu0 %v1314
        %1395 = vmatprep.subr.bf16.mxu0 0
        %1396 = vmatpush1.bf16.msra.mxu0 %v1315
        %1397 = vmatprep.subr.bf16.mxu0 0
        %1398 = vmatpush1.bf16.msra.mxu0 %v1316
        %1399 = vmatprep.subr.bf16.mxu0 0
        %1400 = vmatpush1.bf16.msra.mxu0 %v1317
        %1401 = vmatprep.subr.bf16.mxu0 0
        %1402 = vmatpush1.bf16.msra.mxu0 %v1318
        %1403 = vmatprep.subr.bf16.mxu0 0
        %1404 = vmatpush1.bf16.msra.mxu0 0
        %1405 = vmatprep.subr.bf16.mxu0 0
        %1406 = vmatpush1.bf16.msra.mxu0 0
        %1407 = vmatprep.subr.bf16.mxu0 0
        %1408 = vmatpush1.bf16.msra.mxu0 0
        %1409 = vmatprep.subr.bf16.mxu0 0
        %1410 = vmatpush1.bf16.msra.mxu0 0
        %1411 = vmatprep.mubr.bf16.mxu0 %v1332
        %1412 = vmatmul.mubr.bf16.gmra.mrb[0].mxu0 %v1188
        %v1413 = vpop.f32.mrb[0].mxu0
        %v1414 = vadd.f32 0.0, %v1413
        %v1415 = vpop.f32.mrb[0].mxu0
        %v1416 = vpop.f32.mrb[0].mxu0
        %v1417 = vadd.f32 0.0, %v1416
        %v1418 = vpop.f32.mrb[0].mxu0
        %1419 = vmatprep.mubr.bf16.mxu0 %v1335
        %1420 = vmatmul.mubr.bf16.gmra.mrb[0].mxu0 %v1191
        %v1421 = vpop.f32.mrb[0].mxu0
        %v1422 = vadd.f32 0.0, %v1421
        %v1423 = vpop.f32.mrb[0].mxu0
        %v1424 = vpop.f32.mrb[0].mxu0
        %v1425 = vadd.f32 0.0, %v1424
        %v1426 = vpop.f32.mrb[0].mxu0
        %1427 = vmatprep.mubr.bf16.mxu0 %v1338
        %1428 = vmatmul.mubr.bf16.gmra.mrb[0].mxu0 %v1194
        %v1429 = vpop.f32.mrb[0].mxu0
        %v1430 = vadd.f32 0.0, %v1429
        %v1431 = vpop.f32.mrb[0].mxu0
        %v1432 = vpop.f32.mrb[0].mxu0
        %v1433 = vadd.f32 0.0, %v1432
        %v1434 = vpop.f32.mrb[0].mxu0
        %1435 = vmatprep.mubr.bf16.mxu0 %v1341
        %1436 = vmatmul.mubr.bf16.gmra.mrb[0].mxu0 %v1197
        %v1437 = vpop.f32.mrb[0].mxu0
        %v1438 = vadd.f32 0.0, %v1437
        %v1439 = vpop.f32.mrb[0].mxu0
        %v1440 = vpop.f32.mrb[0].mxu0
        %v1441 = vadd.f32 0.0, %v1440
        %v1442 = vpop.f32.mrb[0].mxu0
        %1443 = vmatprep.mubr.bf16.mxu0 %v1344
        %1444 = vmatmul.mubr.bf16.gmra.mrb[0].mxu0 %v1200
        %v1445 = vpop.f32.mrb[0].mxu0
        %v1446 = vadd.f32 0.0, %v1445
        %v1447 = vpop.f32.mrb[0].mxu0
        %v1448 = vpop.f32.mrb[0].mxu0
        %v1449 = vadd.f32 0.0, %v1448
        %v1450 = vpop.f32.mrb[0].mxu0
        %1451 = vmatprep.mubr.bf16.mxu0 %v1347
        %1452 = vmatmul.mubr.bf16.gmra.mrb[0].mxu0 %v1203
        %v1453 = vpop.f32.mrb[0].mxu0
        %v1454 = vadd.f32 0.0, %v1453
        %v1455 = vpop.f32.mrb[0].mxu0
        %v1456 = vpop.f32.mrb[0].mxu0
        %v1457 = vadd.f32 0.0, %v1456
        %v1458 = vpop.f32.mrb[0].mxu0
        %1459 = vmatprep.mubr.bf16.mxu0 %v1350
        %1460 = vmatmul.mubr.bf16.gmra.mrb[0].mxu0 %v1206
        %v1461 = vpop.f32.mrb[0].mxu0
        %v1462 = vadd.f32 0.0, %v1461
        %v1463 = vpop.f32.mrb[0].mxu0
        %v1464 = vpop.f32.mrb[0].mxu0
        %v1465 = vadd.f32 0.0, %v1464
        %v1466 = vpop.f32.mrb[0].mxu0
        %1467 = vmatprep.mubr.bf16.mxu0 %v1353
        %1468 = vmatmul.mubr.bf16.gmra.mrb[0].mxu0 %v1209
        %v1469 = vpop.f32.mrb[0].mxu0
        %v1470 = vadd.f32 0.0, %v1469
        %v1471 = vpop.f32.mrb[0].mxu0
        %v1472 = vpop.f32.mrb[0].mxu0
        %v1473 = vadd.f32 0.0, %v1472
        %v1474 = vpop.f32.mrb[0].mxu0
        %1475 = vmatprep.mubr.bf16.mxu0 %v1356
        %1476 = vmatmul.mubr.bf16.gmra.mrb[0].mxu0 %v1212
        %v1477 = vpop.f32.mrb[0].mxu0
        %v1478 = vadd.f32 0.0, %v1477
        %v1479 = vpop.f32.mrb[0].mxu0
        %v1480 = vpop.f32.mrb[0].mxu0
        %v1481 = vadd.f32 0.0, %v1480
        %v1482 = vpop.f32.mrb[0].mxu0
        %1483 = vmatprep.mubr.bf16.mxu0 %v1359
        %1484 = vmatmul.mubr.bf16.gmra.mrb[0].mxu0 %v1215
        %v1485 = vpop.f32.mrb[0].mxu0
        %v1486 = vadd.f32 0.0, %v1485
        %v1487 = vpop.f32.mrb[0].mxu0
        %v1488 = vpop.f32.mrb[0].mxu0
        %v1489 = vadd.f32 0.0, %v1488
        %v1490 = vpop.f32.mrb[0].mxu0
        %1491 = vmatprep.mubr.bf16.mxu0 %v1362
        %1492 = vmatmul.mubr.bf16.gmra.mrb[0].mxu0 %v1218
        %v1493 = vpop.f32.mrb[0].mxu0
        %v1494 = vadd.f32 0.0, %v1493
        %v1495 = vpop.f32.mrb[0].mxu0
        %v1496 = vpop.f32.mrb[0].mxu0
        %v1497 = vadd.f32 0.0, %v1496
        %v1498 = vpop.f32.mrb[0].mxu0
        %1499 = vmatprep.mubr.bf16.mxu0 %v1365
        %1500 = vmatmul.mubr.bf16.gmra.mrb[0].mxu0 %v1221
        %v1501 = vpop.f32.mrb[0].mxu0
        %v1502 = vadd.f32 0.0, %v1501
        %v1503 = vpop.f32.mrb[0].mxu0
        %v1504 = vpop.f32.mrb[0].mxu0
        %v1505 = vadd.f32 0.0, %v1504
        %v1506 = vpop.f32.mrb[0].mxu0
        %1507 = vmatprep.mubr.bf16.mxu0 %v1368
        %1508 = vmatmul.mubr.bf16.gmra.mrb[0].mxu0 %v1224
        %v1509 = vpop.f32.mrb[0].mxu0
        %v1510 = vadd.f32 0.0, %v1509
        %v1511 = vpop.f32.mrb[0].mxu0
        %v1512 = vpop.f32.mrb[0].mxu0
        %v1513 = vadd.f32 0.0, %v1512
        %v1514 = vpop.f32.mrb[0].mxu0
        %1515 = vmatprep.mubr.bf16.mxu0 %v1371
        %1516 = vmatmul.mubr.bf16.gmra.mrb[0].mxu0 %v1227
        %v1517 = vpop.f32.mrb[0].mxu0
        %v1518 = vadd.f32 0.0, %v1517
        %v1519 = vpop.f32.mrb[0].mxu0
        %v1520 = vpop.f32.mrb[0].mxu0
        %v1521 = vadd.f32 0.0, %v1520
        %v1522 = vpop.f32.mrb[0].mxu0
        %1523 = vmatprep.mubr.bf16.mxu0 %v1374
        %1524 = vmatmul.mubr.bf16.gmra.mrb[0].mxu0 %v1230
        %v1525 = vpop.f32.mrb[0].mxu0
        %v1526 = vadd.f32 0.0, %v1525
        %v1527 = vpop.f32.mrb[0].mxu0
        %v1528 = vpop.f32.mrb[0].mxu0
        %v1529 = vadd.f32 0.0, %v1528
        %v1530 = vpop.f32.mrb[0].mxu0
        %1531 = vmatprep.mubr.bf16.mxu0 %v1377
        %1532 = vmatmul.mubr.bf16.gmra.mrb[0].mxu0 %v1233
        %v1533 = vpop.f32.mrb[0].mxu0
        %v1534 = vadd.f32 0.0, %v1533
        %v1535 = vpop.f32.mrb[0].mxu0
        %v1536 = vpop.f32.mrb[0].mxu0
        %v1537 = vadd.f32 0.0, %v1536
        %v1538 = vpop.f32.mrb[0].mxu0
        %1539 = vdwg.mxu0
        %1540 = vst.msk [vmem:[#allocation3] sm:$0xff] %vm1186, %v1414
        %1541 = vst.msk [vmem:[#allocation3 + $0x8] sm:$0xff] %vm1186, %v1417
        %1542 = vst.msk [vmem:[#allocation3 + $0x10] sm:$0xff] %vm1186, %v1422
        %1543 = vst.msk [vmem:[#allocation3 + $0x18] sm:$0xff] %vm1186, %v1425
        %1544 = vst.msk [vmem:[#allocation3 + $0x20] sm:$0xff] %vm1186, %v1430
        %1545 = vst.msk [vmem:[#allocation3 + $0x28] sm:$0xff] %vm1186, %v1433
        %1546 = vst.msk [vmem:[#allocation3 + $0x30] sm:$0xff] %vm1186, %v1438
        %1547 = vst.msk [vmem:[#allocation3 + $0x38] sm:$0xff] %vm1186, %v1441
        %1548 = vst.msk [vmem:[#allocation3 + $0x40] sm:$0xff] %vm1186, %v1446
        %1549 = vst.msk [vmem:[#allocation3 + $0x48] sm:$0xff] %vm1186, %v1449
        %1550 = vst.msk [vmem:[#allocation3 + $0x50] sm:$0xff] %vm1186, %v1454
        %1551 = vst.msk [vmem:[#allocation3 + $0x58] sm:$0xff] %vm1186, %v1457
        %1552 = vst.msk [vmem:[#allocation3 + $0x60] sm:$0xff] %vm1186, %v1462
        %1553 = vst.msk [vmem:[#allocation3 + $0x68] sm:$0xff] %vm1186, %v1465
        %1554 = vst.msk [vmem:[#allocation3 + $0x70] sm:$0xff] %vm1186, %v1470
        %1555 = vst.msk [vmem:[#allocation3 + $0x78] sm:$0xff] %vm1186, %v1473
        %1556 = vst.msk [vmem:[#allocation3 + $0x80] sm:$0xff] %vm1186, %v1478
        %1557 = vst.msk [vmem:[#allocation3 + $0x88] sm:$0xff] %vm1186, %v1481
        %1558 = vst.msk [vmem:[#allocation3 + $0x90] sm:$0xff] %vm1186, %v1486
        %1559 = vst.msk [vmem:[#allocation3 + $0x98] sm:$0xff] %vm1186, %v1489
        %1560 = vst.msk [vmem:[#allocation3 + $0xa0] sm:$0xff] %vm1186, %v1494
        %1561 = vst.msk [vmem:[#allocation3 + $0xa8] sm:$0xff] %vm1186, %v1497
        %1562 = vst.msk [vmem:[#allocation3 + $0xb0] sm:$0xff] %vm1186, %v1502
        %1563 = vst.msk [vmem:[#allocation3 + $0xb8] sm:$0xff] %vm1186, %v1505
        %1564 = vst.msk [vmem:[#allocation3 + $0xc0] sm:$0xff] %vm1186, %v1510
        %1565 = vst.msk [vmem:[#allocation3 + $0xc8] sm:$0xff] %vm1186, %v1513
        %1566 = vst.msk [vmem:[#allocation3 + $0xd0] sm:$0xff] %vm1186, %v1518
        %1567 = vst.msk [vmem:[#allocation3 + $0xd8] sm:$0xff] %vm1186, %v1521
        %1568 = vst.msk [vmem:[#allocation3 + $0xe0] sm:$0xff] %vm1186, %v1526
        %1569 = vst.msk [vmem:[#allocation3 + $0xe8] sm:$0xff] %vm1186, %v1529
        %1570 = vst.msk [vmem:[#allocation3 + $0xf0] sm:$0xff] %vm1186, %v1534
        %1571 = vst.msk [vmem:[#allocation3 + $0xf8] sm:$0xff] %vm1186, %v1537
        %v1572 = vld [vmem:[%s554] sm:$0xf]
        %v1573 = vld [vmem:[%s554 + $0x4] sm:$0xf]
        %v1574 = vld [vmem:[%s554 + $0xc] sm:$0xf]
        %v1575 = vld [vmem:[%s554 + $0x10] sm:$0xf]
        %v1576 = vld [vmem:[%s554 + $0x18] sm:$0xf]
        %v1577 = vld [vmem:[%s554 + $0x1c] sm:$0xf]
        %v1578 = vld [vmem:[%s554 + $0x24] sm:$0xf]
        %v1579 = vld [vmem:[%s554 + $0x28] sm:$0xf]
        %v1580 = vld [vmem:[%s554 + $0x30] sm:$0xf]
        %v1581 = vld [vmem:[%s554 + $0x34] sm:$0xf]
        %v1582 = vld [vmem:[%s554 + $0x3c] sm:$0xf]
        %v1583 = vld [vmem:[%s554 + $0x40] sm:$0xf]
        %v1584 = vld [vmem:[%s554 + $0x48] sm:$0xf]
        %v1585 = vld [vmem:[%s554 + $0x4c] sm:$0xf]
        %v1586 = vld [vmem:[%s554 + $0x54] sm:$0xf]
        %v1587 = vld [vmem:[%s554 + $0x58] sm:$0xf]
        %v1588 = vld [vmem:[%s554 + $0x60] sm:$0xf]
        %v1589 = vld [vmem:[%s554 + $0x64] sm:$0xf]
        %v1590 = vld [vmem:[%s554 + $0x6c] sm:$0xf]
        %v1591 = vld [vmem:[%s554 + $0x70] sm:$0xf]
        %v1592 = vld [vmem:[%s554 + $0x78] sm:$0xf]
        %v1593 = vld [vmem:[%s554 + $0x7c] sm:$0xf]
        %v1594 = vld [vmem:[%s554 + $0x84] sm:$0xf]
        %v1595 = vld [vmem:[%s554 + $0x88] sm:$0xf]
        %v1596 = vld [vmem:[%s554 + $0x90] sm:$0xf]
        %v1597 = vld [vmem:[%s554 + $0x94] sm:$0xf]
        %v1598 = vld [vmem:[%s554 + $0x9c] sm:$0xf]
        %v1599 = vld [vmem:[%s554 + $0xa0] sm:$0xf]
        %v1600 = vld [vmem:[%s554 + $0xa8] sm:$0xf]
        %v1601 = vld [vmem:[%s554 + $0xac] sm:$0xf]
        %v1602 = vld [vmem:[%s554 + $0xb4] sm:$0xf]
        %v1603 = vld [vmem:[%s554 + $0xb8] sm:$0xf]
        %v1604 = vld [vmem:[%s554 + $0x8] sm:$0x1]
        %v1605 = vld [vmem:[%s554 + $0x14] sm:$0x1]
        %v1606 = vld [vmem:[%s554 + $0x20] sm:$0x1]
        %v1607 = vld [vmem:[%s554 + $0x2c] sm:$0x1]
        %v1608 = vld [vmem:[%s554 + $0x38] sm:$0x1]
        %v1609 = vld [vmem:[%s554 + $0x44] sm:$0x1]
        %v1610 = vld [vmem:[%s554 + $0x50] sm:$0x1]
        %v1611 = vld [vmem:[%s554 + $0x5c] sm:$0x1]
        %v1612 = vld [vmem:[%s554 + $0x68] sm:$0x1]
        %v1613 = vld [vmem:[%s554 + $0x74] sm:$0x1]
        %v1614 = vld [vmem:[%s554 + $0x80] sm:$0x1]
        %v1615 = vld [vmem:[%s554 + $0x8c] sm:$0x1]
        %v1616 = vld [vmem:[%s554 + $0x98] sm:$0x1]
        %v1617 = vld [vmem:[%s554 + $0xa4] sm:$0x1]
        %v1618 = vld [vmem:[%s554 + $0xb0] sm:$0x1]
        %v1619 = vld [vmem:[%s554 + $0xbc] sm:$0x1]
        %v1620 = vld [vmem:[%s554] sm:$0xe]
        %v1621 = vld [vmem:[%s554 + $0xc] sm:$0xe]
        %v1622 = vld [vmem:[%s554 + $0x18] sm:$0xe]
        %v1623 = vld [vmem:[%s554 + $0x24] sm:$0xe]
        %v1624 = vld [vmem:[%s554 + $0x30] sm:$0xe]
        %v1625 = vld [vmem:[%s554 + $0x3c] sm:$0xe]
        %v1626 = vld [vmem:[%s554 + $0x48] sm:$0xe]
        %v1627 = vld [vmem:[%s554 + $0x54] sm:$0xe]
        %v1628 = vld [vmem:[%s554 + $0x60] sm:$0xe]
        %v1629 = vld [vmem:[%s554 + $0x6c] sm:$0xe]
        %v1630 = vld [vmem:[%s554 + $0x78] sm:$0xe]
        %v1631 = vld [vmem:[%s554 + $0x84] sm:$0xe]
        %v1632 = vld [vmem:[%s554 + $0x90] sm:$0xe]
        %v1633 = vld [vmem:[%s554 + $0x9c] sm:$0xe]
        %v1634 = vld [vmem:[%s554 + $0xa8] sm:$0xe]
        %v1635 = vld [vmem:[%s554 + $0xb4] sm:$0xe]
        %v1668 = vunpack.c.l.b16 %v1572
        %v1669 = vunpack.c.l.b16 %v1573
        %v1670 = vunpack.c.l.b16 %v1574
        %v1671 = vunpack.c.l.b16 %v1575
        %v1672 = vunpack.c.l.b16 %v1576
        %v1673 = vunpack.c.l.b16 %v1577
        %v1674 = vunpack.c.l.b16 %v1578
        %v1675 = vunpack.c.l.b16 %v1579
        %v1676 = vunpack.c.l.b16 %v1580
        %v1677 = vunpack.c.l.b16 %v1581
        %v1678 = vunpack.c.l.b16 %v1582
        %v1679 = vunpack.c.l.b16 %v1583
        %v1680 = vunpack.c.l.b16 %v1584
        %v1681 = vunpack.c.l.b16 %v1585
        %v1682 = vunpack.c.l.b16 %v1586
        %v1683 = vunpack.c.l.b16 %v1587
        %v1684 = vunpack.c.l.b16 %v1588
        %v1685 = vunpack.c.l.b16 %v1589
        %v1686 = vunpack.c.l.b16 %v1590
        %v1687 = vunpack.c.l.b16 %v1591
        %v1688 = vunpack.c.l.b16 %v1592
        %v1689 = vunpack.c.l.b16 %v1593
        %v1690 = vunpack.c.l.b16 %v1594
        %v1691 = vunpack.c.l.b16 %v1595
        %v1692 = vunpack.c.l.b16 %v1596
        %v1693 = vunpack.c.l.b16 %v1597
        %v1694 = vunpack.c.l.b16 %v1598
        %v1695 = vunpack.c.l.b16 %v1599
        %v1696 = vunpack.c.l.b16 %v1600
        %v1697 = vunpack.c.l.b16 %v1601
        %v1698 = vunpack.c.l.b16 %v1602
        %v1699 = vunpack.c.l.b16 %v1603
        %v1700 = vpack.c.b16 %v1669, %v1668
        %v1701 = vpack.c.b16 %v1671, %v1670
        %v1702 = vpack.c.b16 %v1673, %v1672
        %v1703 = vpack.c.b16 %v1675, %v1674
        %v1704 = vpack.c.b16 %v1677, %v1676
        %v1705 = vpack.c.b16 %v1679, %v1678
        %v1706 = vpack.c.b16 %v1681, %v1680
        %v1707 = vpack.c.b16 %v1683, %v1682
        %v1708 = vpack.c.b16 %v1685, %v1684
        %v1709 = vpack.c.b16 %v1687, %v1686
        %v1710 = vpack.c.b16 %v1689, %v1688
        %v1711 = vpack.c.b16 %v1691, %v1690
        %v1712 = vpack.c.b16 %v1693, %v1692
        %v1713 = vpack.c.b16 %v1695, %v1694
        %v1714 = vpack.c.b16 %v1697, %v1696
        %v1715 = vpack.c.b16 %v1699, %v1698
        %v1732 = vunpack.c.l.b16 %v1604
        %v1733 = vunpack.c.l.b16 %v1605
        %v1734 = vunpack.c.l.b16 %v1606
        %v1735 = vunpack.c.l.b16 %v1607
        %v1736 = vunpack.c.l.b16 %v1608
        %v1737 = vunpack.c.l.b16 %v1609
        %v1738 = vunpack.c.l.b16 %v1610
        %v1739 = vunpack.c.l.b16 %v1611
        %v1740 = vunpack.c.l.b16 %v1612
        %v1741 = vunpack.c.l.b16 %v1613
        %v1742 = vunpack.c.l.b16 %v1614
        %v1743 = vunpack.c.l.b16 %v1615
        %v1744 = vunpack.c.l.b16 %v1616
        %v1745 = vunpack.c.l.b16 %v1617
        %v1746 = vunpack.c.l.b16 %v1618
        %v1747 = vunpack.c.l.b16 %v1619
        %v1748 = vpack.c.b16 %v1732, %v1732
        %v1749 = vpack.c.b16 %v1733, %v1733
        %v1750 = vpack.c.b16 %v1734, %v1734
        %v1751 = vpack.c.b16 %v1735, %v1735
        %v1752 = vpack.c.b16 %v1736, %v1736
        %v1753 = vpack.c.b16 %v1737, %v1737
        %v1754 = vpack.c.b16 %v1738, %v1738
        %v1755 = vpack.c.b16 %v1739, %v1739
        %v1756 = vpack.c.b16 %v1740, %v1740
        %v1757 = vpack.c.b16 %v1741, %v1741
        %v1758 = vpack.c.b16 %v1742, %v1742
        %v1759 = vpack.c.b16 %v1743, %v1743
        %v1760 = vpack.c.b16 %v1744, %v1744
        %v1761 = vpack.c.b16 %v1745, %v1745
        %v1762 = vpack.c.b16 %v1746, %v1746
        %v1763 = vpack.c.b16 %v1747, %v1747
        %v1765 = vshrl.u32 %v1700, 16
        %v1767 = vshll.u32 %v1700, 16
        %v1769 = vrot.slane %v1767, 1
        %v1770 = vor.u32 %v1765, %v1769
        %v1772 = vshll.u32 %v1748, 16
        %v1774 = vrot.slane %v1772, 1
        %v1775 = vsel %vm864, %v1770, %v1774
        %v1777 = vshrl.u32 %v1701, 16
        %v1779 = vshll.u32 %v1701, 16
        %v1781 = vrot.slane %v1779, 1
        %v1782 = vor.u32 %v1777, %v1781
        %v1784 = vshll.u32 %v1749, 16
        %v1786 = vrot.slane %v1784, 1
        %v1787 = vsel %vm864, %v1782, %v1786
        %v1789 = vshrl.u32 %v1702, 16
        %v1791 = vshll.u32 %v1702, 16
        %v1793 = vrot.slane %v1791, 1
        %v1794 = vor.u32 %v1789, %v1793
        %v1796 = vshll.u32 %v1750, 16
        %v1798 = vrot.slane %v1796, 1
        %v1799 = vsel %vm864, %v1794, %v1798
        %v1801 = vshrl.u32 %v1703, 16
        %v1803 = vshll.u32 %v1703, 16
        %v1805 = vrot.slane %v1803, 1
        %v1806 = vor.u32 %v1801, %v1805
        %v1808 = vshll.u32 %v1751, 16
        %v1810 = vrot.slane %v1808, 1
        %v1811 = vsel %vm864, %v1806, %v1810
        %v1813 = vshrl.u32 %v1704, 16
        %v1815 = vshll.u32 %v1704, 16
        %v1817 = vrot.slane %v1815, 1
        %v1818 = vor.u32 %v1813, %v1817
        %v1820 = vshll.u32 %v1752, 16
        %v1822 = vrot.slane %v1820, 1
        %v1823 = vsel %vm864, %v1818, %v1822
        %v1825 = vshrl.u32 %v1705, 16
        %v1827 = vshll.u32 %v1705, 16
        %v1829 = vrot.slane %v1827, 1
        %v1830 = vor.u32 %v1825, %v1829
        %v1832 = vshll.u32 %v1753, 16
        %v1834 = vrot.slane %v1832, 1
        %v1835 = vsel %vm864, %v1830, %v1834
        %v1837 = vshrl.u32 %v1706, 16
        %v1839 = vshll.u32 %v1706, 16
        %v1841 = vrot.slane %v1839, 1
        %v1842 = vor.u32 %v1837, %v1841
        %v1844 = vshll.u32 %v1754, 16
        %v1846 = vrot.slane %v1844, 1
        %v1847 = vsel %vm864, %v1842, %v1846
        %v1849 = vshrl.u32 %v1707, 16
        %v1851 = vshll.u32 %v1707, 16
        %v1853 = vrot.slane %v1851, 1
        %v1854 = vor.u32 %v1849, %v1853
        %v1856 = vshll.u32 %v1755, 16
        %v1858 = vrot.slane %v1856, 1
        %v1859 = vsel %vm864, %v1854, %v1858
        %v1861 = vshrl.u32 %v1708, 16
        %v1863 = vshll.u32 %v1708, 16
        %v1865 = vrot.slane %v1863, 1
        %v1866 = vor.u32 %v1861, %v1865
        %v1868 = vshll.u32 %v1756, 16
        %v1870 = vrot.slane %v1868, 1
        %v1871 = vsel %vm864, %v1866, %v1870
        %v1873 = vshrl.u32 %v1709, 16
        %v1875 = vshll.u32 %v1709, 16
        %v1877 = vrot.slane %v1875, 1
        %v1878 = vor.u32 %v1873, %v1877
        %v1880 = vshll.u32 %v1757, 16
        %v1882 = vrot.slane %v1880, 1
        %v1883 = vsel %vm864, %v1878, %v1882
        %v1885 = vshrl.u32 %v1710, 16
        %v1887 = vshll.u32 %v1710, 16
        %v1889 = vrot.slane %v1887, 1
        %v1890 = vor.u32 %v1885, %v1889
        %v1892 = vshll.u32 %v1758, 16
        %v1894 = vrot.slane %v1892, 1
        %v1895 = vsel %vm864, %v1890, %v1894
        %v1897 = vshrl.u32 %v1711, 16
        %v1899 = vshll.u32 %v1711, 16
        %v1901 = vrot.slane %v1899, 1
        %v1902 = vor.u32 %v1897, %v1901
        %v1904 = vshll.u32 %v1759, 16
        %v1906 = vrot.slane %v1904, 1
        %v1907 = vsel %vm864, %v1902, %v1906
        %v1909 = vshrl.u32 %v1712, 16
        %v1911 = vshll.u32 %v1712, 16
        %v1913 = vrot.slane %v1911, 1
        %v1914 = vor.u32 %v1909, %v1913
        %v1916 = vshll.u32 %v1760, 16
        %v1918 = vrot.slane %v1916, 1
        %v1919 = vsel %vm864, %v1914, %v1918
        %v1921 = vshrl.u32 %v1713, 16
        %v1923 = vshll.u32 %v1713, 16
        %v1925 = vrot.slane %v1923, 1
        %v1926 = vor.u32 %v1921, %v1925
        %v1928 = vshll.u32 %v1761, 16
        %v1930 = vrot.slane %v1928, 1
        %v1931 = vsel %vm864, %v1926, %v1930
        %v1933 = vshrl.u32 %v1714, 16
        %v1935 = vshll.u32 %v1714, 16
        %v1937 = vrot.slane %v1935, 1
        %v1938 = vor.u32 %v1933, %v1937
        %v1940 = vshll.u32 %v1762, 16
        %v1942 = vrot.slane %v1940, 1
        %v1943 = vsel %vm864, %v1938, %v1942
        %v1945 = vshrl.u32 %v1715, 16
        %v1947 = vshll.u32 %v1715, 16
        %v1949 = vrot.slane %v1947, 1
        %v1950 = vor.u32 %v1945, %v1949
        %v1952 = vshll.u32 %v1763, 16
        %v1954 = vrot.slane %v1952, 1
        %v1955 = vsel %vm864, %v1950, %v1954
        %1956 = vrot.lane.b32.xlu0 %v1775, 64
        %v1957 = vpop.permute.xlu0 %1956
        %1958 = vrot.lane.b32.xlu0 %v1787, 64
        %v1959 = vpop.permute.xlu0 %1958
        %1960 = vrot.lane.b32.xlu0 %v1799, 64
        %v1961 = vpop.permute.xlu0 %1960
        %1962 = vrot.lane.b32.xlu0 %v1811, 64
        %v1963 = vpop.permute.xlu0 %1962
        %1964 = vrot.lane.b32.xlu0 %v1823, 64
        %v1965 = vpop.permute.xlu0 %1964
        %1966 = vrot.lane.b32.xlu0 %v1835, 64
        %v1967 = vpop.permute.xlu0 %1966
        %1968 = vrot.lane.b32.xlu0 %v1847, 64
        %v1969 = vpop.permute.xlu0 %1968
        %1970 = vrot.lane.b32.xlu0 %v1859, 64
        %v1971 = vpop.permute.xlu0 %1970
        %1972 = vrot.lane.b32.xlu0 %v1871, 64
        %v1973 = vpop.permute.xlu0 %1972
        %1974 = vrot.lane.b32.xlu0 %v1883, 64
        %v1975 = vpop.permute.xlu0 %1974
        %1976 = vrot.lane.b32.xlu0 %v1895, 64
        %v1977 = vpop.permute.xlu0 %1976
        %1978 = vrot.lane.b32.xlu0 %v1907, 64
        %v1979 = vpop.permute.xlu0 %1978
        %1980 = vrot.lane.b32.xlu0 %v1919, 64
        %v1981 = vpop.permute.xlu0 %1980
        %1982 = vrot.lane.b32.xlu0 %v1931, 64
        %v1983 = vpop.permute.xlu0 %1982
        %1984 = vrot.lane.b32.xlu0 %v1943, 64
        %v1985 = vpop.permute.xlu0 %1984
        %1986 = vrot.lane.b32.xlu0 %v1955, 64
        %v1987 = vpop.permute.xlu0 %1986
        %v2004 = vunpack.c.l.b16 %v1620
        %v2005 = vunpack.c.l.b16 %v1621
        %v2006 = vunpack.c.l.b16 %v1622
        %v2007 = vunpack.c.l.b16 %v1623
        %v2008 = vunpack.c.l.b16 %v1624
        %v2009 = vunpack.c.l.b16 %v1625
        %v2010 = vunpack.c.l.b16 %v1626
        %v2011 = vunpack.c.l.b16 %v1627
        %v2012 = vunpack.c.l.b16 %v1628
        %v2013 = vunpack.c.l.b16 %v1629
        %v2014 = vunpack.c.l.b16 %v1630
        %v2015 = vunpack.c.l.b16 %v1631
        %v2016 = vunpack.c.l.b16 %v1632
        %v2017 = vunpack.c.l.b16 %v1633
        %v2018 = vunpack.c.l.b16 %v1634
        %v2019 = vunpack.c.l.b16 %v1635
        %v2020 = vpack.c.b16 %v1669, %v2004
        %v2021 = vpack.c.b16 %v1671, %v2005
        %v2022 = vpack.c.b16 %v1673, %v2006
        %v2023 = vpack.c.b16 %v1675, %v2007
        %v2024 = vpack.c.b16 %v1677, %v2008
        %v2025 = vpack.c.b16 %v1679, %v2009
        %v2026 = vpack.c.b16 %v1681, %v2010
        %v2027 = vpack.c.b16 %v1683, %v2011
        %v2028 = vpack.c.b16 %v1685, %v2012
        %v2029 = vpack.c.b16 %v1687, %v2013
        %v2030 = vpack.c.b16 %v1689, %v2014
        %v2031 = vpack.c.b16 %v1691, %v2015
        %v2032 = vpack.c.b16 %v1693, %v2016
        %v2033 = vpack.c.b16 %v1695, %v2017
        %v2034 = vpack.c.b16 %v1697, %v2018
        %v2035 = vpack.c.b16 %v1699, %v2019
        %v2036 = vrot.slane %v2020, 1
        %v2037 = vrot.slane %v1748, 1
        %v2038 = vsel %vm1137, %v2036, %v2037
        %v2039 = vrot.slane %v2021, 1
        %v2040 = vrot.slane %v1749, 1
        %v2041 = vsel %vm1137, %v2039, %v2040
        %v2042 = vrot.slane %v2022, 1
        %v2043 = vrot.slane %v1750, 1
        %v2044 = vsel %vm1137, %v2042, %v2043
        %v2045 = vrot.slane %v2023, 1
        %v2046 = vrot.slane %v1751, 1
        %v2047 = vsel %vm1137, %v2045, %v2046
        %v2048 = vrot.slane %v2024, 1
        %v2049 = vrot.slane %v1752, 1
        %v2050 = vsel %vm1137, %v2048, %v2049
        %v2051 = vrot.slane %v2025, 1
        %v2052 = vrot.slane %v1753, 1
        %v2053 = vsel %vm1137, %v2051, %v2052
        %v2054 = vrot.slane %v2026, 1
        %v2055 = vrot.slane %v1754, 1
        %v2056 = vsel %vm1137, %v2054, %v2055
        %v2057 = vrot.slane %v2027, 1
        %v2058 = vrot.slane %v1755, 1
        %v2059 = vsel %vm1137, %v2057, %v2058
        %v2060 = vrot.slane %v2028, 1
        %v2061 = vrot.slane %v1756, 1
        %v2062 = vsel %vm1137, %v2060, %v2061
        %v2063 = vrot.slane %v2029, 1
        %v2064 = vrot.slane %v1757, 1
        %v2065 = vsel %vm1137, %v2063, %v2064
        %v2066 = vrot.slane %v2030, 1
        %v2067 = vrot.slane %v1758, 1
        %v2068 = vsel %vm1137, %v2066, %v2067
        %v2069 = vrot.slane %v2031, 1
        %v2070 = vrot.slane %v1759, 1
        %v2071 = vsel %vm1137, %v2069, %v2070
        %v2072 = vrot.slane %v2032, 1
        %v2073 = vrot.slane %v1760, 1
        %v2074 = vsel %vm1137, %v2072, %v2073
        %v2075 = vrot.slane %v2033, 1
        %v2076 = vrot.slane %v1761, 1
        %v2077 = vsel %vm1137, %v2075, %v2076
        %v2078 = vrot.slane %v2034, 1
        %v2079 = vrot.slane %v1762, 1
        %v2080 = vsel %vm1137, %v2078, %v2079
        %v2081 = vrot.slane %v2035, 1
        %v2082 = vrot.slane %v1763, 1
        %v2083 = vsel %vm1137, %v2081, %v2082
        %v2085 = vsel %vm1186, %v1700, %v1957
        %v2088 = vsel %vm1186, %v1701, %v1959
        %v2091 = vsel %vm1186, %v1702, %v1961
        %v2094 = vsel %vm1186, %v1703, %v1963
        %v2097 = vsel %vm1186, %v1704, %v1965
        %v2100 = vsel %vm1186, %v1705, %v1967
        %v2103 = vsel %vm1186, %v1706, %v1969
        %v2106 = vsel %vm1186, %v1707, %v1971
        %v2109 = vsel %vm1186, %v1708, %v1973
        %v2112 = vsel %vm1186, %v1709, %v1975
        %v2115 = vsel %vm1186, %v1710, %v1977
        %v2118 = vsel %vm1186, %v1711, %v1979
        %v2121 = vsel %vm1186, %v1712, %v1981
        %v2124 = vsel %vm1186, %v1713, %v1983
        %v2127 = vsel %vm1186, %v1714, %v1985
        %v2130 = vsel %vm1186, %v1715, %v1987
        %s2132 = scalar_lea.vmem %s1, 96
        %v2133 = vld [vmem:[%s2132] sm:$0xf]
        %v2134 = vld [vmem:[%s2132 + $0x4] sm:$0xf]
        %v2135 = vld [vmem:[%s2132 + $0x8] sm:$0xf]
        %v2136 = vld [vmem:[%s2132 + $0xc] sm:$0xf]
        %v2137 = vld [vmem:[%s2132 + $0x10] sm:$0xf]
        %v2138 = vld [vmem:[%s2132 + $0x14] sm:$0xf]
        %v2139 = vld [vmem:[%s2132 + $0x18] sm:$0xf]
        %v2140 = vld [vmem:[%s2132 + $0x1c] sm:$0xf]
        %v2141 = vld [vmem:[%s2132 + $0x20] sm:$0xf]
        %v2142 = vld [vmem:[%s2132 + $0x24] sm:$0xf]
        %v2143 = vld [vmem:[%s2132 + $0x28] sm:$0xf]
        %v2144 = vld [vmem:[%s2132 + $0x2c] sm:$0xf]
        %v2145 = vld [vmem:[%s2132 + $0x30] sm:$0xf]
        %v2146 = vld [vmem:[%s2132 + $0x34] sm:$0xf]
        %v2147 = vld [vmem:[%s2132 + $0x38] sm:$0xf]
        %v2148 = vld [vmem:[%s2132 + $0x3c] sm:$0xf]
        %v2149 = vld [vmem:[%s2132 + $0x40] sm:$0xf]
        %v2150 = vld [vmem:[%s2132 + $0x44] sm:$0xf]
        %v2151 = vld [vmem:[%s2132 + $0x48] sm:$0xf]
        %v2152 = vld [vmem:[%s2132 + $0x4c] sm:$0xf]
        %v2153 = vld [vmem:[%s2132 + $0x50] sm:$0xf]
        %v2154 = vld [vmem:[%s2132 + $0x54] sm:$0xf]
        %v2155 = vld [vmem:[%s2132 + $0x58] sm:$0xf]
        %v2156 = vld [vmem:[%s2132 + $0x5c] sm:$0xf]
        %v2181 = vunpack.c.l.b16 %v2133
        %v2182 = vunpack.c.l.b16 %v2134
        %v2183 = vunpack.c.l.b16 %v2135
        %v2184 = vunpack.c.l.b16 %v2136
        %v2185 = vunpack.c.l.b16 %v2137
        %v2186 = vunpack.c.l.b16 %v2138
        %v2187 = vunpack.c.l.b16 %v2139
        %v2188 = vunpack.c.l.b16 %v2140
        %v2189 = vunpack.c.l.b16 %v2141
        %v2190 = vunpack.c.l.b16 %v2142
        %v2191 = vunpack.c.l.b16 %v2143
        %v2192 = vunpack.c.l.b16 %v2144
        %v2193 = vunpack.c.l.b16 %v2145
        %v2194 = vunpack.c.l.b16 %v2146
        %v2195 = vunpack.c.l.b16 %v2147
        %v2196 = vunpack.c.l.b16 %v2148
        %v2197 = vunpack.c.l.b16 %v2149
        %v2198 = vunpack.c.l.b16 %v2150
        %v2199 = vunpack.c.l.b16 %v2151
        %v2200 = vunpack.c.l.b16 %v2152
        %v2201 = vunpack.c.l.b16 %v2153
        %v2202 = vunpack.c.l.b16 %v2154
        %v2203 = vunpack.c.l.b16 %v2155
        %v2204 = vunpack.c.l.b16 %v2156
        %v2205 = vpack.c.b16 %v2182, %v2181
        %v2206 = vpack.c.b16 %v2184, %v2183
        %v2207 = vpack.c.b16 %v2186, %v2185
        %v2208 = vpack.c.b16 %v2188, %v2187
        %v2209 = vpack.c.b16 %v2190, %v2189
        %v2210 = vpack.c.b16 %v2192, %v2191
        %v2211 = vpack.c.b16 %v2194, %v2193
        %v2212 = vpack.c.b16 %v2196, %v2195
        %v2213 = vpack.c.b16 %v2198, %v2197
        %v2214 = vpack.c.b16 %v2200, %v2199
        %v2215 = vpack.c.b16 %v2202, %v2201
        %v2216 = vpack.c.b16 %v2204, %v2203
        %v2230 = vsel %vm1186, %v2038, 0
        %v2233 = vsel %vm1186, %v2041, 0
        %v2236 = vsel %vm1186, %v2044, 0
        %v2239 = vsel %vm1186, %v2047, 0
        %v2242 = vsel %vm1186, %v2050, 0
        %v2245 = vsel %vm1186, %v2053, 0
        %v2248 = vsel %vm1186, %v2056, 0
        %v2251 = vsel %vm1186, %v2059, 0
        %v2254 = vsel %vm1186, %v2062, 0
        %v2257 = vsel %vm1186, %v2065, 0
        %v2260 = vsel %vm1186, %v2068, 0
        %v2263 = vsel %vm1186, %v2071, 0
        %v2266 = vsel %vm1186, %v2074, 0
        %v2269 = vsel %vm1186, %v2077, 0
        %v2272 = vsel %vm1186, %v2080, 0
        %v2275 = vsel %vm1186, %v2083, 0
        %2277 = vmatprep.subr.bf16.mxu0 0
        %2278 = vmatpush1.bf16.msra.mxu0 %v2205
        %2279 = vmatprep.subr.bf16.mxu0 0
        %2280 = vmatpush1.bf16.msra.mxu0 %v2206
        %2281 = vmatprep.subr.bf16.mxu0 0
        %2282 = vmatpush1.bf16.msra.mxu0 %v2207
        %2283 = vmatprep.subr.bf16.mxu0 0
        %2284 = vmatpush1.bf16.msra.mxu0 %v2208
        %2285 = vmatprep.subr.bf16.mxu0 0
        %2286 = vmatpush1.bf16.msra.mxu0 %v2209
        %2287 = vmatprep.subr.bf16.mxu0 0
        %2288 = vmatpush1.bf16.msra.mxu0 %v2210
        %2289 = vmatprep.subr.bf16.mxu0 0
        %2290 = vmatpush1.bf16.msra.mxu0 %v2211
        %2291 = vmatprep.subr.bf16.mxu0 0
        %2292 = vmatpush1.bf16.msra.mxu0 %v2212
        %2293 = vmatprep.subr.bf16.mxu0 0
        %2294 = vmatpush1.bf16.msra.mxu0 %v2213
        %2295 = vmatprep.subr.bf16.mxu0 0
        %2296 = vmatpush1.bf16.msra.mxu0 %v2214
        %2297 = vmatprep.subr.bf16.mxu0 0
        %2298 = vmatpush1.bf16.msra.mxu0 %v2215
        %2299 = vmatprep.subr.bf16.mxu0 0
        %2300 = vmatpush1.bf16.msra.mxu0 %v2216
        %2301 = vmatprep.subr.bf16.mxu0 0
        %2302 = vmatpush1.bf16.msra.mxu0 0
        %2303 = vmatprep.subr.bf16.mxu0 0
        %2304 = vmatpush1.bf16.msra.mxu0 0
        %2305 = vmatprep.subr.bf16.mxu0 0
        %2306 = vmatpush1.bf16.msra.mxu0 0
        %2307 = vmatprep.subr.bf16.mxu0 0
        %2308 = vmatpush1.bf16.msra.mxu0 0
        %2309 = vmatprep.mubr.bf16.mxu0 %v2230
        %2310 = vmatmul.mubr.bf16.gmra.mrb[0].mxu0 %v2085
        %v2311 = vpop.f32.mrb[0].mxu0
        %v2312 = vadd.f32 0.0, %v2311
        %v2313 = vpop.f32.mrb[0].mxu0
        %v2314 = vpop.f32.mrb[0].mxu0
        %v2315 = vadd.f32 0.0, %v2314
        %v2316 = vpop.f32.mrb[0].mxu0
        %2317 = vmatprep.mubr.bf16.mxu0 %v2233
        %2318 = vmatmul.mubr.bf16.gmra.mrb[0].mxu0 %v2088
        %v2319 = vpop.f32.mrb[0].mxu0
        %v2320 = vadd.f32 0.0, %v2319
        %v2321 = vpop.f32.mrb[0].mxu0
        %v2322 = vpop.f32.mrb[0].mxu0
        %v2323 = vadd.f32 0.0, %v2322
        %v2324 = vpop.f32.mrb[0].mxu0
        %2325 = vmatprep.mubr.bf16.mxu0 %v2236
        %2326 = vmatmul.mubr.bf16.gmra.mrb[0].mxu0 %v2091
        %v2327 = vpop.f32.mrb[0].mxu0
        %v2328 = vadd.f32 0.0, %v2327
        %v2329 = vpop.f32.mrb[0].mxu0
        %v2330 = vpop.f32.mrb[0].mxu0
        %v2331 = vadd.f32 0.0, %v2330
        %v2332 = vpop.f32.mrb[0].mxu0
        %2333 = vmatprep.mubr.bf16.mxu0 %v2239
        %2334 = vmatmul.mubr.bf16.gmra.mrb[0].mxu0 %v2094
        %v2335 = vpop.f32.mrb[0].mxu0
        %v2336 = vadd.f32 0.0, %v2335
        %v2337 = vpop.f32.mrb[0].mxu0
        %v2338 = vpop.f32.mrb[0].mxu0
        %v2339 = vadd.f32 0.0, %v2338
        %v2340 = vpop.f32.mrb[0].mxu0
        %2341 = vmatprep.mubr.bf16.mxu0 %v2242
        %2342 = vmatmul.mubr.bf16.gmra.mrb[0].mxu0 %v2097
        %v2343 = vpop.f32.mrb[0].mxu0
        %v2344 = vadd.f32 0.0, %v2343
        %v2345 = vpop.f32.mrb[0].mxu0
        %v2346 = vpop.f32.mrb[0].mxu0
        %v2347 = vadd.f32 0.0, %v2346
        %v2348 = vpop.f32.mrb[0].mxu0
        %2349 = vmatprep.mubr.bf16.mxu0 %v2245
        %2350 = vmatmul.mubr.bf16.gmra.mrb[0].mxu0 %v2100
        %v2351 = vpop.f32.mrb[0].mxu0
        %v2352 = vadd.f32 0.0, %v2351
        %v2353 = vpop.f32.mrb[0].mxu0
        %v2354 = vpop.f32.mrb[0].mxu0
        %v2355 = vadd.f32 0.0, %v2354
        %v2356 = vpop.f32.mrb[0].mxu0
        %2357 = vmatprep.mubr.bf16.mxu0 %v2248
        %2358 = vmatmul.mubr.bf16.gmra.mrb[0].mxu0 %v2103
        %v2359 = vpop.f32.mrb[0].mxu0
        %v2360 = vadd.f32 0.0, %v2359
        %v2361 = vpop.f32.mrb[0].mxu0
        %v2362 = vpop.f32.mrb[0].mxu0
        %v2363 = vadd.f32 0.0, %v2362
        %v2364 = vpop.f32.mrb[0].mxu0
        %2365 = vmatprep.mubr.bf16.mxu0 %v2251
        %2366 = vmatmul.mubr.bf16.gmra.mrb[0].mxu0 %v2106
        %v2367 = vpop.f32.mrb[0].mxu0
        %v2368 = vadd.f32 0.0, %v2367
        %v2369 = vpop.f32.mrb[0].mxu0
        %v2370 = vpop.f32.mrb[0].mxu0
        %v2371 = vadd.f32 0.0, %v2370
        %v2372 = vpop.f32.mrb[0].mxu0
        %2373 = vmatprep.mubr.bf16.mxu0 %v2254
        %2374 = vmatmul.mubr.bf16.gmra.mrb[0].mxu0 %v2109
        %v2375 = vpop.f32.mrb[0].mxu0
        %v2376 = vadd.f32 0.0, %v2375
        %v2377 = vpop.f32.mrb[0].mxu0
        %v2378 = vpop.f32.mrb[0].mxu0
        %v2379 = vadd.f32 0.0, %v2378
        %v2380 = vpop.f32.mrb[0].mxu0
        %2381 = vmatprep.mubr.bf16.mxu0 %v2257
        %2382 = vmatmul.mubr.bf16.gmra.mrb[0].mxu0 %v2112
        %v2383 = vpop.f32.mrb[0].mxu0
        %v2384 = vadd.f32 0.0, %v2383
        %v2385 = vpop.f32.mrb[0].mxu0
        %v2386 = vpop.f32.mrb[0].mxu0
        %v2387 = vadd.f32 0.0, %v2386
        %v2388 = vpop.f32.mrb[0].mxu0
        %2389 = vmatprep.mubr.bf16.mxu0 %v2260
        %2390 = vmatmul.mubr.bf16.gmra.mrb[0].mxu0 %v2115
        %v2391 = vpop.f32.mrb[0].mxu0
        %v2392 = vadd.f32 0.0, %v2391
        %v2393 = vpop.f32.mrb[0].mxu0
        %v2394 = vpop.f32.mrb[0].mxu0
        %v2395 = vadd.f32 0.0, %v2394
        %v2396 = vpop.f32.mrb[0].mxu0
        %2397 = vmatprep.mubr.bf16.mxu0 %v2263
        %2398 = vmatmul.mubr.bf16.gmra.mrb[0].mxu0 %v2118
        %v2399 = vpop.f32.mrb[0].mxu0
        %v2400 = vadd.f32 0.0, %v2399
        %v2401 = vpop.f32.mrb[0].mxu0
        %v2402 = vpop.f32.mrb[0].mxu0
        %v2403 = vadd.f32 0.0, %v2402
        %v2404 = vpop.f32.mrb[0].mxu0
        %2405 = vmatprep.mubr.bf16.mxu0 %v2266
        %2406 = vmatmul.mubr.bf16.gmra.mrb[0].mxu0 %v2121
        %v2407 = vpop.f32.mrb[0].mxu0
        %v2408 = vadd.f32 0.0, %v2407
        %v2409 = vpop.f32.mrb[0].mxu0
        %v2410 = vpop.f32.mrb[0].mxu0
        %v2411 = vadd.f32 0.0, %v2410
        %v2412 = vpop.f32.mrb[0].mxu0
        %2413 = vmatprep.mubr.bf16.mxu0 %v2269
        %2414 = vmatmul.mubr.bf16.gmra.mrb[0].mxu0 %v2124
        %v2415 = vpop.f32.mrb[0].mxu0
        %v2416 = vadd.f32 0.0, %v2415
        %v2417 = vpop.f32.mrb[0].mxu0
        %v2418 = vpop.f32.mrb[0].mxu0
        %v2419 = vadd.f32 0.0, %v2418
        %v2420 = vpop.f32.mrb[0].mxu0
        %2421 = vmatprep.mubr.bf16.mxu0 %v2272
        %2422 = vmatmul.mubr.bf16.gmra.mrb[0].mxu0 %v2127
        %v2423 = vpop.f32.mrb[0].mxu0
        %v2424 = vadd.f32 0.0, %v2423
        %v2425 = vpop.f32.mrb[0].mxu0
        %v2426 = vpop.f32.mrb[0].mxu0
        %v2427 = vadd.f32 0.0, %v2426
        %v2428 = vpop.f32.mrb[0].mxu0
        %2429 = vmatprep.mubr.bf16.mxu0 %v2275
        %2430 = vmatmul.mubr.bf16.gmra.mrb[0].mxu0 %v2130
        %v2431 = vpop.f32.mrb[0].mxu0
        %v2432 = vadd.f32 0.0, %v2431
        %v2433 = vpop.f32.mrb[0].mxu0
        %v2434 = vpop.f32.mrb[0].mxu0
        %v2435 = vadd.f32 0.0, %v2434
        %v2436 = vpop.f32.mrb[0].mxu0
        %2437 = vdwg.mxu0
        %v2438 = vld [vmem:[#allocation3] sm:$0xff]
        %v2439 = vld [vmem:[#allocation3 + $0x8] sm:$0xff]
        %v2440 = vld [vmem:[#allocation3 + $0x10] sm:$0xff]
        %v2441 = vld [vmem:[#allocation3 + $0x18] sm:$0xff]
        %v2442 = vld [vmem:[#allocation3 + $0x20] sm:$0xff]
        %v2443 = vld [vmem:[#allocation3 + $0x28] sm:$0xff]
        %v2444 = vld [vmem:[#allocation3 + $0x30] sm:$0xff]
        %v2445 = vld [vmem:[#allocation3 + $0x38] sm:$0xff]
        %v2446 = vld [vmem:[#allocation3 + $0x40] sm:$0xff]
        %v2447 = vld [vmem:[#allocation3 + $0x48] sm:$0xff]
        %v2448 = vld [vmem:[#allocation3 + $0x50] sm:$0xff]
        %v2449 = vld [vmem:[#allocation3 + $0x58] sm:$0xff]
        %v2450 = vld [vmem:[#allocation3 + $0x60] sm:$0xff]
        %v2451 = vld [vmem:[#allocation3 + $0x68] sm:$0xff]
        %v2452 = vld [vmem:[#allocation3 + $0x70] sm:$0xff]
        %v2453 = vld [vmem:[#allocation3 + $0x78] sm:$0xff]
        %v2454 = vld [vmem:[#allocation3 + $0x80] sm:$0xff]
        %v2455 = vld [vmem:[#allocation3 + $0x88] sm:$0xff]
        %v2456 = vld [vmem:[#allocation3 + $0x90] sm:$0xff]
        %v2457 = vld [vmem:[#allocation3 + $0x98] sm:$0xff]
        %v2458 = vld [vmem:[#allocation3 + $0xa0] sm:$0xff]
        %v2459 = vld [vmem:[#allocation3 + $0xa8] sm:$0xff]
        %v2460 = vld [vmem:[#allocation3 + $0xb0] sm:$0xff]
        %v2461 = vld [vmem:[#allocation3 + $0xb8] sm:$0xff]
        %v2462 = vld [vmem:[#allocation3 + $0xc0] sm:$0xff]
        %v2463 = vld [vmem:[#allocation3 + $0xc8] sm:$0xff]
        %v2464 = vld [vmem:[#allocation3 + $0xd0] sm:$0xff]
        %v2465 = vld [vmem:[#allocation3 + $0xd8] sm:$0xff]
        %v2466 = vld [vmem:[#allocation3 + $0xe0] sm:$0xff]
        %v2467 = vld [vmem:[#allocation3 + $0xe8] sm:$0xff]
        %v2468 = vld [vmem:[#allocation3 + $0xf0] sm:$0xff]
        %v2469 = vld [vmem:[#allocation3 + $0xf8] sm:$0xff]
        %v2470 = vadd.f32 %v2438, %v2312
        %v2471 = vadd.f32 %v2439, %v2315
        %v2472 = vadd.f32 %v2440, %v2320
        %v2473 = vadd.f32 %v2441, %v2323
        %v2474 = vadd.f32 %v2442, %v2328
        %v2475 = vadd.f32 %v2443, %v2331
        %v2476 = vadd.f32 %v2444, %v2336
        %v2477 = vadd.f32 %v2445, %v2339
        %v2478 = vadd.f32 %v2446, %v2344
        %v2479 = vadd.f32 %v2447, %v2347
        %v2480 = vadd.f32 %v2448, %v2352
        %v2481 = vadd.f32 %v2449, %v2355
        %v2482 = vadd.f32 %v2450, %v2360
        %v2483 = vadd.f32 %v2451, %v2363
        %v2484 = vadd.f32 %v2452, %v2368
        %v2485 = vadd.f32 %v2453, %v2371
        %v2486 = vadd.f32 %v2454, %v2376
        %v2487 = vadd.f32 %v2455, %v2379
        %v2488 = vadd.f32 %v2456, %v2384
        %v2489 = vadd.f32 %v2457, %v2387
        %v2490 = vadd.f32 %v2458, %v2392
        %v2491 = vadd.f32 %v2459, %v2395
        %v2492 = vadd.f32 %v2460, %v2400
        %v2493 = vadd.f32 %v2461, %v2403
        %v2494 = vadd.f32 %v2462, %v2408
        %v2495 = vadd.f32 %v2463, %v2411
        %v2496 = vadd.f32 %v2464, %v2416
        %v2497 = vadd.f32 %v2465, %v2419
        %v2498 = vadd.f32 %v2466, %v2424
        %v2499 = vadd.f32 %v2467, %v2427
        %v2500 = vadd.f32 %v2468, %v2432
        %v2501 = vadd.f32 %v2469, %v2435
        %2502 = vst.msk [vmem:[#allocation3] sm:$0xff] %vm1186, %v2470
        %2503 = vst.msk [vmem:[#allocation3 + $0x8] sm:$0xff] %vm1186, %v2471
        %2504 = vst.msk [vmem:[#allocation3 + $0x10] sm:$0xff] %vm1186, %v2472
        %2505 = vst.msk [vmem:[#allocation3 + $0x18] sm:$0xff] %vm1186, %v2473
        %2506 = vst.msk [vmem:[#allocation3 + $0x20] sm:$0xff] %vm1186, %v2474
        %2507 = vst.msk [vmem:[#allocation3 + $0x28] sm:$0xff] %vm1186, %v2475
        %2508 = vst.msk [vmem:[#allocation3 + $0x30] sm:$0xff] %vm1186, %v2476
        %2509 = vst.msk [vmem:[#allocation3 + $0x38] sm:$0xff] %vm1186, %v2477
        %2510 = vst.msk [vmem:[#allocation3 + $0x40] sm:$0xff] %vm1186, %v2478
        %2511 = vst.msk [vmem:[#allocation3 + $0x48] sm:$0xff] %vm1186, %v2479
        %2512 = vst.msk [vmem:[#allocation3 + $0x50] sm:$0xff] %vm1186, %v2480
        %2513 = vst.msk [vmem:[#allocation3 + $0x58] sm:$0xff] %vm1186, %v2481
        %2514 = vst.msk [vmem:[#allocation3 + $0x60] sm:$0xff] %vm1186, %v2482
        %2515 = vst.msk [vmem:[#allocation3 + $0x68] sm:$0xff] %vm1186, %v2483
        %2516 = vst.msk [vmem:[#allocation3 + $0x70] sm:$0xff] %vm1186, %v2484
        %2517 = vst.msk [vmem:[#allocation3 + $0x78] sm:$0xff] %vm1186, %v2485
        %2518 = vst.msk [vmem:[#allocation3 + $0x80] sm:$0xff] %vm1186, %v2486
        %2519 = vst.msk [vmem:[#allocation3 + $0x88] sm:$0xff] %vm1186, %v2487
        %2520 = vst.msk [vmem:[#allocation3 + $0x90] sm:$0xff] %vm1186, %v2488
        %2521 = vst.msk [vmem:[#allocation3 + $0x98] sm:$0xff] %vm1186, %v2489
        %2522 = vst.msk [vmem:[#allocation3 + $0xa0] sm:$0xff] %vm1186, %v2490
        %2523 = vst.msk [vmem:[#allocation3 + $0xa8] sm:$0xff] %vm1186, %v2491
        %2524 = vst.msk [vmem:[#allocation3 + $0xb0] sm:$0xff] %vm1186, %v2492
        %2525 = vst.msk [vmem:[#allocation3 + $0xb8] sm:$0xff] %vm1186, %v2493
        %2526 = vst.msk [vmem:[#allocation3 + $0xc0] sm:$0xff] %vm1186, %v2494
        %2527 = vst.msk [vmem:[#allocation3 + $0xc8] sm:$0xff] %vm1186, %v2495
        %2528 = vst.msk [vmem:[#allocation3 + $0xd0] sm:$0xff] %vm1186, %v2496
        %2529 = vst.msk [vmem:[#allocation3 + $0xd8] sm:$0xff] %vm1186, %v2497
        %2530 = vst.msk [vmem:[#allocation3 + $0xe0] sm:$0xff] %vm1186, %v2498
        %2531 = vst.msk [vmem:[#allocation3 + $0xe8] sm:$0xff] %vm1186, %v2499
        %2532 = vst.msk [vmem:[#allocation3 + $0xf0] sm:$0xff] %vm1186, %v2500
        %2533 = vst.msk [vmem:[#allocation3 + $0xf8] sm:$0xff] %vm1186, %v2501
        %s2534 = scalar_lea.vmem [#allocation2], 24
        %v2535 = vld [vmem:[%s2534] sm:$0xf]
        %v2536 = vld [vmem:[%s2534 + $0x4] sm:$0xf]
        %v2537 = vld [vmem:[%s2534 + $0xc] sm:$0xf]
        %v2538 = vld [vmem:[%s2534 + $0x10] sm:$0xf]
        %v2539 = vld [vmem:[%s2534 + $0x18] sm:$0xf]
        %v2540 = vld [vmem:[%s2534 + $0x1c] sm:$0xf]
        %v2541 = vld [vmem:[%s2534 + $0x24] sm:$0xf]
        %v2542 = vld [vmem:[%s2534 + $0x28] sm:$0xf]
        %v2543 = vld [vmem:[%s2534 + $0x30] sm:$0xf]
        %v2544 = vld [vmem:[%s2534 + $0x34] sm:$0xf]
        %v2545 = vld [vmem:[%s2534 + $0x3c] sm:$0xf]
        %v2546 = vld [vmem:[%s2534 + $0x40] sm:$0xf]
        %v2547 = vld [vmem:[%s2534 + $0x48] sm:$0xf]
        %v2548 = vld [vmem:[%s2534 + $0x4c] sm:$0xf]
        %v2549 = vld [vmem:[%s2534 + $0x54] sm:$0xf]
        %v2550 = vld [vmem:[%s2534 + $0x58] sm:$0xf]
        %v2551 = vld [vmem:[%s2534 + $0x60] sm:$0xf]
        %v2552 = vld [vmem:[%s2534 + $0x64] sm:$0xf]
        %v2553 = vld [vmem:[%s2534 + $0x6c] sm:$0xf]
        %v2554 = vld [vmem:[%s2534 + $0x70] sm:$0xf]
        %v2555 = vld [vmem:[%s2534 + $0x78] sm:$0xf]
        %v2556 = vld [vmem:[%s2534 + $0x7c] sm:$0xf]
        %v2557 = vld [vmem:[%s2534 + $0x84] sm:$0xf]
        %v2558 = vld [vmem:[%s2534 + $0x88] sm:$0xf]
        %v2559 = vld [vmem:[%s2534 + $0x90] sm:$0xf]
        %v2560 = vld [vmem:[%s2534 + $0x94] sm:$0xf]
        %v2561 = vld [vmem:[%s2534 + $0x9c] sm:$0xf]
        %v2562 = vld [vmem:[%s2534 + $0xa0] sm:$0xf]
        %v2563 = vld [vmem:[%s2534 + $0xa8] sm:$0xf]
        %v2564 = vld [vmem:[%s2534 + $0xac] sm:$0xf]
        %v2565 = vld [vmem:[%s2534 + $0xb4] sm:$0xf]
        %v2566 = vld [vmem:[%s2534 + $0xb8] sm:$0xf]
        %v2567 = vld [vmem:[%s2534 + $0x8] sm:$0x1]
        %v2568 = vld [vmem:[%s2534 + $0x14] sm:$0x1]
        %v2569 = vld [vmem:[%s2534 + $0x20] sm:$0x1]
        %v2570 = vld [vmem:[%s2534 + $0x2c] sm:$0x1]
        %v2571 = vld [vmem:[%s2534 + $0x38] sm:$0x1]
        %v2572 = vld [vmem:[%s2534 + $0x44] sm:$0x1]
        %v2573 = vld [vmem:[%s2534 + $0x50] sm:$0x1]
        %v2574 = vld [vmem:[%s2534 + $0x5c] sm:$0x1]
        %v2575 = vld [vmem:[%s2534 + $0x68] sm:$0x1]
        %v2576 = vld [vmem:[%s2534 + $0x74] sm:$0x1]
        %v2577 = vld [vmem:[%s2534 + $0x80] sm:$0x1]
        %v2578 = vld [vmem:[%s2534 + $0x8c] sm:$0x1]
        %v2579 = vld [vmem:[%s2534 + $0x98] sm:$0x1]
        %v2580 = vld [vmem:[%s2534 + $0xa4] sm:$0x1]
        %v2581 = vld [vmem:[%s2534 + $0xb0] sm:$0x1]
        %v2582 = vld [vmem:[%s2534 + $0xbc] sm:$0x1]
        %v2583 = vld [vmem:[%s2534] sm:$0xe]
        %v2584 = vld [vmem:[%s2534 + $0xc] sm:$0xe]
        %v2585 = vld [vmem:[%s2534 + $0x18] sm:$0xe]
        %v2586 = vld [vmem:[%s2534 + $0x24] sm:$0xe]
        %v2587 = vld [vmem:[%s2534 + $0x30] sm:$0xe]
        %v2588 = vld [vmem:[%s2534 + $0x3c] sm:$0xe]
        %v2589 = vld [vmem:[%s2534 + $0x48] sm:$0xe]
        %v2590 = vld [vmem:[%s2534 + $0x54] sm:$0xe]
        %v2591 = vld [vmem:[%s2534 + $0x60] sm:$0xe]
        %v2592 = vld [vmem:[%s2534 + $0x6c] sm:$0xe]
        %v2593 = vld [vmem:[%s2534 + $0x78] sm:$0xe]
        %v2594 = vld [vmem:[%s2534 + $0x84] sm:$0xe]
        %v2595 = vld [vmem:[%s2534 + $0x90] sm:$0xe]
        %v2596 = vld [vmem:[%s2534 + $0x9c] sm:$0xe]
        %v2597 = vld [vmem:[%s2534 + $0xa8] sm:$0xe]
        %v2598 = vld [vmem:[%s2534 + $0xb4] sm:$0xe]
        %v2631 = vunpack.c.l.b16 %v2535
        %v2632 = vunpack.c.l.b16 %v2536
        %v2633 = vunpack.c.l.b16 %v2537
        %v2634 = vunpack.c.l.b16 %v2538
        %v2635 = vunpack.c.l.b16 %v2539
        %v2636 = vunpack.c.l.b16 %v2540
        %v2637 = vunpack.c.l.b16 %v2541
        %v2638 = vunpack.c.l.b16 %v2542
        %v2639 = vunpack.c.l.b16 %v2543
        %v2640 = vunpack.c.l.b16 %v2544
        %v2641 = vunpack.c.l.b16 %v2545
        %v2642 = vunpack.c.l.b16 %v2546
        %v2643 = vunpack.c.l.b16 %v2547
        %v2644 = vunpack.c.l.b16 %v2548
        %v2645 = vunpack.c.l.b16 %v2549
        %v2646 = vunpack.c.l.b16 %v2550
        %v2647 = vunpack.c.l.b16 %v2551
        %v2648 = vunpack.c.l.b16 %v2552
        %v2649 = vunpack.c.l.b16 %v2553
        %v2650 = vunpack.c.l.b16 %v2554
        %v2651 = vunpack.c.l.b16 %v2555
        %v2652 = vunpack.c.l.b16 %v2556
        %v2653 = vunpack.c.l.b16 %v2557
        %v2654 = vunpack.c.l.b16 %v2558
        %v2655 = vunpack.c.l.b16 %v2559
        %v2656 = vunpack.c.l.b16 %v2560
        %v2657 = vunpack.c.l.b16 %v2561
        %v2658 = vunpack.c.l.b16 %v2562
        %v2659 = vunpack.c.l.b16 %v2563
        %v2660 = vunpack.c.l.b16 %v2564
        %v2661 = vunpack.c.l.b16 %v2565
        %v2662 = vunpack.c.l.b16 %v2566
        %v2663 = vpack.c.b16 %v2632, %v2631
        %v2664 = vpack.c.b16 %v2634, %v2633
        %v2665 = vpack.c.b16 %v2636, %v2635
        %v2666 = vpack.c.b16 %v2638, %v2637
        %v2667 = vpack.c.b16 %v2640, %v2639
        %v2668 = vpack.c.b16 %v2642, %v2641
        %v2669 = vpack.c.b16 %v2644, %v2643
        %v2670 = vpack.c.b16 %v2646, %v2645
        %v2671 = vpack.c.b16 %v2648, %v2647
        %v2672 = vpack.c.b16 %v2650, %v2649
        %v2673 = vpack.c.b16 %v2652, %v2651
        %v2674 = vpack.c.b16 %v2654, %v2653
        %v2675 = vpack.c.b16 %v2656, %v2655
        %v2676 = vpack.c.b16 %v2658, %v2657
        %v2677 = vpack.c.b16 %v2660, %v2659
        %v2678 = vpack.c.b16 %v2662, %v2661
        %v2695 = vunpack.c.l.b16 %v2567
        %v2696 = vunpack.c.l.b16 %v2568
        %v2697 = vunpack.c.l.b16 %v2569
        %v2698 = vunpack.c.l.b16 %v2570
        %v2699 = vunpack.c.l.b16 %v2571
        %v2700 = vunpack.c.l.b16 %v2572
        %v2701 = vunpack.c.l.b16 %v2573
        %v2702 = vunpack.c.l.b16 %v2574
        %v2703 = vunpack.c.l.b16 %v2575
        %v2704 = vunpack.c.l.b16 %v2576
        %v2705 = vunpack.c.l.b16 %v2577
        %v2706 = vunpack.c.l.b16 %v2578
        %v2707 = vunpack.c.l.b16 %v2579
        %v2708 = vunpack.c.l.b16 %v2580
        %v2709 = vunpack.c.l.b16 %v2581
        %v2710 = vunpack.c.l.b16 %v2582
        %v2711 = vpack.c.b16 %v2695, %v2695
        %v2712 = vpack.c.b16 %v2696, %v2696
        %v2713 = vpack.c.b16 %v2697, %v2697
        %v2714 = vpack.c.b16 %v2698, %v2698
        %v2715 = vpack.c.b16 %v2699, %v2699
        %v2716 = vpack.c.b16 %v2700, %v2700
        %v2717 = vpack.c.b16 %v2701, %v2701
        %v2718 = vpack.c.b16 %v2702, %v2702
        %v2719 = vpack.c.b16 %v2703, %v2703
        %v2720 = vpack.c.b16 %v2704, %v2704
        %v2721 = vpack.c.b16 %v2705, %v2705
        %v2722 = vpack.c.b16 %v2706, %v2706
        %v2723 = vpack.c.b16 %v2707, %v2707
        %v2724 = vpack.c.b16 %v2708, %v2708
        %v2725 = vpack.c.b16 %v2709, %v2709
        %v2726 = vpack.c.b16 %v2710, %v2710
        %v2728 = vshrl.u32 %v2663, 16
        %v2730 = vshll.u32 %v2663, 16
        %v2732 = vrot.slane %v2730, 1
        %v2733 = vor.u32 %v2728, %v2732
        %v2735 = vshll.u32 %v2711, 16
        %v2737 = vrot.slane %v2735, 1
        %v2738 = vsel %vm864, %v2733, %v2737
        %v2740 = vshrl.u32 %v2664, 16
        %v2742 = vshll.u32 %v2664, 16
        %v2744 = vrot.slane %v2742, 1
        %v2745 = vor.u32 %v2740, %v2744
        %v2747 = vshll.u32 %v2712, 16
        %v2749 = vrot.slane %v2747, 1
        %v2750 = vsel %vm864, %v2745, %v2749
        %v2752 = vshrl.u32 %v2665, 16
        %v2754 = vshll.u32 %v2665, 16
        %v2756 = vrot.slane %v2754, 1
        %v2757 = vor.u32 %v2752, %v2756
        %v2759 = vshll.u32 %v2713, 16
        %v2761 = vrot.slane %v2759, 1
        %v2762 = vsel %vm864, %v2757, %v2761
        %v2764 = vshrl.u32 %v2666, 16
        %v2766 = vshll.u32 %v2666, 16
        %v2768 = vrot.slane %v2766, 1
        %v2769 = vor.u32 %v2764, %v2768
        %v2771 = vshll.u32 %v2714, 16
        %v2773 = vrot.slane %v2771, 1
        %v2774 = vsel %vm864, %v2769, %v2773
        %v2776 = vshrl.u32 %v2667, 16
        %v2778 = vshll.u32 %v2667, 16
        %v2780 = vrot.slane %v2778, 1
        %v2781 = vor.u32 %v2776, %v2780
        %v2783 = vshll.u32 %v2715, 16
        %v2785 = vrot.slane %v2783, 1
        %v2786 = vsel %vm864, %v2781, %v2785
        %v2788 = vshrl.u32 %v2668, 16
        %v2790 = vshll.u32 %v2668, 16
        %v2792 = vrot.slane %v2790, 1
        %v2793 = vor.u32 %v2788, %v2792
        %v2795 = vshll.u32 %v2716, 16
        %v2797 = vrot.slane %v2795, 1
        %v2798 = vsel %vm864, %v2793, %v2797
        %v2800 = vshrl.u32 %v2669, 16
        %v2802 = vshll.u32 %v2669, 16
        %v2804 = vrot.slane %v2802, 1
        %v2805 = vor.u32 %v2800, %v2804
        %v2807 = vshll.u32 %v2717, 16
        %v2809 = vrot.slane %v2807, 1
        %v2810 = vsel %vm864, %v2805, %v2809
        %v2812 = vshrl.u32 %v2670, 16
        %v2814 = vshll.u32 %v2670, 16
        %v2816 = vrot.slane %v2814, 1
        %v2817 = vor.u32 %v2812, %v2816
        %v2819 = vshll.u32 %v2718, 16
        %v2821 = vrot.slane %v2819, 1
        %v2822 = vsel %vm864, %v2817, %v2821
        %v2824 = vshrl.u32 %v2671, 16
        %v2826 = vshll.u32 %v2671, 16
        %v2828 = vrot.slane %v2826, 1
        %v2829 = vor.u32 %v2824, %v2828
        %v2831 = vshll.u32 %v2719, 16
        %v2833 = vrot.slane %v2831, 1
        %v2834 = vsel %vm864, %v2829, %v2833
        %v2836 = vshrl.u32 %v2672, 16
        %v2838 = vshll.u32 %v2672, 16
        %v2840 = vrot.slane %v2838, 1
        %v2841 = vor.u32 %v2836, %v2840
        %v2843 = vshll.u32 %v2720, 16
        %v2845 = vrot.slane %v2843, 1
        %v2846 = vsel %vm864, %v2841, %v2845
        %v2848 = vshrl.u32 %v2673, 16
        %v2850 = vshll.u32 %v2673, 16
        %v2852 = vrot.slane %v2850, 1
        %v2853 = vor.u32 %v2848, %v2852
        %v2855 = vshll.u32 %v2721, 16
        %v2857 = vrot.slane %v2855, 1
        %v2858 = vsel %vm864, %v2853, %v2857
        %v2860 = vshrl.u32 %v2674, 16
        %v2862 = vshll.u32 %v2674, 16
        %v2864 = vrot.slane %v2862, 1
        %v2865 = vor.u32 %v2860, %v2864
        %v2867 = vshll.u32 %v2722, 16
        %v2869 = vrot.slane %v2867, 1
        %v2870 = vsel %vm864, %v2865, %v2869
        %v2872 = vshrl.u32 %v2675, 16
        %v2874 = vshll.u32 %v2675, 16
        %v2876 = vrot.slane %v2874, 1
        %v2877 = vor.u32 %v2872, %v2876
        %v2879 = vshll.u32 %v2723, 16
        %v2881 = vrot.slane %v2879, 1
        %v2882 = vsel %vm864, %v2877, %v2881
        %v2884 = vshrl.u32 %v2676, 16
        %v2886 = vshll.u32 %v2676, 16
        %v2888 = vrot.slane %v2886, 1
        %v2889 = vor.u32 %v2884, %v2888
        %v2891 = vshll.u32 %v2724, 16
        %v2893 = vrot.slane %v2891, 1
        %v2894 = vsel %vm864, %v2889, %v2893
        %v2896 = vshrl.u32 %v2677, 16
        %v2898 = vshll.u32 %v2677, 16
        %v2900 = vrot.slane %v2898, 1
        %v2901 = vor.u32 %v2896, %v2900
        %v2903 = vshll.u32 %v2725, 16
        %v2905 = vrot.slane %v2903, 1
        %v2906 = vsel %vm864, %v2901, %v2905
        %v2908 = vshrl.u32 %v2678, 16
        %v2910 = vshll.u32 %v2678, 16
        %v2912 = vrot.slane %v2910, 1
        %v2913 = vor.u32 %v2908, %v2912
        %v2915 = vshll.u32 %v2726, 16
        %v2917 = vrot.slane %v2915, 1
        %v2918 = vsel %vm864, %v2913, %v2917
        %2919 = vrot.lane.b32.xlu0 %v2738, 64
        %v2920 = vpop.permute.xlu0 %2919
        %2921 = vrot.lane.b32.xlu0 %v2750, 64
        %v2922 = vpop.permute.xlu0 %2921
        %2923 = vrot.lane.b32.xlu0 %v2762, 64
        %v2924 = vpop.permute.xlu0 %2923
        %2925 = vrot.lane.b32.xlu0 %v2774, 64
        %v2926 = vpop.permute.xlu0 %2925
        %2927 = vrot.lane.b32.xlu0 %v2786, 64
        %v2928 = vpop.permute.xlu0 %2927
        %2929 = vrot.lane.b32.xlu0 %v2798, 64
        %v2930 = vpop.permute.xlu0 %2929
        %2931 = vrot.lane.b32.xlu0 %v2810, 64
        %v2932 = vpop.permute.xlu0 %2931
        %2933 = vrot.lane.b32.xlu0 %v2822, 64
        %v2934 = vpop.permute.xlu0 %2933
        %2935 = vrot.lane.b32.xlu0 %v2834, 64
        %v2936 = vpop.permute.xlu0 %2935
        %2937 = vrot.lane.b32.xlu0 %v2846, 64
        %v2938 = vpop.permute.xlu0 %2937
        %2939 = vrot.lane.b32.xlu0 %v2858, 64
        %v2940 = vpop.permute.xlu0 %2939
        %2941 = vrot.lane.b32.xlu0 %v2870, 64
        %v2942 = vpop.permute.xlu0 %2941
        %2943 = vrot.lane.b32.xlu0 %v2882, 64
        %v2944 = vpop.permute.xlu0 %2943
        %2945 = vrot.lane.b32.xlu0 %v2894, 64
        %v2946 = vpop.permute.xlu0 %2945
        %2947 = vrot.lane.b32.xlu0 %v2906, 64
        %v2948 = vpop.permute.xlu0 %2947
        %2949 = vrot.lane.b32.xlu0 %v2918, 64
        %v2950 = vpop.permute.xlu0 %2949
        %v2967 = vunpack.c.l.b16 %v2583
        %v2968 = vunpack.c.l.b16 %v2584
        %v2969 = vunpack.c.l.b16 %v2585
        %v2970 = vunpack.c.l.b16 %v2586
        %v2971 = vunpack.c.l.b16 %v2587
        %v2972 = vunpack.c.l.b16 %v2588
        %v2973 = vunpack.c.l.b16 %v2589
        %v2974 = vunpack.c.l.b16 %v2590
        %v2975 = vunpack.c.l.b16 %v2591
        %v2976 = vunpack.c.l.b16 %v2592
        %v2977 = vunpack.c.l.b16 %v2593
        %v2978 = vunpack.c.l.b16 %v2594
        %v2979 = vunpack.c.l.b16 %v2595
        %v2980 = vunpack.c.l.b16 %v2596
        %v2981 = vunpack.c.l.b16 %v2597
        %v2982 = vunpack.c.l.b16 %v2598
        %v2983 = vpack.c.b16 %v2632, %v2967
        %v2984 = vpack.c.b16 %v2634, %v2968
        %v2985 = vpack.c.b16 %v2636, %v2969
        %v2986 = vpack.c.b16 %v2638, %v2970
        %v2987 = vpack.c.b16 %v2640, %v2971
        %v2988 = vpack.c.b16 %v2642, %v2972
        %v2989 = vpack.c.b16 %v2644, %v2973
        %v2990 = vpack.c.b16 %v2646, %v2974
        %v2991 = vpack.c.b16 %v2648, %v2975
        %v2992 = vpack.c.b16 %v2650, %v2976
        %v2993 = vpack.c.b16 %v2652, %v2977
        %v2994 = vpack.c.b16 %v2654, %v2978
        %v2995 = vpack.c.b16 %v2656, %v2979
        %v2996 = vpack.c.b16 %v2658, %v2980
        %v2997 = vpack.c.b16 %v2660, %v2981
        %v2998 = vpack.c.b16 %v2662, %v2982
        %v2999 = vrot.slane %v2983, 1
        %v3000 = vrot.slane %v2711, 1
        %v3001 = vsel %vm1137, %v2999, %v3000
        %v3002 = vrot.slane %v2984, 1
        %v3003 = vrot.slane %v2712, 1
        %v3004 = vsel %vm1137, %v3002, %v3003
        %v3005 = vrot.slane %v2985, 1
        %v3006 = vrot.slane %v2713, 1
        %v3007 = vsel %vm1137, %v3005, %v3006
        %v3008 = vrot.slane %v2986, 1
        %v3009 = vrot.slane %v2714, 1
        %v3010 = vsel %vm1137, %v3008, %v3009
        %v3011 = vrot.slane %v2987, 1
        %v3012 = vrot.slane %v2715, 1
        %v3013 = vsel %vm1137, %v3011, %v3012
        %v3014 = vrot.slane %v2988, 1
        %v3015 = vrot.slane %v2716, 1
        %v3016 = vsel %vm1137, %v3014, %v3015
        %v3017 = vrot.slane %v2989, 1
        %v3018 = vrot.slane %v2717, 1
        %v3019 = vsel %vm1137, %v3017, %v3018
        %v3020 = vrot.slane %v2990, 1
        %v3021 = vrot.slane %v2718, 1
        %v3022 = vsel %vm1137, %v3020, %v3021
        %v3023 = vrot.slane %v2991, 1
        %v3024 = vrot.slane %v2719, 1
        %v3025 = vsel %vm1137, %v3023, %v3024
        %v3026 = vrot.slane %v2992, 1
        %v3027 = vrot.slane %v2720, 1
        %v3028 = vsel %vm1137, %v3026, %v3027
        %v3029 = vrot.slane %v2993, 1
        %v3030 = vrot.slane %v2721, 1
        %v3031 = vsel %vm1137, %v3029, %v3030
        %v3032 = vrot.slane %v2994, 1
        %v3033 = vrot.slane %v2722, 1
        %v3034 = vsel %vm1137, %v3032, %v3033
        %v3035 = vrot.slane %v2995, 1
        %v3036 = vrot.slane %v2723, 1
        %v3037 = vsel %vm1137, %v3035, %v3036
        %v3038 = vrot.slane %v2996, 1
        %v3039 = vrot.slane %v2724, 1
        %v3040 = vsel %vm1137, %v3038, %v3039
        %v3041 = vrot.slane %v2997, 1
        %v3042 = vrot.slane %v2725, 1
        %v3043 = vsel %vm1137, %v3041, %v3042
        %v3044 = vrot.slane %v2998, 1
        %v3045 = vrot.slane %v2726, 1
        %v3046 = vsel %vm1137, %v3044, %v3045
        %v3048 = vsel %vm1186, %v2663, %v2920
        %v3051 = vsel %vm1186, %v2664, %v2922
        %v3054 = vsel %vm1186, %v2665, %v2924
        %v3057 = vsel %vm1186, %v2666, %v2926
        %v3060 = vsel %vm1186, %v2667, %v2928
        %v3063 = vsel %vm1186, %v2668, %v2930
        %v3066 = vsel %vm1186, %v2669, %v2932
        %v3069 = vsel %vm1186, %v2670, %v2934
        %v3072 = vsel %vm1186, %v2671, %v2936
        %v3075 = vsel %vm1186, %v2672, %v2938
        %v3078 = vsel %vm1186, %v2673, %v2940
        %v3081 = vsel %vm1186, %v2674, %v2942
        %v3084 = vsel %vm1186, %v2675, %v2944
        %v3087 = vsel %vm1186, %v2676, %v2946
        %v3090 = vsel %vm1186, %v2677, %v2948
        %v3093 = vsel %vm1186, %v2678, %v2950
        %s3095 = scalar_lea.vmem %s1, 192
        %v3096 = vld [vmem:[%s3095] sm:$0xf]
        %v3097 = vld [vmem:[%s3095 + $0x4] sm:$0xf]
        %v3098 = vld [vmem:[%s3095 + $0x8] sm:$0xf]
        %v3099 = vld [vmem:[%s3095 + $0xc] sm:$0xf]
        %v3100 = vld [vmem:[%s3095 + $0x10] sm:$0xf]
        %v3101 = vld [vmem:[%s3095 + $0x14] sm:$0xf]
        %v3102 = vld [vmem:[%s3095 + $0x18] sm:$0xf]
        %v3103 = vld [vmem:[%s3095 + $0x1c] sm:$0xf]
        %v3104 = vld [vmem:[%s3095 + $0x20] sm:$0xf]
        %v3105 = vld [vmem:[%s3095 + $0x24] sm:$0xf]
        %v3106 = vld [vmem:[%s3095 + $0x28] sm:$0xf]
        %v3107 = vld [vmem:[%s3095 + $0x2c] sm:$0xf]
        %v3108 = vld [vmem:[%s3095 + $0x30] sm:$0xf]
        %v3109 = vld [vmem:[%s3095 + $0x34] sm:$0xf]
        %v3110 = vld [vmem:[%s3095 + $0x38] sm:$0xf]
        %v3111 = vld [vmem:[%s3095 + $0x3c] sm:$0xf]
        %v3112 = vld [vmem:[%s3095 + $0x40] sm:$0xf]
        %v3113 = vld [vmem:[%s3095 + $0x44] sm:$0xf]
        %v3114 = vld [vmem:[%s3095 + $0x48] sm:$0xf]
        %v3115 = vld [vmem:[%s3095 + $0x4c] sm:$0xf]
        %v3116 = vld [vmem:[%s3095 + $0x50] sm:$0xf]
        %v3117 = vld [vmem:[%s3095 + $0x54] sm:$0xf]
        %v3118 = vld [vmem:[%s3095 + $0x58] sm:$0xf]
        %v3119 = vld [vmem:[%s3095 + $0x5c] sm:$0xf]
        %v3144 = vunpack.c.l.b16 %v3096
        %v3145 = vunpack.c.l.b16 %v3097
        %v3146 = vunpack.c.l.b16 %v3098
        %v3147 = vunpack.c.l.b16 %v3099
        %v3148 = vunpack.c.l.b16 %v3100
        %v3149 = vunpack.c.l.b16 %v3101
        %v3150 = vunpack.c.l.b16 %v3102
        %v3151 = vunpack.c.l.b16 %v3103
        %v3152 = vunpack.c.l.b16 %v3104
        %v3153 = vunpack.c.l.b16 %v3105
        %v3154 = vunpack.c.l.b16 %v3106
        %v3155 = vunpack.c.l.b16 %v3107
        %v3156 = vunpack.c.l.b16 %v3108
        %v3157 = vunpack.c.l.b16 %v3109
        %v3158 = vunpack.c.l.b16 %v3110
        %v3159 = vunpack.c.l.b16 %v3111
        %v3160 = vunpack.c.l.b16 %v3112
        %v3161 = vunpack.c.l.b16 %v3113
        %v3162 = vunpack.c.l.b16 %v3114
        %v3163 = vunpack.c.l.b16 %v3115
        %v3164 = vunpack.c.l.b16 %v3116
        %v3165 = vunpack.c.l.b16 %v3117
        %v3166 = vunpack.c.l.b16 %v3118
        %v3167 = vunpack.c.l.b16 %v3119
        %v3168 = vpack.c.b16 %v3145, %v3144
        %v3169 = vpack.c.b16 %v3147, %v3146
        %v3170 = vpack.c.b16 %v3149, %v3148
        %v3171 = vpack.c.b16 %v3151, %v3150
        %v3172 = vpack.c.b16 %v3153, %v3152
        %v3173 = vpack.c.b16 %v3155, %v3154
        %v3174 = vpack.c.b16 %v3157, %v3156
        %v3175 = vpack.c.b16 %v3159, %v3158
        %v3176 = vpack.c.b16 %v3161, %v3160
        %v3177 = vpack.c.b16 %v3163, %v3162
        %v3178 = vpack.c.b16 %v3165, %v3164
        %v3179 = vpack.c.b16 %v3167, %v3166
        %v3193 = vsel %vm1186, %v3001, 0
        %v3196 = vsel %vm1186, %v3004, 0
        %v3199 = vsel %vm1186, %v3007, 0
        %v3202 = vsel %vm1186, %v3010, 0
        %v3205 = vsel %vm1186, %v3013, 0
        %v3208 = vsel %vm1186, %v3016, 0
        %v3211 = vsel %vm1186, %v3019, 0
        %v3214 = vsel %vm1186, %v3022, 0
        %v3217 = vsel %vm1186, %v3025, 0
        %v3220 = vsel %vm1186, %v3028, 0
        %v3223 = vsel %vm1186, %v3031, 0
        %v3226 = vsel %vm1186, %v3034, 0
        %v3229 = vsel %vm1186, %v3037, 0
        %v3232 = vsel %vm1186, %v3040, 0
        %v3235 = vsel %vm1186, %v3043, 0
        %v3238 = vsel %vm1186, %v3046, 0
        %3240 = vmatprep.subr.bf16.mxu0 0
        %3241 = vmatpush1.bf16.msra.mxu0 %v3168
        %3242 = vmatprep.subr.bf16.mxu0 0
        %3243 = vmatpush1.bf16.msra.mxu0 %v3169
        %3244 = vmatprep.subr.bf16.mxu0 0
        %3245 = vmatpush1.bf16.msra.mxu0 %v3170
        %3246 = vmatprep.subr.bf16.mxu0 0
        %3247 = vmatpush1.bf16.msra.mxu0 %v3171
        %3248 = vmatprep.subr.bf16.mxu0 0
        %3249 = vmatpush1.bf16.msra.mxu0 %v3172
        %3250 = vmatprep.subr.bf16.mxu0 0
        %3251 = vmatpush1.bf16.msra.mxu0 %v3173
        %3252 = vmatprep.subr.bf16.mxu0 0
        %3253 = vmatpush1.bf16.msra.mxu0 %v3174
        %3254 = vmatprep.subr.bf16.mxu0 0
        %3255 = vmatpush1.bf16.msra.mxu0 %v3175
        %3256 = vmatprep.subr.bf16.mxu0 0
        %3257 = vmatpush1.bf16.msra.mxu0 %v3176
        %3258 = vmatprep.subr.bf16.mxu0 0
        %3259 = vmatpush1.bf16.msra.mxu0 %v3177
        %3260 = vmatprep.subr.bf16.mxu0 0
        %3261 = vmatpush1.bf16.msra.mxu0 %v3178
        %3262 = vmatprep.subr.bf16.mxu0 0
        %3263 = vmatpush1.bf16.msra.mxu0 %v3179
        %3264 = vmatprep.subr.bf16.mxu0 0
        %3265 = vmatpush1.bf16.msra.mxu0 0
        %3266 = vmatprep.subr.bf16.mxu0 0
        %3267 = vmatpush1.bf16.msra.mxu0 0
        %3268 = vmatprep.subr.bf16.mxu0 0
        %3269 = vmatpush1.bf16.msra.mxu0 0
        %3270 = vmatprep.subr.bf16.mxu0 0
        %3271 = vmatpush1.bf16.msra.mxu0 0
        %3272 = vmatprep.mubr.bf16.mxu0 %v3193
        %3273 = vmatmul.mubr.bf16.gmra.mrb[0].mxu0 %v3048
        %v3274 = vpop.f32.mrb[0].mxu0
        %v3275 = vadd.f32 0.0, %v3274
        %v3276 = vpop.f32.mrb[0].mxu0
        %v3277 = vpop.f32.mrb[0].mxu0
        %v3278 = vadd.f32 0.0, %v3277
        %v3279 = vpop.f32.mrb[0].mxu0
        %3280 = vmatprep.mubr.bf16.mxu0 %v3196
        %3281 = vmatmul.mubr.bf16.gmra.mrb[0].mxu0 %v3051
        %v3282 = vpop.f32.mrb[0].mxu0
        %v3283 = vadd.f32 0.0, %v3282
        %v3284 = vpop.f32.mrb[0].mxu0
        %v3285 = vpop.f32.mrb[0].mxu0
        %v3286 = vadd.f32 0.0, %v3285
        %v3287 = vpop.f32.mrb[0].mxu0
        %3288 = vmatprep.mubr.bf16.mxu0 %v3199
        %3289 = vmatmul.mubr.bf16.gmra.mrb[0].mxu0 %v3054
        %v3290 = vpop.f32.mrb[0].mxu0
        %v3291 = vadd.f32 0.0, %v3290
        %v3292 = vpop.f32.mrb[0].mxu0
        %v3293 = vpop.f32.mrb[0].mxu0
        %v3294 = vadd.f32 0.0, %v3293
        %v3295 = vpop.f32.mrb[0].mxu0
        %3296 = vmatprep.mubr.bf16.mxu0 %v3202
        %3297 = vmatmul.mubr.bf16.gmra.mrb[0].mxu0 %v3057
        %v3298 = vpop.f32.mrb[0].mxu0
        %v3299 = vadd.f32 0.0, %v3298
        %v3300 = vpop.f32.mrb[0].mxu0
        %v3301 = vpop.f32.mrb[0].mxu0
        %v3302 = vadd.f32 0.0, %v3301
        %v3303 = vpop.f32.mrb[0].mxu0
        %3304 = vmatprep.mubr.bf16.mxu0 %v3205
        %3305 = vmatmul.mubr.bf16.gmra.mrb[0].mxu0 %v3060
        %v3306 = vpop.f32.mrb[0].mxu0
        %v3307 = vadd.f32 0.0, %v3306
        %v3308 = vpop.f32.mrb[0].mxu0
        %v3309 = vpop.f32.mrb[0].mxu0
        %v3310 = vadd.f32 0.0, %v3309
        %v3311 = vpop.f32.mrb[0].mxu0
        %3312 = vmatprep.mubr.bf16.mxu0 %v3208
        %3313 = vmatmul.mubr.bf16.gmra.mrb[0].mxu0 %v3063
        %v3314 = vpop.f32.mrb[0].mxu0
        %v3315 = vadd.f32 0.0, %v3314
        %v3316 = vpop.f32.mrb[0].mxu0
        %v3317 = vpop.f32.mrb[0].mxu0
        %v3318 = vadd.f32 0.0, %v3317
        %v3319 = vpop.f32.mrb[0].mxu0
        %3320 = vmatprep.mubr.bf16.mxu0 %v3211
        %3321 = vmatmul.mubr.bf16.gmra.mrb[0].mxu0 %v3066
        %v3322 = vpop.f32.mrb[0].mxu0
        %v3323 = vadd.f32 0.0, %v3322
        %v3324 = vpop.f32.mrb[0].mxu0
        %v3325 = vpop.f32.mrb[0].mxu0
        %v3326 = vadd.f32 0.0, %v3325
        %v3327 = vpop.f32.mrb[0].mxu0
        %3328 = vmatprep.mubr.bf16.mxu0 %v3214
        %3329 = vmatmul.mubr.bf16.gmra.mrb[0].mxu0 %v3069
        %v3330 = vpop.f32.mrb[0].mxu0
        %v3331 = vadd.f32 0.0, %v3330
        %v3332 = vpop.f32.mrb[0].mxu0
        %v3333 = vpop.f32.mrb[0].mxu0
        %v3334 = vadd.f32 0.0, %v3333
        %v3335 = vpop.f32.mrb[0].mxu0
        %3336 = vmatprep.mubr.bf16.mxu0 %v3217
        %3337 = vmatmul.mubr.bf16.gmra.mrb[0].mxu0 %v3072
        %v3338 = vpop.f32.mrb[0].mxu0
        %v3339 = vadd.f32 0.0, %v3338
        %v3340 = vpop.f32.mrb[0].mxu0
        %v3341 = vpop.f32.mrb[0].mxu0
        %v3342 = vadd.f32 0.0, %v3341
        %v3343 = vpop.f32.mrb[0].mxu0
        %3344 = vmatprep.mubr.bf16.mxu0 %v3220
        %3345 = vmatmul.mubr.bf16.gmra.mrb[0].mxu0 %v3075
        %v3346 = vpop.f32.mrb[0].mxu0
        %v3347 = vadd.f32 0.0, %v3346
        %v3348 = vpop.f32.mrb[0].mxu0
        %v3349 = vpop.f32.mrb[0].mxu0
        %v3350 = vadd.f32 0.0, %v3349
        %v3351 = vpop.f32.mrb[0].mxu0
        %3352 = vmatprep.mubr.bf16.mxu0 %v3223
        %3353 = vmatmul.mubr.bf16.gmra.mrb[0].mxu0 %v3078
        %v3354 = vpop.f32.mrb[0].mxu0
        %v3355 = vadd.f32 0.0, %v3354
        %v3356 = vpop.f32.mrb[0].mxu0
        %v3357 = vpop.f32.mrb[0].mxu0
        %v3358 = vadd.f32 0.0, %v3357
        %v3359 = vpop.f32.mrb[0].mxu0
        %3360 = vmatprep.mubr.bf16.mxu0 %v3226
        %3361 = vmatmul.mubr.bf16.gmra.mrb[0].mxu0 %v3081
        %v3362 = vpop.f32.mrb[0].mxu0
        %v3363 = vadd.f32 0.0, %v3362
        %v3364 = vpop.f32.mrb[0].mxu0
        %v3365 = vpop.f32.mrb[0].mxu0
        %v3366 = vadd.f32 0.0, %v3365
        %v3367 = vpop.f32.mrb[0].mxu0
        %3368 = vmatprep.mubr.bf16.mxu0 %v3229
        %3369 = vmatmul.mubr.bf16.gmra.mrb[0].mxu0 %v3084
        %v3370 = vpop.f32.mrb[0].mxu0
        %v3371 = vadd.f32 0.0, %v3370
        %v3372 = vpop.f32.mrb[0].mxu0
        %v3373 = vpop.f32.mrb[0].mxu0
        %v3374 = vadd.f32 0.0, %v3373
        %v3375 = vpop.f32.mrb[0].mxu0
        %3376 = vmatprep.mubr.bf16.mxu0 %v3232
        %3377 = vmatmul.mubr.bf16.gmra.mrb[0].mxu0 %v3087
        %v3378 = vpop.f32.mrb[0].mxu0
        %v3379 = vadd.f32 0.0, %v3378
        %v3380 = vpop.f32.mrb[0].mxu0
        %v3381 = vpop.f32.mrb[0].mxu0
        %v3382 = vadd.f32 0.0, %v3381
        %v3383 = vpop.f32.mrb[0].mxu0
        %3384 = vmatprep.mubr.bf16.mxu0 %v3235
        %3385 = vmatmul.mubr.bf16.gmra.mrb[0].mxu0 %v3090
        %v3386 = vpop.f32.mrb[0].mxu0
        %v3387 = vadd.f32 0.0, %v3386
        %v3388 = vpop.f32.mrb[0].mxu0
        %v3389 = vpop.f32.mrb[0].mxu0
        %v3390 = vadd.f32 0.0, %v3389
        %v3391 = vpop.f32.mrb[0].mxu0
        %3392 = vmatprep.mubr.bf16.mxu0 %v3238
        %3393 = vmatmul.mubr.bf16.gmra.mrb[0].mxu0 %v3093
        %v3394 = vpop.f32.mrb[0].mxu0
        %v3395 = vadd.f32 0.0, %v3394
        %v3396 = vpop.f32.mrb[0].mxu0
        %v3397 = vpop.f32.mrb[0].mxu0
        %v3398 = vadd.f32 0.0, %v3397
        %v3399 = vpop.f32.mrb[0].mxu0
        %3400 = vdwg.mxu0
        %v3401 = vld [vmem:[#allocation3] sm:$0xff]
        %v3402 = vld [vmem:[#allocation3 + $0x8] sm:$0xff]
        %v3403 = vld [vmem:[#allocation3 + $0x10] sm:$0xff]
        %v3404 = vld [vmem:[#allocation3 + $0x18] sm:$0xff]
        %v3405 = vld [vmem:[#allocation3 + $0x20] sm:$0xff]
        %v3406 = vld [vmem:[#allocation3 + $0x28] sm:$0xff]
        %v3407 = vld [vmem:[#allocation3 + $0x30] sm:$0xff]
        %v3408 = vld [vmem:[#allocation3 + $0x38] sm:$0xff]
        %v3409 = vld [vmem:[#allocation3 + $0x40] sm:$0xff]
        %v3410 = vld [vmem:[#allocation3 + $0x48] sm:$0xff]
        %v3411 = vld [vmem:[#allocation3 + $0x50] sm:$0xff]
        %v3412 = vld [vmem:[#allocation3 + $0x58] sm:$0xff]
        %v3413 = vld [vmem:[#allocation3 + $0x60] sm:$0xff]
        %v3414 = vld [vmem:[#allocation3 + $0x68] sm:$0xff]
        %v3415 = vld [vmem:[#allocation3 + $0x70] sm:$0xff]
        %v3416 = vld [vmem:[#allocation3 + $0x78] sm:$0xff]
        %v3417 = vld [vmem:[#allocation3 + $0x80] sm:$0xff]
        %v3418 = vld [vmem:[#allocation3 + $0x88] sm:$0xff]
        %v3419 = vld [vmem:[#allocation3 + $0x90] sm:$0xff]
        %v3420 = vld [vmem:[#allocation3 + $0x98] sm:$0xff]
        %v3421 = vld [vmem:[#allocation3 + $0xa0] sm:$0xff]
        %v3422 = vld [vmem:[#allocation3 + $0xa8] sm:$0xff]
        %v3423 = vld [vmem:[#allocation3 + $0xb0] sm:$0xff]
        %v3424 = vld [vmem:[#allocation3 + $0xb8] sm:$0xff]
        %v3425 = vld [vmem:[#allocation3 + $0xc0] sm:$0xff]
        %v3426 = vld [vmem:[#allocation3 + $0xc8] sm:$0xff]
        %v3427 = vld [vmem:[#allocation3 + $0xd0] sm:$0xff]
        %v3428 = vld [vmem:[#allocation3 + $0xd8] sm:$0xff]
        %v3429 = vld [vmem:[#allocation3 + $0xe0] sm:$0xff]
        %v3430 = vld [vmem:[#allocation3 + $0xe8] sm:$0xff]
        %v3431 = vld [vmem:[#allocation3 + $0xf0] sm:$0xff]
        %v3432 = vld [vmem:[#allocation3 + $0xf8] sm:$0xff]
        %v3433 = vadd.f32 %v3401, %v3275
        %v3434 = vadd.f32 %v3402, %v3278
        %v3435 = vadd.f32 %v3403, %v3283
        %v3436 = vadd.f32 %v3404, %v3286
        %v3437 = vadd.f32 %v3405, %v3291
        %v3438 = vadd.f32 %v3406, %v3294
        %v3439 = vadd.f32 %v3407, %v3299
        %v3440 = vadd.f32 %v3408, %v3302
        %v3441 = vadd.f32 %v3409, %v3307
        %v3442 = vadd.f32 %v3410, %v3310
        %v3443 = vadd.f32 %v3411, %v3315
        %v3444 = vadd.f32 %v3412, %v3318
        %v3445 = vadd.f32 %v3413, %v3323
        %v3446 = vadd.f32 %v3414, %v3326
        %v3447 = vadd.f32 %v3415, %v3331
        %v3448 = vadd.f32 %v3416, %v3334
        %v3449 = vadd.f32 %v3417, %v3339
        %v3450 = vadd.f32 %v3418, %v3342
        %v3451 = vadd.f32 %v3419, %v3347
        %v3452 = vadd.f32 %v3420, %v3350
        %v3453 = vadd.f32 %v3421, %v3355
        %v3454 = vadd.f32 %v3422, %v3358
        %v3455 = vadd.f32 %v3423, %v3363
        %v3456 = vadd.f32 %v3424, %v3366
        %v3457 = vadd.f32 %v3425, %v3371
        %v3458 = vadd.f32 %v3426, %v3374
        %v3459 = vadd.f32 %v3427, %v3379
        %v3460 = vadd.f32 %v3428, %v3382
        %v3461 = vadd.f32 %v3429, %v3387
        %v3462 = vadd.f32 %v3430, %v3390
        %v3463 = vadd.f32 %v3431, %v3395
        %v3464 = vadd.f32 %v3432, %v3398
        %3465 = vst.msk [vmem:[#allocation3] sm:$0xff] %vm1186, %v3433
        %3466 = vst.msk [vmem:[#allocation3 + $0x8] sm:$0xff] %vm1186, %v3434
        %3467 = vst.msk [vmem:[#allocation3 + $0x10] sm:$0xff] %vm1186, %v3435
        %3468 = vst.msk [vmem:[#allocation3 + $0x18] sm:$0xff] %vm1186, %v3436
        %3469 = vst.msk [vmem:[#allocation3 + $0x20] sm:$0xff] %vm1186, %v3437
        %3470 = vst.msk [vmem:[#allocation3 + $0x28] sm:$0xff] %vm1186, %v3438
        %3471 = vst.msk [vmem:[#allocation3 + $0x30] sm:$0xff] %vm1186, %v3439
        %3472 = vst.msk [vmem:[#allocation3 + $0x38] sm:$0xff] %vm1186, %v3440
        %3473 = vst.msk [vmem:[#allocation3 + $0x40] sm:$0xff] %vm1186, %v3441
        %3474 = vst.msk [vmem:[#allocation3 + $0x48] sm:$0xff] %vm1186, %v3442
        %3475 = vst.msk [vmem:[#allocation3 + $0x50] sm:$0xff] %vm1186, %v3443
        %3476 = vst.msk [vmem:[#allocation3 + $0x58] sm:$0xff] %vm1186, %v3444
        %3477 = vst.msk [vmem:[#allocation3 + $0x60] sm:$0xff] %vm1186, %v3445
        %3478 = vst.msk [vmem:[#allocation3 + $0x68] sm:$0xff] %vm1186, %v3446
        %3479 = vst.msk [vmem:[#allocation3 + $0x70] sm:$0xff] %vm1186, %v3447
        %3480 = vst.msk [vmem:[#allocation3 + $0x78] sm:$0xff] %vm1186, %v3448
        %3481 = vst.msk [vmem:[#allocation3 + $0x80] sm:$0xff] %vm1186, %v3449
        %3482 = vst.msk [vmem:[#allocation3 + $0x88] sm:$0xff] %vm1186, %v3450
        %3483 = vst.msk [vmem:[#allocation3 + $0x90] sm:$0xff] %vm1186, %v3451
        %3484 = vst.msk [vmem:[#allocation3 + $0x98] sm:$0xff] %vm1186, %v3452
        %3485 = vst.msk [vmem:[#allocation3 + $0xa0] sm:$0xff] %vm1186, %v3453
        %3486 = vst.msk [vmem:[#allocation3 + $0xa8] sm:$0xff] %vm1186, %v3454
        %3487 = vst.msk [vmem:[#allocation3 + $0xb0] sm:$0xff] %vm1186, %v3455
        %3488 = vst.msk [vmem:[#allocation3 + $0xb8] sm:$0xff] %vm1186, %v3456
        %3489 = vst.msk [vmem:[#allocation3 + $0xc0] sm:$0xff] %vm1186, %v3457
        %3490 = vst.msk [vmem:[#allocation3 + $0xc8] sm:$0xff] %vm1186, %v3458
        %3491 = vst.msk [vmem:[#allocation3 + $0xd0] sm:$0xff] %vm1186, %v3459
        %3492 = vst.msk [vmem:[#allocation3 + $0xd8] sm:$0xff] %vm1186, %v3460
        %3493 = vst.msk [vmem:[#allocation3 + $0xe0] sm:$0xff] %vm1186, %v3461
        %3494 = vst.msk [vmem:[#allocation3 + $0xe8] sm:$0xff] %vm1186, %v3462
        %3495 = vst.msk [vmem:[#allocation3 + $0xf0] sm:$0xff] %vm1186, %v3463
        %3496 = vst.msk [vmem:[#allocation3 + $0xf8] sm:$0xff] %vm1186, %v3464
        %v3497 = vld [vmem:[#allocation3] sm:$0xff]
        %v3498 = vld [vmem:[#allocation3 + $0x8] sm:$0xff]
        %v3499 = vld [vmem:[#allocation3 + $0x10] sm:$0xff]
        %v3500 = vld [vmem:[#allocation3 + $0x18] sm:$0xff]
        %v3501 = vld [vmem:[#allocation3 + $0x20] sm:$0xff]
        %v3502 = vld [vmem:[#allocation3 + $0x28] sm:$0xff]
        %v3503 = vld [vmem:[#allocation3 + $0x30] sm:$0xff]
        %v3504 = vld [vmem:[#allocation3 + $0x38] sm:$0xff]
        %v3505 = vld [vmem:[#allocation3 + $0x40] sm:$0xff]
        %v3506 = vld [vmem:[#allocation3 + $0x48] sm:$0xff]
        %v3507 = vld [vmem:[#allocation3 + $0x50] sm:$0xff]
        %v3508 = vld [vmem:[#allocation3 + $0x58] sm:$0xff]
        %v3509 = vld [vmem:[#allocation3 + $0x60] sm:$0xff]
        %v3510 = vld [vmem:[#allocation3 + $0x68] sm:$0xff]
        %v3511 = vld [vmem:[#allocation3 + $0x70] sm:$0xff]
        %v3512 = vld [vmem:[#allocation3 + $0x78] sm:$0xff]
        %v3513 = vld [vmem:[#allocation3 + $0x80] sm:$0xff]
        %v3514 = vld [vmem:[#allocation3 + $0x88] sm:$0xff]
        %v3515 = vld [vmem:[#allocation3 + $0x90] sm:$0xff]
        %v3516 = vld [vmem:[#allocation3 + $0x98] sm:$0xff]
        %v3517 = vld [vmem:[#allocation3 + $0xa0] sm:$0xff]
        %v3518 = vld [vmem:[#allocation3 + $0xa8] sm:$0xff]
        %v3519 = vld [vmem:[#allocation3 + $0xb0] sm:$0xff]
        %v3520 = vld [vmem:[#allocation3 + $0xb8] sm:$0xff]
        %v3521 = vld [vmem:[#allocation3 + $0xc0] sm:$0xff]
        %v3522 = vld [vmem:[#allocation3 + $0xc8] sm:$0xff]
        %v3523 = vld [vmem:[#allocation3 + $0xd0] sm:$0xff]
        %v3524 = vld [vmem:[#allocation3 + $0xd8] sm:$0xff]
        %v3525 = vld [vmem:[#allocation3 + $0xe0] sm:$0xff]
        %v3526 = vld [vmem:[#allocation3 + $0xe8] sm:$0xff]
        %v3527 = vld [vmem:[#allocation3 + $0xf0] sm:$0xff]
        %v3528 = vld [vmem:[#allocation3 + $0xf8] sm:$0xff]
        %v3529 = vmax.f32 %v3497, 0.0
        %v3530 = vmax.f32 %v3498, 0.0
        %v3531 = vmax.f32 %v3499, 0.0
        %v3532 = vmax.f32 %v3500, 0.0
        %v3533 = vmax.f32 %v3501, 0.0
        %v3534 = vmax.f32 %v3502, 0.0
        %v3535 = vmax.f32 %v3503, 0.0
        %v3536 = vmax.f32 %v3504, 0.0
        %v3537 = vmax.f32 %v3505, 0.0
        %v3538 = vmax.f32 %v3506, 0.0
        %v3539 = vmax.f32 %v3507, 0.0
        %v3540 = vmax.f32 %v3508, 0.0
        %v3541 = vmax.f32 %v3509, 0.0
        %v3542 = vmax.f32 %v3510, 0.0
        %v3543 = vmax.f32 %v3511, 0.0
        %v3544 = vmax.f32 %v3512, 0.0
        %v3545 = vmax.f32 %v3513, 0.0
        %v3546 = vmax.f32 %v3514, 0.0
        %v3547 = vmax.f32 %v3515, 0.0
        %v3548 = vmax.f32 %v3516, 0.0
        %v3549 = vmax.f32 %v3517, 0.0
        %v3550 = vmax.f32 %v3518, 0.0
        %v3551 = vmax.f32 %v3519, 0.0
        %v3552 = vmax.f32 %v3520, 0.0
        %v3553 = vmax.f32 %v3521, 0.0
        %v3554 = vmax.f32 %v3522, 0.0
        %v3555 = vmax.f32 %v3523, 0.0
        %v3556 = vmax.f32 %v3524, 0.0
        %v3557 = vmax.f32 %v3525, 0.0
        %v3558 = vmax.f32 %v3526, 0.0
        %v3559 = vmax.f32 %v3527, 0.0
        %v3560 = vmax.f32 %v3528, 0.0
        %3561 = vst.msk [vmem:[%s136] sm:$0xff] %vm1186, %v3529
        %3562 = vst.msk [vmem:[%s136 + $0x8] sm:$0xff] %vm1186, %v3530
        %3563 = vst.msk [vmem:[%s136 + $0x10] sm:$0xff] %vm1186, %v3531
        %3564 = vst.msk [vmem:[%s136 + $0x18] sm:$0xff] %vm1186, %v3532
        %3565 = vst.msk [vmem:[%s136 + $0x20] sm:$0xff] %vm1186, %v3533
        %3566 = vst.msk [vmem:[%s136 + $0x28] sm:$0xff] %vm1186, %v3534
        %3567 = vst.msk [vmem:[%s136 + $0x30] sm:$0xff] %vm1186, %v3535
        %3568 = vst.msk [vmem:[%s136 + $0x38] sm:$0xff] %vm1186, %v3536
        %3569 = vst.msk [vmem:[%s136 + $0x40] sm:$0xff] %vm1186, %v3537
        %3570 = vst.msk [vmem:[%s136 + $0x48] sm:$0xff] %vm1186, %v3538
        %3571 = vst.msk [vmem:[%s136 + $0x50] sm:$0xff] %vm1186, %v3539
        %3572 = vst.msk [vmem:[%s136 + $0x58] sm:$0xff] %vm1186, %v3540
        %3573 = vst.msk [vmem:[%s136 + $0x60] sm:$0xff] %vm1186, %v3541
        %3574 = vst.msk [vmem:[%s136 + $0x68] sm:$0xff] %vm1186, %v3542
        %3575 = vst.msk [vmem:[%s136 + $0x70] sm:$0xff] %vm1186, %v3543
        %3576 = vst.msk [vmem:[%s136 + $0x78] sm:$0xff] %vm1186, %v3544
        %3577 = vst.msk [vmem:[%s136 + $0x80] sm:$0xff] %vm1186, %v3545
        %3578 = vst.msk [vmem:[%s136 + $0x88] sm:$0xff] %vm1186, %v3546
        %3579 = vst.msk [vmem:[%s136 + $0x90] sm:$0xff] %vm1186, %v3547
        %3580 = vst.msk [vmem:[%s136 + $0x98] sm:$0xff] %vm1186, %v3548
        %3581 = vst.msk [vmem:[%s136 + $0xa0] sm:$0xff] %vm1186, %v3549
        %3582 = vst.msk [vmem:[%s136 + $0xa8] sm:$0xff] %vm1186, %v3550
        %3583 = vst.msk [vmem:[%s136 + $0xb0] sm:$0xff] %vm1186, %v3551
        %3584 = vst.msk [vmem:[%s136 + $0xb8] sm:$0xff] %vm1186, %v3552
        %3585 = vst.msk [vmem:[%s136 + $0xc0] sm:$0xff] %vm1186, %v3553
        %3586 = vst.msk [vmem:[%s136 + $0xc8] sm:$0xff] %vm1186, %v3554
        %3587 = vst.msk [vmem:[%s136 + $0xd0] sm:$0xff] %vm1186, %v3555
        %3588 = vst.msk [vmem:[%s136 + $0xd8] sm:$0xff] %vm1186, %v3556
        %3589 = vst.msk [vmem:[%s136 + $0xe0] sm:$0xff] %vm1186, %v3557
        %3590 = vst.msk [vmem:[%s136 + $0xe8] sm:$0xff] %vm1186, %v3558
        %3591 = vst.msk [vmem:[%s136 + $0xf0] sm:$0xff] %vm1186, %v3559
        %3592 = vst.msk [vmem:[%s136 + $0xf8] sm:$0xff] %vm1186, %v3560
        %s3593 = sand.u32 %s71, 1
        %s3594 = scalar_lea.sflag [#allocation5], %s3593
        %s3595 = sand.u32 %s71, 1
        %s3596 = smul.addr %s3595, 256
        %s3597 = scalar_lea.vmem [#allocation4], %s3596
        // Predicated region
        $region29: #{conv_relu_block_nhwc.1} parent=27 // pred_check
          %p3598 = pneg %p81
        $region30: #{conv_relu_block_nhwc.1} parent=27 // pred_check_branch
          %3600 = sbr.rel (%p3598) target = $region32
        $region31: #{conv_relu_block_nhwc.1} parent=27 // pred_region
          %s3602 = ssub.s32 4096, 4096
          %3603 = vsyncadd %s3594, %s3602
          %s3604 = smul.addr %s16, 32
          %s3605 = smul.addr %s3604, 128
          %s3606 = scalar_lea.hbm %s2, %s3605
          %s3607 = sshll.u32 %s3597, 4
          %s3608 = int_to_ptr.vmem [resolvable:$true] %s3607
          %3613 = dma.vmem_to_hbm [thread:$0]  %s3608, 4096, %s3606, %s3594, 128, 128, 8
        $region32: #{conv_relu_block_nhwc.1} parent=27 // pred_fallthru
          _
      $region28: #{conv_relu_block_nhwc.1} parent=5 // pred_fallthru
        _
      %p3614 = scmp.le.s32.totalorder 2, %s11
      // Predicated region
      $region33: #{conv_relu_block_nhwc.1} parent=5 // pred_check
        %p3615 = pneg %p3614
      $region34: #{conv_relu_block_nhwc.1} parent=5 // pred_check_branch
        %3617 = sbr.rel (%p3615) target = $region36
      $region35: #{conv_relu_block_nhwc.1} parent=5 // pred_region
        %s3618 = ssub.s32 %s11, 2
        // Predicated region
        $region37: #{conv_relu_block_nhwc.1} parent=35 // pred_check
          %p3619 = pneg %p87
        $region38: #{conv_relu_block_nhwc.1} parent=35 // pred_check_branch
          %3621 = sbr.rel (%p3619) target = $region40
        $region39: #{conv_relu_block_nhwc.1} parent=35 // pred_region
          %s3622 = sand.u32 %s72, 1
          %s3623 = scalar_lea.sflag [#allocation5], %s3622
          %s3624 = sand.u32 %s72, 1
          %s3625 = smul.addr %s3624, 256
          %s3626 = scalar_lea.vmem [#allocation4], %s3625
          %3627 = dma.done %s3623, 4096
        $region40: #{conv_relu_block_nhwc.1} parent=35 // pred_fallthru
          _
      $region36: #{conv_relu_block_nhwc.1} parent=5 // pred_fallthru
        _
    $region6: #{conv_relu_block_nhwc.1} parent=1 // loop_footer
      %s15 = sadd.s32 1, %s11
    $region7: #{conv_relu_block_nhwc.1} parent=1 // loop_footer_branch
      %10 = sbr.rel target = $region3
    $region8: #{conv_relu_block_nhwc.1} parent=1 // loop_exit
      _
    %3628 = vsyncpa [#allocation5], 1
    %s3629 = scalar_lea.sflag [#allocation5], 1
    %3630 = vsyncpa %s3629, 1

</llo_original>
